<compile_context>
chip_gen: v7x
topology: tpu7x:2x2x1
jax: 0.10.0
libtpu: 0.0.40
codegen_flags: <defaults>
</compile_context>

<pallas_src>
import functools
import math

import numpy as np
import jax
import jax.numpy as jnp
from jax import lax
from jax.experimental import pallas as pl
from jax.experimental.pallas import tpu as pltpu

# ---------------------------------------------------------------------------
# Model hyper-parameters (small, consistent with the module)
# ---------------------------------------------------------------------------
B = 2          # batch
N = 16         # number of tokens per image
D = 32         # embed_dim
H = 4          # num_heads
HEAD_DIM = D // H
EPS = 1e-5
_INV_SQRT2 = 0.7071067811865476
_NEG = -1e30   # additive mask value (finite, avoids -inf arithmetic corner cases)


# ---------------------------------------------------------------------------
# In-kernel math helpers (traced inside the Pallas kernel body)
# ---------------------------------------------------------------------------
def _erf_approx(x):
    # Abramowitz & Stegun 7.1.26 rational approximation, |error| < 1.5e-7 (f32-accurate).
    p = 0.3275911
    a1, a2, a3, a4, a5 = 0.254829592, -0.284496736, 1.421413741, -1.453152027, 1.061405429
    sgn = jnp.where(x < 0.0, -1.0, 1.0)
    ax = jnp.abs(x)
    t = 1.0 / (1.0 + p * ax)
    poly = t * (a1 + t * (a2 + t * (a3 + t * (a4 + t * a5))))
    return sgn * (1.0 - poly * jnp.exp(-ax * ax))


def _gelu(x, use_erf):
    if use_erf:
        return 0.5 * x * (1.0 + lax.erf(x * _INV_SQRT2))
    # TODO(synk): fallback when lax.erf does not lower in this Mosaic build; rational erf
    # approximation is f32-accurate (~1e-7) but not bit-identical to torch's exact GELU.
    return 0.5 * x * (1.0 + _erf_approx(x * _INV_SQRT2))


def _softmax_last(s):
    s = s - jnp.max(s, axis=-1, keepdims=True)
    e = jnp.exp(s)
    return e * pl.reciprocal(jnp.sum(e, axis=-1, keepdims=True), approx=True)


def _masked_attention(q, k, v, bias):
    # Per-head softmax(q k^T + bias) v on the stacked (2N, D) slab.  The attention scale is
    # already folded into the q-side projection weights.  Per-head contexts are concatenated
    # on lanes so the output projection is ONE matmul outside this helper.
    ctxs = []
    for h in range(H):
        sl = slice(h * HEAD_DIM, (h + 1) * HEAD_DIM)
        s = lax.dot_general(q[:, sl], k[:, sl], (((1,), (1,)), ((), ())),
                            preferred_element_type=jnp.float32)
        p = _softmax_last(s + bias)
        ctxs.append(jnp.dot(p, v[:, sl], preferred_element_type=jnp.float32))
    return jnp.concatenate(ctxs, axis=-1)          # (2N, D)


def _ffn_residual(x, msg, w1a, w1b, b1, gamma, beta, w2, b2, use_erf):
    # out = x + Linear2(GELU(LayerNorm(Linear1([x, msg]))))
    # The [x, msg] concat is realized as a row-split first-layer weight (no lane concat).
    h = (jnp.dot(x, w1a, preferred_element_type=jnp.float32)
         + jnp.dot(msg, w1b, preferred_element_type=jnp.float32) + b1)
    mu = jnp.mean(h, axis=-1, keepdims=True)
    var = jnp.mean((h - mu) ** 2, axis=-1, keepdims=True)
    hn = (h - mu) * lax.rsqrt(var + EPS) * gamma + beta
    y = jnp.dot(_gelu(hn, use_erf), w2, preferred_element_type=jnp.float32) + b2
    return x + y


# ---------------------------------------------------------------------------
# Single fused kernel: self(x0), self(x1), cross(x0, x1) for one batch item per grid step
# ---------------------------------------------------------------------------
def transformer_layer_kernel(
        d0_ref, d1_ref, cos2_ref, sin2_ref,
        # self-block params
        s_wqkv, s_bqkv, s_wo, s_bo, s_w1a, s_w1b, s_b1, s_g, s_be, s_w2, s_b2,
        # cross-block params
        c_wqkv, c_bqkv, c_wo, c_bo, c_w1a, c_w1b, c_b1, c_g, c_be, c_w2, c_b2,
        o0_ref, o1_ref, *, use_erf):
    n2 = 2 * N
    x = jnp.concatenate([d0_ref[0], d1_ref[0]], axis=0)        # (2N, D), both images stacked
    cos2 = cos2_ref[0]                                         # (2N, 2D) tiled cos
    sin2 = sin2_ref[0]                                         # (2N, 2D) tiled sin

    # Compile-time block-structure masks (iota compares, no HBM constants):
    #   self  : attend only within the own image  (block-diagonal)
    #   cross : attend only to the other image    (anti-diagonal)
    row_img = lax.broadcasted_iota(jnp.int32, (n2, n2), 0) >= N
    col_img = lax.broadcasted_iota(jnp.int32, (n2, n2), 1) >= N
    same = row_img == col_img
    self_bias = jnp.where(same, 0.0, _NEG)
    cross_bias = jnp.where(same, _NEG, 0.0)

    # ---- Self block (both images at once; shared weights) --------------------------------
    # Fused projection columns: [ q | k | rotate_half(q) | rotate_half(k) | v ]
    # (rotation folded into the weights, attention scale folded into the q columns).
    proj = jnp.dot(x, s_wqkv[...], preferred_element_type=jnp.float32) + s_bqkv[...]
    qk = proj[:, :2 * D] * cos2 + proj[:, 2 * D:4 * D] * sin2  # RoPE: one 64-lane FMA
    q, k, v = qk[:, :D], qk[:, D:], proj[:, 4 * D:]
    ctx = _masked_attention(q, k, v, self_bias)
    msg = jnp.dot(ctx, s_wo[...], preferred_element_type=jnp.float32) + s_bo[...]
    x = _ffn_residual(x, msg, s_w1a[...], s_w1b[...], s_b1[...], s_g[...], s_be[...],
                      s_w2[...], s_b2[...], use_erf)

    # ---- Cross block (anti-diagonal mask: image0 <-> image1) -----------------------------
    proj = jnp.dot(x, c_wqkv[...], preferred_element_type=jnp.float32) + c_bqkv[...]
    qk, v = proj[:, :D], proj[:, D:]
    ctx = _masked_attention(qk, qk, v, cross_bias)
    msg = jnp.dot(ctx, c_wo[...], preferred_element_type=jnp.float32) + c_bo[...]
    y = _ffn_residual(x, msg, c_w1a[...], c_w1b[...], c_b1[...], c_g[...], c_be[...],
                      c_w2[...], c_b2[...], use_erf)

    o0_ref[0] = y[:N].astype(o0_ref.dtype)
    o1_ref[0] = y[N:].astype(o1_ref.dtype)


def _erf_probe_kernel(x_ref, o_ref):
    o_ref[...] = lax.erf(x_ref[...])


@functools.lru_cache(maxsize=1)
def _erf_supported_in_mosaic():
    try:
        x = jnp.zeros((8, 128), jnp.float32)
        jax.block_until_ready(
            pl.pallas_call(_erf_probe_kernel,
                           out_shape=jax.ShapeDtypeStruct((8, 128), jnp.float32))(x))
        return True
    except Exception:
        return False


# ---------------------------------------------------------------------------
# pallas_call wrapper (single call for the whole layer)
# ---------------------------------------------------------------------------
def _rep_spec(arr):
    # Whole-array block, same block for every grid step (weights loaded once).
    zeros = (0,) * arr.ndim

    def index_map(i, _z=zeros):
        return _z

    return pl.BlockSpec(arr.shape, index_map)


def transformer_layer_fused(desc0, desc1, cos2, sin2, sp, cp, use_erf):
    b, n, d = desc0.shape
    s_args = (sp["wqkv_t"], sp["bqkv"], sp["wo_t"], sp["bo"], sp["w1a_t"], sp["w1b_t"],
              sp["b1"], sp["gamma"], sp["beta"], sp["w2_t"], sp["b2"])
    c_args = (cp["wqkv_t"], cp["bqkv"], cp["wo_t"], cp["bo"], cp["w1a_t"], cp["w1b_t"],
              cp["b1"], cp["gamma"], cp["beta"], cp["w2_t"], cp["b2"])
    args = (desc0, desc1, cos2, sin2) + s_args + c_args

    bspec = pl.BlockSpec((1, n, d), lambda i: (i, 0, 0))
    espec = pl.BlockSpec((1, 2 * n, 2 * d), lambda i: (i, 0, 0))
    in_specs = [bspec, bspec, espec, espec] + [_rep_spec(a) for a in s_args + c_args]
    out_specs = (pl.BlockSpec((1, n, d), lambda i: (i, 0, 0)),
                 pl.BlockSpec((1, n, d), lambda i: (i, 0, 0)))

    return pl.pallas_call(
        functools.partial(transformer_layer_kernel, use_erf=use_erf),
        out_shape=(jax.ShapeDtypeStruct((b, n, d), desc0.dtype),
                   jax.ShapeDtypeStruct((b, n, d), desc1.dtype)),
        grid=(b,),
        in_specs=in_specs,
        out_specs=out_specs,
        compiler_params=pltpu.CompilerParams(dimension_semantics=("parallel",)),
    )(*args)


# ---------------------------------------------------------------------------
# One-time weight / encoding preparation (pure layout + scale folding, numerically exact;
# hoisted out of the jitted per-call path)
# ---------------------------------------------------------------------------
def _rotate_half_matrix(d):
    # R such that t @ R == rotate_half(t) for interleaved (even, odd) pairs on the last dim.
    r = np.zeros((d, d), np.float32)
    for i in range(0, d, 2):
        r[i + 1, i] = -1.0     # even output column <- -t[odd]
        r[i, i + 1] = 1.0      # odd  output column <-  t[even]
    return jnp.asarray(r)


def _ffn_prep(ffn):
    w1, b1, gamma, beta, w2, b2 = ffn
    w1_t = w1.T                                    # (2D, 2D), rows: [x-part | msg-part]
    return dict(w1a_t=w1_t[:D], w1b_t=w1_t[D:], b1=b1.reshape(1, 2 * D),
                gamma=gamma.reshape(1, 2 * D), beta=beta.reshape(1, 2 * D),
                w2_t=w2.T, b2=b2.reshape(1, D))


def prepare_self_params(p):
    # torch Wqkv output order is (head, head_dim, {q,k,v}); reorder columns so the fused
    # projection yields lane-contiguous [Q | K | rot(Q) | rot(K) | V] slabs in (head, head_dim)
    # order, with the attention scale folded into the Q columns.
    scale = HEAD_DIM ** -0.5
    wqkv = p["Wqkv"].reshape(H, HEAD_DIM, 3, D)
    bqkv = p["bqkv"].reshape(H, HEAD_DIM, 3)
    wq = wqkv[:, :, 0, :].reshape(D, D).T * scale          # (Din, Dout), Dout ordered h*hd+d
    wk = wqkv[:, :, 1, :].reshape(D, D).T
    wv = wqkv[:, :, 2, :].reshape(D, D).T
    bq = bqkv[:, :, 0].reshape(D) * scale
    bk = bqkv[:, :, 1].reshape(D)
    bv = bqkv[:, :, 2].reshape(D)
    rot = _rotate_half_matrix(D)
    wqkv_t = jnp.concatenate([wq, wk, wq @ rot, wk @ rot, wv], axis=1)          # (D, 5D)
    bqkv_f = jnp.concatenate([bq, bk, bq @ rot, bk @ rot, bv]).reshape(1, 5 * D)
    out = dict(wqkv_t=wqkv_t, bqkv=bqkv_f, wo_t=p["Wout"].T, bo=p["bout"].reshape(1, D))
    out.update(_ffn_prep(p["ffn"]))
    return out


def prepare_cross_params(p):
    # sqrt(scale) folded into the shared QK projection (both sides inherit it -> scale total).
    r = HEAD_DIM ** -0.25
    wqkv_t = jnp.concatenate([p["Wqk"].T * r, p["Wv"].T], axis=1)               # (D, 2D)
    bqkv = jnp.concatenate([p["bqk"] * r, p["bv"]]).reshape(1, 2 * D)
    out = dict(wqkv_t=wqkv_t, bqkv=bqkv, wo_t=p["Wo"].T, bo=p["bo"].reshape(1, D))
    out.update(_ffn_prep(p["ffn"]))
    return out


def prepare_encodings(enc0, enc1):
    # enc: (2, B, 1, N, head_dim) -> cos/sin tiled across heads onto the flat D axis, then
    # duplicated across the [q|k] 64-lane slab, and both images stacked on the token axis:
    # result (B, 2N, 2D).
    def expand(e):
        cs = jnp.tile(e[:, 0], (1, 1, H))          # (B, N, D)
        return jnp.tile(cs, (1, 1, 2))             # (B, N, 2D)

    cos = jnp.concatenate([expand(enc0[0]), expand(enc1[0])], axis=1)
    sin = jnp.concatenate([expand(enc0[1]), expand(enc1[1])], axis=1)
    return cos, sin


# ---------------------------------------------------------------------------
# Pure-JAX reference (mirrors the PyTorch module; correctness oracle)
# ---------------------------------------------------------------------------
def reference_forward(desc0, desc1, enc0, enc1, prm):
    hp = lax.Precision.HIGHEST

    def linear(x, w, b):
        return jnp.einsum("...i,oi->...o", x, w, precision=hp) + b

    def rot_half(x):
        xr = x.reshape(x.shape[:-1] + (-1, 2))
        return jnp.stack((-xr[..., 1], xr[..., 0]), axis=-1).reshape(x.shape)

    def ffn(xm, fp):
        w1, b1, g, beta, w2, b2 = fp
        h = linear(xm, w1, b1)
        mu = h.mean(-1, keepdims=True)
        var = ((h - mu) ** 2).mean(-1, keepdims=True)
        h = (h - mu) / jnp.sqrt(var + EPS) * g + beta
        return linear(jax.nn.gelu(h, approximate=False), w2, b2)

    def self_block(x, enc, sp):
        b, n, d = x.shape
        qkv = linear(x, sp["Wqkv"], sp["bqkv"]).reshape(b, n, H, HEAD_DIM, 3)
        qkv = qkv.transpose(0, 2, 1, 3, 4)
        q, k, v = qkv[..., 0], qkv[..., 1], qkv[..., 2]
        q = q * enc[0] + rot_half(q) * enc[1]
        k = k * enc[0] + rot_half(k) * enc[1]
        s = jnp.einsum("bhid,bhjd->bhij", q, k, precision=hp) * HEAD_DIM ** -0.5
        ctx = jnp.einsum("bhij,bhjd->bhid", jax.nn.softmax(s, -1), v, precision=hp)
        msg = linear(ctx.transpose(0, 2, 1, 3).reshape(b, n, d), sp["Wout"], sp["bout"])
        return x + ffn(jnp.concatenate([x, msg], -1), sp["ffn"])

    def cross_block(x0, x1, cp):
        b, n, d = x0.shape

        def heads(t):
            return t.reshape(b, n, H, HEAD_DIM).transpose(0, 2, 1, 3)

        qk0 = heads(linear(x0, cp["Wqk"], cp["bqk"]))
        qk1 = heads(linear(x1, cp["Wqk"], cp["bqk"]))
        v0 = heads(linear(x0, cp["Wv"], cp["bv"]))
        v1 = heads(linear(x1, cp["Wv"], cp["bv"]))
        sc = HEAD_DIM ** -0.5
        sim = jnp.einsum("bhid,bhjd->bhij", qk0 * sc ** 0.5, qk1 * sc ** 0.5, precision=hp)
        m0 = jnp.einsum("bhij,bhjd->bhid", jax.nn.softmax(sim, -1), v1, precision=hp)
        m1 = jnp.einsum("bhij,bhjd->bhid",
                        jax.nn.softmax(sim.transpose(0, 1, 3, 2), -1), v0, precision=hp)

        def merge(t):
            return t.transpose(0, 2, 1, 3).reshape(b, n, d)

        m0 = linear(merge(m0), cp["Wo"], cp["bo"])
        m1 = linear(merge(m1), cp["Wo"], cp["bo"])
        x0 = x0 + ffn(jnp.concatenate([x0, m0], -1), cp["ffn"])
        x1 = x1 + ffn(jnp.concatenate([x1, m1], -1), cp["ffn"])
        return x0, x1

    d0 = self_block(desc0, enc0, prm["self"])
    d1 = self_block(desc1, enc1, prm["self"])
    return cross_block(d0, d1, prm["cross"])


# ---------------------------------------------------------------------------
# Deterministic parameter / input construction (torch-style layouts)
# ---------------------------------------------------------------------------
def _linear_init(key, dout, din):
    kw, kb = jax.random.split(key)
    w = jax.random.normal(kw, (dout, din), jnp.float32) * (1.0 / math.sqrt(din))
    b = jax.random.normal(kb, (dout,), jnp.float32) * 0.02
    return w, b


def _ffn_init(key, d):
    k1, k2 = jax.random.split(key)
    w1, b1 = _linear_init(k1, 2 * d, 2 * d)
    w2, b2 = _linear_init(k2, d, 2 * d)
    gamma = jnp.ones((2 * d,), jnp.float32)   # LayerNorm affine init (torch default)
    beta = jnp.zeros((2 * d,), jnp.float32)
    return (w1, b1, gamma, beta, w2, b2)


def init_params(key):
    ks = jax.random.split(key, 8)
    Wqkv, bqkv = _linear_init(ks[0], 3 * D, D)
    Wout, bout = _linear_init(ks[1], D, D)
    self_p = {"Wqkv": Wqkv, "bqkv": bqkv, "Wout": Wout, "bout": bout,
              "ffn": _ffn_init(ks[2], D)}
    Wqk, bqk = _linear_init(ks[3], D, D)
    Wv, bv = _linear_init(ks[4], D, D)
    Wo, bo = _linear_init(ks[5], D, D)
    cross_p = {"Wqk": Wqk, "bqk": bqk, "Wv": Wv, "bv": bv, "Wo": Wo, "bo": bo,
               "ffn": _ffn_init(ks[6], D)}
    return {"self": self_p, "cross": cross_p}


def make_encoding(offset):
    # cached RoPE cos/sin, shape (2, B, 1, N, HEAD_DIM), values interleaved in pairs
    pos = jnp.arange(N, dtype=jnp.float32) + offset
    inv_freq = 1.0 / (10000.0 ** (jnp.arange(HEAD_DIM // 2, dtype=jnp.float32) / (HEAD_DIM // 2)))
    theta = pos[:, None] * inv_freq[None, :]                      # (N, hd/2)
    cos = jnp.stack([jnp.cos(theta), jnp.cos(theta)], -1).reshape(N, HEAD_DIM)
    sin = jnp.stack([jnp.sin(theta), jnp.sin(theta)], -1).reshape(N, HEAD_DIM)
    enc = jnp.stack([cos, sin], 0)                                # (2, N, hd)
    return jnp.broadcast_to(enc[:, None, None, :, :], (2, B, 1, N, HEAD_DIM)).astype(jnp.float32)


# ---------------------------------------------------------------------------
if __name__ == "__main__":
    key = jax.random.PRNGKey(0)
    kp, k0, k1 = jax.random.split(key, 3)

    params = init_params(kp)
    desc0 = jax.random.normal(k0, (B, N, D), jnp.float32)
    desc1 = jax.random.normal(k1, (B, N, D), jnp.float32)
    enc0 = make_encoding(0.0)
    enc1 = make_encoding(0.5)

    use_erf = _erf_supported_in_mosaic()

    # One-time weight / encoding preparation (hoisted out of the jitted per-call path).
    sp = prepare_self_params(params["self"])
    cp = prepare_cross_params(params["cross"])
    cos2, sin2 = prepare_encodings(enc0, enc1)

    fwd = jax.jit(functools.partial(transformer_layer_fused, use_erf=use_erf))
    out0, out1 = fwd(desc0, desc1, cos2, sin2, sp, cp)
    jax.block_until_ready((out0, out1))

    assert out0.shape == (B, N, D) and out1.shape == (B, N, D)
    assert bool(jnp.all(jnp.isfinite(out0))) and bool(jnp.all(jnp.isfinite(out1)))

    ref0, ref1 = reference_forward(desc0, desc1, enc0, enc1, params)
    err = max(float(jnp.max(jnp.abs(out0 - ref0))), float(jnp.max(jnp.abs(out1 - ref1))))
    assert err < 5e-2, f"mismatch vs pure-JAX reference: {err}"

    print("KERNEL_OK")
</pallas_src>

<mosaic_0001>
module attributes {stable_mosaic.version = 11 : i64} {
  func.func @_erf_probe_kernel(%arg0: memref<8x128xf32, #tpu.memory_space<vmem>>, %arg1: memref<8x128xf32, #tpu.memory_space<vmem>>) attributes {dimension_semantics = [], scalar_prefetch = 0 : i64, scratch_operands = 0 : i64, tpu.core_type = #tpu.core_type<tc>} {
    %c0 = arith.constant 0 : index
    %c0_0 = arith.constant 0 : index
    %0 = vector.load %arg0[%c0, %c0_0] : memref<8x128xf32, #tpu.memory_space<vmem>>, vector<8x128xf32>
    %1 = math.erf %0 : vector<8x128xf32>
    %c0_1 = arith.constant 0 : index
    %c0_2 = arith.constant 0 : index
    %2 = vector.load %arg1[%c0_1, %c0_2] : memref<8x128xf32, #tpu.memory_space<vmem>>, vector<8x128xf32>
    tpu.vector_store %arg1[%c0_1, %c0_2], %1 {strides = array<i32>} : memref<8x128xf32, #tpu.memory_space<vmem>>, vector<8x128xf32>,
    return
  }
}

module attributes {stable_mosaic.version = 11 : i64} {
  func.func @transformer_layer_kernel(%arg0: i32, %arg1: memref<1x16x32xf32, #tpu.memory_space<vmem>>, %arg2: memref<1x16x32xf32, #tpu.memory_space<vmem>>, %arg3: memref<1x32x64xf32, #tpu.memory_space<vmem>>, %arg4: memref<1x32x64xf32, #tpu.memory_space<vmem>>, %arg5: memref<32x160xf32, #tpu.memory_space<vmem>>, %arg6: memref<1x160xf32, #tpu.memory_space<vmem>>, %arg7: memref<32x32xf32, #tpu.memory_space<vmem>>, %arg8: memref<1x32xf32, #tpu.memory_space<vmem>>, %arg9: memref<32x64xf32, #tpu.memory_space<vmem>>, %arg10: memref<32x64xf32, #tpu.memory_space<vmem>>, %arg11: memref<1x64xf32, #tpu.memory_space<vmem>>, %arg12: memref<1x64xf32, #tpu.memory_space<vmem>>, %arg13: memref<1x64xf32, #tpu.memory_space<vmem>>, %arg14: memref<64x32xf32, #tpu.memory_space<vmem>>, %arg15: memref<1x32xf32, #tpu.memory_space<vmem>>, %arg16: memref<32x64xf32, #tpu.memory_space<vmem>>, %arg17: memref<1x64xf32, #tpu.memory_space<vmem>>, %arg18: memref<32x32xf32, #tpu.memory_space<vmem>>, %arg19: memref<1x32xf32, #tpu.memory_space<vmem>>, %arg20: memref<32x64xf32, #tpu.memory_space<vmem>>, %arg21: memref<32x64xf32, #tpu.memory_space<vmem>>, %arg22: memref<1x64xf32, #tpu.memory_space<vmem>>, %arg23: memref<1x64xf32, #tpu.memory_space<vmem>>, %arg24: memref<1x64xf32, #tpu.memory_space<vmem>>, %arg25: memref<64x32xf32, #tpu.memory_space<vmem>>, %arg26: memref<1x32xf32, #tpu.memory_space<vmem>>, %arg27: memref<1x16x32xf32, #tpu.memory_space<vmem>>, %arg28: memref<1x16x32xf32, #tpu.memory_space<vmem>>) attributes {dimension_semantics = [#tpu.dimension_semantics<parallel>], iteration_bounds = array<i64: 2>, scalar_prefetch = 0 : i64, scratch_operands = 0 : i64, tpu.core_type = #tpu.core_type<tc>, window_params = [{transform_indices = @transform_0, window_bounds = array<i64: 1, 16, 32>}, {transform_indices = @transform_1, window_bounds = array<i64: 1, 16, 32>}, {transform_indices = @transform_2, window_bounds = array<i64: 1, 32, 64>}, {transform_indices = @transform_3, window_bounds = array<i64: 1, 32, 64>}, {pipeline_mode = #tpu.pipeline_mode<synchronous>, transform_indices = @transform_4, window_bounds = array<i64: 32, 160>}, {pipeline_mode = #tpu.pipeline_mode<synchronous>, transform_indices = @transform_5, window_bounds = array<i64: 1, 160>}, {pipeline_mode = #tpu.pipeline_mode<synchronous>, transform_indices = @transform_6, window_bounds = array<i64: 32, 32>}, {pipeline_mode = #tpu.pipeline_mode<synchronous>, transform_indices = @transform_7, window_bounds = array<i64: 1, 32>}, {pipeline_mode = #tpu.pipeline_mode<synchronous>, transform_indices = @transform_8, window_bounds = array<i64: 32, 64>}, {pipeline_mode = #tpu.pipeline_mode<synchronous>, transform_indices = @transform_9, window_bounds = array<i64: 32, 64>}, {pipeline_mode = #tpu.pipeline_mode<synchronous>, transform_indices = @transform_10, window_bounds = array<i64: 1, 64>}, {pipeline_mode = #tpu.pipeline_mode<synchronous>, transform_indices = @transform_11, window_bounds = array<i64: 1, 64>}, {pipeline_mode = #tpu.pipeline_mode<synchronous>, transform_indices = @transform_12, window_bounds = array<i64: 1, 64>}, {pipeline_mode = #tpu.pipeline_mode<synchronous>, transform_indices = @transform_13, window_bounds = array<i64: 64, 32>}, {pipeline_mode = #tpu.pipeline_mode<synchronous>, transform_indices = @transform_14, window_bounds = array<i64: 1, 32>}, {pipeline_mode = #tpu.pipeline_mode<synchronous>, transform_indices = @transform_15, window_bounds = array<i64: 32, 64>}, {pipeline_mode = #tpu.pipeline_mode<synchronous>, transform_indices = @transform_16, window_bounds = array<i64: 1, 64>}, {pipeline_mode = #tpu.pipeline_mode<synchronous>, transform_indices = @transform_17, window_bounds = array<i64: 32, 32>}, {pipeline_mode = #tpu.pipeline_mode<synchronous>, transform_indices = @transform_18, window_bounds = array<i64: 1, 32>}, {pipeline_mode = #tpu.pipeline_mode<synchronous>, transform_indices = @transform_19, window_bounds = array<i64: 32, 64>}, {pipeline_mode = #tpu.pipeline_mode<synchronous>, transform_indices = @transform_20, window_bounds = array<i64: 32, 64>}, {pipeline_mode = #tpu.pipeline_mode<synchronous>, transform_indices = @transform_21, window_bounds = array<i64: 1, 64>}, {pipeline_mode = #tpu.pipeline_mode<synchronous>, transform_indices = @transform_22, window_bounds = array<i64: 1, 64>}, {pipeline_mode = #tpu.pipeline_mode<synchronous>, transform_indices = @transform_23, window_bounds = array<i64: 1, 64>}, {pipeline_mode = #tpu.pipeline_mode<synchronous>, transform_indices = @transform_24, window_bounds = array<i64: 64, 32>}, {pipeline_mode = #tpu.pipeline_mode<synchronous>, transform_indices = @transform_25, window_bounds = array<i64: 1, 32>}, {transform_indices = @transform_26, window_bounds = array<i64: 1, 16, 32>}, {transform_indices = @transform_27, window_bounds = array<i64: 1, 16, 32>}]} {
    %c0 = arith.constant 0 : index
    %c0_0 = arith.constant 0 : index
    %c0_1 = arith.constant 0 : index
    %0 = vector.load %arg1[%c0, %c0_0, %c0_1] : memref<1x16x32xf32, #tpu.memory_space<vmem>>, vector<1x16x32xf32>
    %1 = vector.shape_cast %0 : vector<1x16x32xf32> to vector<16x32xf32>
    %c0_2 = arith.constant 0 : index
    %c0_3 = arith.constant 0 : index
    %c0_4 = arith.constant 0 : index
    %2 = vector.load %arg2[%c0_2, %c0_3, %c0_4] : memref<1x16x32xf32, #tpu.memory_space<vmem>>, vector<1x16x32xf32>
    %3 = vector.shape_cast %2 : vector<1x16x32xf32> to vector<16x32xf32>
    %4 = tpu.concatenate %1, %3 in 0 : vector<16x32xf32>, vector<16x32xf32> -> vector<32x32xf32>
    %c0_5 = arith.constant 0 : index
    %c0_6 = arith.constant 0 : index
    %c0_7 = arith.constant 0 : index
    %5 = vector.load %arg3[%c0_5, %c0_6, %c0_7] : memref<1x32x64xf32, #tpu.memory_space<vmem>>, vector<1x32x64xf32>
    %6 = vector.shape_cast %5 : vector<1x32x64xf32> to vector<32x64xf32>
    %c0_8 = arith.constant 0 : index
    %c0_9 = arith.constant 0 : index
    %c0_10 = arith.constant 0 : index
    %7 = vector.load %arg4[%c0_8, %c0_9, %c0_10] : memref<1x32x64xf32, #tpu.memory_space<vmem>>, vector<1x32x64xf32>
    %8 = vector.shape_cast %7 : vector<1x32x64xf32> to vector<32x64xf32>
    %9 = tpu.iota {dimensions = array<i32: 0>} : vector<32x32xi32>
    %c16_i32 = arith.constant 16 : i32
    %10 = vector.broadcast %c16_i32 : i32 to vector<32x32xi32>
    %11 = arith.cmpi sge, %9, %10 : vector<32x32xi32>
    %12 = tpu.iota {dimensions = array<i32: 1>} : vector<32x32xi32>
    %c16_i32_11 = arith.constant 16 : i32
    %13 = vector.broadcast %c16_i32_11 : i32 to vector<32x32xi32>
    %14 = arith.cmpi sge, %12, %13 : vector<32x32xi32>
    %15 = arith.xori %11, %14 : vector<32x32xi1>
    %cst = arith.constant dense<true> : vector<32x32xi1>
    %16 = arith.xori %15, %cst : vector<32x32xi1>
    %cst_12 = arith.constant 0.000000e+00 : f32
    %cst_13 = arith.constant -1.000000e+30 : f32
    %17 = vector.broadcast %cst_12 : f32 to vector<32x32xf32>
    %18 = vector.broadcast %cst_13 : f32 to vector<32x32xf32>
    %19 = arith.select %16, %17, %18 : vector<32x32xi1>, vector<32x32xf32>
    %cst_14 = arith.constant -1.000000e+30 : f32
    %cst_15 = arith.constant 0.000000e+00 : f32
    %20 = vector.broadcast %cst_14 : f32 to vector<32x32xf32>
    %21 = vector.broadcast %cst_15 : f32 to vector<32x32xf32>
    %22 = arith.select %16, %20, %21 : vector<32x32xi1>, vector<32x32xf32>
    %c0_16 = arith.constant 0 : index
    %c0_17 = arith.constant 0 : index
    %23 = vector.load %arg5[%c0_16, %c0_17] : memref<32x160xf32, #tpu.memory_space<vmem>>, vector<32x160xf32>
    %cst_18 = arith.constant dense<0.000000e+00> : vector<32x160xf32>
    %24 = tpu.matmul %4, %23, %cst_18 {dimension_numbers = #tpu.dot_dimension_numbers<[1], [0], [0], [1], [0, 0, 1, 1], [], []>} : vector<32x32xf32>, vector<32x160xf32>, vector<32x160xf32> -> vector<32x160xf32>
    %c0_19 = arith.constant 0 : index
    %c0_20 = arith.constant 0 : index
    %25 = vector.load %arg6[%c0_19, %c0_20] : memref<1x160xf32, #tpu.memory_space<vmem>>, vector<1x160xf32>
    %26 = vector.broadcast %25 : vector<1x160xf32> to vector<32x160xf32>
    %27 = arith.addf %24, %26 : vector<32x160xf32>
    %28 = vector.extract_strided_slice %27 {offsets = [0, 0], sizes = [32, 64], strides = [1, 1]} : vector<32x160xf32> to vector<32x64xf32>
    %29 = arith.mulf %28, %6 : vector<32x64xf32>
    %30 = vector.extract_strided_slice %27 {offsets = [0, 64], sizes = [32, 64], strides = [1, 1]} : vector<32x160xf32> to vector<32x64xf32>
    %31 = arith.mulf %30, %8 : vector<32x64xf32>
    %32 = arith.addf %29, %31 : vector<32x64xf32>
    %33 = vector.extract_strided_slice %32 {offsets = [0, 0], sizes = [32, 32], strides = [1, 1]} : vector<32x64xf32> to vector<32x32xf32>
    %34 = vector.extract_strided_slice %32 {offsets = [0, 32], sizes = [32, 32], strides = [1, 1]} : vector<32x64xf32> to vector<32x32xf32>
    %35 = vector.extract_strided_slice %27 {offsets = [0, 128], sizes = [32, 32], strides = [1, 1]} : vector<32x160xf32> to vector<32x32xf32>
    %36 = vector.extract_strided_slice %33 {offsets = [0, 0], sizes = [32, 8], strides = [1, 1]} : vector<32x32xf32> to vector<32x8xf32>
    %37 = vector.extract_strided_slice %34 {offsets = [0, 0], sizes = [32, 8], strides = [1, 1]} : vector<32x32xf32> to vector<32x8xf32>
    %cst_21 = arith.constant dense<0.000000e+00> : vector<32x32xf32>
    %38 = tpu.matmul %36, %37, %cst_21 {dimension_numbers = #tpu.dot_dimension_numbers<[1], [1], [0], [0], [0, 0, 1, 0], [], []>} : vector<32x8xf32>, vector<32x8xf32>, vector<32x32xf32> -> vector<32x32xf32>
    %39 = arith.addf %38, %19 : vector<32x32xf32>
    %cst_22 = arith.constant dense<0xFF800000> : vector<32xf32>
    %40 = vector.multi_reduction <maximumf>, %39, %cst_22 [1] : vector<32x32xf32> to vector<32xf32>
    %41 = vector.shape_cast %40 : vector<32xf32> to vector<32x1xf32>
    %42 = vector.broadcast %41 : vector<32x1xf32> to vector<32x32xf32>
    %43 = arith.subf %39, %42 : vector<32x32xf32>
    %44 = math.exp %43 : vector<32x32xf32>
    %cst_23 = arith.constant dense<0.000000e+00> : vector<32xf32>
    %45 = vector.multi_reduction <add>, %44, %cst_23 [1] : vector<32x32xf32> to vector<32xf32>
    %46 = vector.shape_cast %45 : vector<32xf32> to vector<32x1xf32>
    %47 = tpu.reciprocal %46 {approx = true} : vector<32x1xf32> -> vector<32x1xf32>
    %48 = vector.broadcast %47 : vector<32x1xf32> to vector<32x32xf32>
    %49 = arith.mulf %44, %48 : vector<32x32xf32>
    %50 = vector.extract_strided_slice %35 {offsets = [0, 0], sizes = [32, 8], strides = [1, 1]} : vector<32x32xf32> to vector<32x8xf32>
    %cst_24 = arith.constant dense<0.000000e+00> : vector<32x8xf32>
    %51 = tpu.matmul %49, %50, %cst_24 {dimension_numbers = #tpu.dot_dimension_numbers<[1], [0], [0], [1], [0, 0, 1, 1], [], []>} : vector<32x32xf32>, vector<32x8xf32>, vector<32x8xf32> -> vector<32x8xf32>
    %52 = vector.extract_strided_slice %33 {offsets = [0, 8], sizes = [32, 8], strides = [1, 1]} : vector<32x32xf32> to vector<32x8xf32>
    %53 = vector.extract_strided_slice %34 {offsets = [0, 8], sizes = [32, 8], strides = [1, 1]} : vector<32x32xf32> to vector<32x8xf32>
    %cst_25 = arith.constant dense<0.000000e+00> : vector<32x32xf32>
    %54 = tpu.matmul %52, %53, %cst_25 {dimension_numbers = #tpu.dot_dimension_numbers<[1], [1], [0], [0], [0, 0, 1, 0], [], []>} : vector<32x8xf32>, vector<32x8xf32>, vector<32x32xf32> -> vector<32x32xf32>
    %55 = arith.addf %54, %19 : vector<32x32xf32>
    %cst_26 = arith.constant dense<0xFF800000> : vector<32xf32>
    %56 = vector.multi_reduction <maximumf>, %55, %cst_26 [1] : vector<32x32xf32> to vector<32xf32>
    %57 = vector.shape_cast %56 : vector<32xf32> to vector<32x1xf32>
    %58 = vector.broadcast %57 : vector<32x1xf32> to vector<32x32xf32>
    %59 = arith.subf %55, %58 : vector<32x32xf32>
    %60 = math.exp %59 : vector<32x32xf32>
    %cst_27 = arith.constant dense<0.000000e+00> : vector<32xf32>
    %61 = vector.multi_reduction <add>, %60, %cst_27 [1] : vector<32x32xf32> to vector<32xf32>
    %62 = vector.shape_cast %61 : vector<32xf32> to vector<32x1xf32>
    %63 = tpu.reciprocal %62 {approx = true} : vector<32x1xf32> -> vector<32x1xf32>
    %64 = vector.broadcast %63 : vector<32x1xf32> to vector<32x32xf32>
    %65 = arith.mulf %60, %64 : vector<32x32xf32>
    %66 = vector.extract_strided_slice %35 {offsets = [0, 8], sizes = [32, 8], strides = [1, 1]} : vector<32x32xf32> to vector<32x8xf32>
    %cst_28 = arith.constant dense<0.000000e+00> : vector<32x8xf32>
    %67 = tpu.matmul %65, %66, %cst_28 {dimension_numbers = #tpu.dot_dimension_numbers<[1], [0], [0], [1], [0, 0, 1, 1], [], []>} : vector<32x32xf32>, vector<32x8xf32>, vector<32x8xf32> -> vector<32x8xf32>
    %68 = vector.extract_strided_slice %33 {offsets = [0, 16], sizes = [32, 8], strides = [1, 1]} : vector<32x32xf32> to vector<32x8xf32>
    %69 = vector.extract_strided_slice %34 {offsets = [0, 16], sizes = [32, 8], strides = [1, 1]} : vector<32x32xf32> to vector<32x8xf32>
    %cst_29 = arith.constant dense<0.000000e+00> : vector<32x32xf32>
    %70 = tpu.matmul %68, %69, %cst_29 {dimension_numbers = #tpu.dot_dimension_numbers<[1], [1], [0], [0], [0, 0, 1, 0], [], []>} : vector<32x8xf32>, vector<32x8xf32>, vector<32x32xf32> -> vector<32x32xf32>
    %71 = arith.addf %70, %19 : vector<32x32xf32>
    %cst_30 = arith.constant dense<0xFF800000> : vector<32xf32>
    %72 = vector.multi_reduction <maximumf>, %71, %cst_30 [1] : vector<32x32xf32> to vector<32xf32>
    %73 = vector.shape_cast %72 : vector<32xf32> to vector<32x1xf32>
    %74 = vector.broadcast %73 : vector<32x1xf32> to vector<32x32xf32>
    %75 = arith.subf %71, %74 : vector<32x32xf32>
    %76 = math.exp %75 : vector<32x32xf32>
    %cst_31 = arith.constant dense<0.000000e+00> : vector<32xf32>
    %77 = vector.multi_reduction <add>, %76, %cst_31 [1] : vector<32x32xf32> to vector<32xf32>
    %78 = vector.shape_cast %77 : vector<32xf32> to vector<32x1xf32>
    %79 = tpu.reciprocal %78 {approx = true} : vector<32x1xf32> -> vector<32x1xf32>
    %80 = vector.broadcast %79 : vector<32x1xf32> to vector<32x32xf32>
    %81 = arith.mulf %76, %80 : vector<32x32xf32>
    %82 = vector.extract_strided_slice %35 {offsets = [0, 16], sizes = [32, 8], strides = [1, 1]} : vector<32x32xf32> to vector<32x8xf32>
    %cst_32 = arith.constant dense<0.000000e+00> : vector<32x8xf32>
    %83 = tpu.matmul %81, %82, %cst_32 {dimension_numbers = #tpu.dot_dimension_numbers<[1], [0], [0], [1], [0, 0, 1, 1], [], []>} : vector<32x32xf32>, vector<32x8xf32>, vector<32x8xf32> -> vector<32x8xf32>
    %84 = vector.extract_strided_slice %33 {offsets = [0, 24], sizes = [32, 8], strides = [1, 1]} : vector<32x32xf32> to vector<32x8xf32>
    %85 = vector.extract_strided_slice %34 {offsets = [0, 24], sizes = [32, 8], strides = [1, 1]} : vector<32x32xf32> to vector<32x8xf32>
    %cst_33 = arith.constant dense<0.000000e+00> : vector<32x32xf32>
    %86 = tpu.matmul %84, %85, %cst_33 {dimension_numbers = #tpu.dot_dimension_numbers<[1], [1], [0], [0], [0, 0, 1, 0], [], []>} : vector<32x8xf32>, vector<32x8xf32>, vector<32x32xf32> -> vector<32x32xf32>
    %87 = arith.addf %86, %19 : vector<32x32xf32>
    %cst_34 = arith.constant dense<0xFF800000> : vector<32xf32>
    %88 = vector.multi_reduction <maximumf>, %87, %cst_34 [1] : vector<32x32xf32> to vector<32xf32>
    %89 = vector.shape_cast %88 : vector<32xf32> to vector<32x1xf32>
    %90 = vector.broadcast %89 : vector<32x1xf32> to vector<32x32xf32>
    %91 = arith.subf %87, %90 : vector<32x32xf32>
    %92 = math.exp %91 : vector<32x32xf32>
    %cst_35 = arith.constant dense<0.000000e+00> : vector<32xf32>
    %93 = vector.multi_reduction <add>, %92, %cst_35 [1] : vector<32x32xf32> to vector<32xf32>
    %94 = vector.shape_cast %93 : vector<32xf32> to vector<32x1xf32>
    %95 = tpu.reciprocal %94 {approx = true} : vector<32x1xf32> -> vector<32x1xf32>
    %96 = vector.broadcast %95 : vector<32x1xf32> to vector<32x32xf32>
    %97 = arith.mulf %92, %96 : vector<32x32xf32>
    %98 = vector.extract_strided_slice %35 {offsets = [0, 24], sizes = [32, 8], strides = [1, 1]} : vector<32x32xf32> to vector<32x8xf32>
    %cst_36 = arith.constant dense<0.000000e+00> : vector<32x8xf32>
    %99 = tpu.matmul %97, %98, %cst_36 {dimension_numbers = #tpu.dot_dimension_numbers<[1], [0], [0], [1], [0, 0, 1, 1], [], []>} : vector<32x32xf32>, vector<32x8xf32>, vector<32x8xf32> -> vector<32x8xf32>
    %100 = tpu.concatenate %51, %67, %83, %99 in 1 : vector<32x8xf32>, vector<32x8xf32>, vector<32x8xf32>, vector<32x8xf32> -> vector<32x32xf32>
    %c0_37 = arith.constant 0 : index
    %c0_38 = arith.constant 0 : index
    %101 = vector.load %arg7[%c0_37, %c0_38] : memref<32x32xf32, #tpu.memory_space<vmem>>, vector<32x32xf32>
    %cst_39 = arith.constant dense<0.000000e+00> : vector<32x32xf32>
    %102 = tpu.matmul %100, %101, %cst_39 {dimension_numbers = #tpu.dot_dimension_numbers<[1], [0], [0], [1], [0, 0, 1, 1], [], []>} : vector<32x32xf32>, vector<32x32xf32>, vector<32x32xf32> -> vector<32x32xf32>
    %c0_40 = arith.constant 0 : index
    %c0_41 = arith.constant 0 : index
    %103 = vector.load %arg8[%c0_40, %c0_41] : memref<1x32xf32, #tpu.memory_space<vmem>>, vector<1x32xf32>
    %104 = vector.broadcast %103 : vector<1x32xf32> to vector<32x32xf32>
    %105 = arith.addf %102, %104 : vector<32x32xf32>
    %c0_42 = arith.constant 0 : index
    %c0_43 = arith.constant 0 : index
    %106 = vector.load %arg9[%c0_42, %c0_43] : memref<32x64xf32, #tpu.memory_space<vmem>>, vector<32x64xf32>
    %c0_44 = arith.constant 0 : index
    %c0_45 = arith.constant 0 : index
    %107 = vector.load %arg10[%c0_44, %c0_45] : memref<32x64xf32, #tpu.memory_space<vmem>>, vector<32x64xf32>
    %c0_46 = arith.constant 0 : index
    %c0_47 = arith.constant 0 : index
    %108 = vector.load %arg11[%c0_46, %c0_47] : memref<1x64xf32, #tpu.memory_space<vmem>>, vector<1x64xf32>
    %c0_48 = arith.constant 0 : index
    %c0_49 = arith.constant 0 : index
    %109 = vector.load %arg12[%c0_48, %c0_49] : memref<1x64xf32, #tpu.memory_space<vmem>>, vector<1x64xf32>
    %c0_50 = arith.constant 0 : index
    %c0_51 = arith.constant 0 : index
    %110 = vector.load %arg13[%c0_50, %c0_51] : memref<1x64xf32, #tpu.memory_space<vmem>>, vector<1x64xf32>
    %c0_52 = arith.constant 0 : index
    %c0_53 = arith.constant 0 : index
    %111 = vector.load %arg14[%c0_52, %c0_53] : memref<64x32xf32, #tpu.memory_space<vmem>>, vector<64x32xf32>
    %c0_54 = arith.constant 0 : index
    %c0_55 = arith.constant 0 : index
    %112 = vector.load %arg15[%c0_54, %c0_55] : memref<1x32xf32, #tpu.memory_space<vmem>>, vector<1x32xf32>
    %cst_56 = arith.constant dense<0.000000e+00> : vector<32x64xf32>
    %113 = tpu.matmul %4, %106, %cst_56 {dimension_numbers = #tpu.dot_dimension_numbers<[1], [0], [0], [1], [0, 0, 1, 1], [], []>} : vector<32x32xf32>, vector<32x64xf32>, vector<32x64xf32> -> vector<32x64xf32>
    %cst_57 = arith.constant dense<0.000000e+00> : vector<32x64xf32>
    %114 = tpu.matmul %105, %107, %cst_57 {dimension_numbers = #tpu.dot_dimension_numbers<[1], [0], [0], [1], [0, 0, 1, 1], [], []>} : vector<32x32xf32>, vector<32x64xf32>, vector<32x64xf32> -> vector<32x64xf32>
    %115 = arith.addf %113, %114 : vector<32x64xf32>
    %116 = vector.broadcast %108 : vector<1x64xf32> to vector<32x64xf32>
    %117 = arith.addf %115, %116 : vector<32x64xf32>
    %cst_58 = arith.constant dense<0.000000e+00> : vector<32xf32>
    %118 = vector.multi_reduction <add>, %117, %cst_58 [1] : vector<32x64xf32> to vector<32xf32>
    %119 = vector.shape_cast %118 : vector<32xf32> to vector<32x1xf32>
    %cst_59 = arith.constant 6.400000e+01 : f32
    %120 = vector.broadcast %cst_59 : f32 to vector<32x1xf32>
    %121 = arith.divf %119, %120 : vector<32x1xf32>
    %122 = vector.broadcast %121 : vector<32x1xf32> to vector<32x64xf32>
    %123 = arith.subf %117, %122 : vector<32x64xf32>
    %124 = arith.mulf %123, %123 : vector<32x64xf32>
    %cst_60 = arith.constant dense<0.000000e+00> : vector<32xf32>
    %125 = vector.multi_reduction <add>, %124, %cst_60 [1] : vector<32x64xf32> to vector<32xf32>
    %126 = vector.shape_cast %125 : vector<32xf32> to vector<32x1xf32>
    %cst_61 = arith.constant 6.400000e+01 : f32
    %127 = vector.broadcast %cst_61 : f32 to vector<32x1xf32>
    %128 = arith.divf %126, %127 : vector<32x1xf32>
    %129 = vector.broadcast %121 : vector<32x1xf32> to vector<32x64xf32>
    %130 = arith.subf %117, %129 : vector<32x64xf32>
    %cst_62 = arith.constant 9.99999974E-6 : f32
    %131 = vector.broadcast %cst_62 : f32 to vector<32x1xf32>
    %132 = arith.addf %128, %131 : vector<32x1xf32>
    %133 = math.rsqrt %132 : vector<32x1xf32>
    %134 = vector.broadcast %133 : vector<32x1xf32> to vector<32x64xf32>
    %135 = arith.mulf %130, %134 : vector<32x64xf32>
    %136 = vector.broadcast %109 : vector<1x64xf32> to vector<32x64xf32>
    %137 = arith.mulf %135, %136 : vector<32x64xf32>
    %138 = vector.broadcast %110 : vector<1x64xf32> to vector<32x64xf32>
    %139 = arith.addf %137, %138 : vector<32x64xf32>
    %cst_63 = arith.constant 5.000000e-01 : f32
    %140 = vector.broadcast %cst_63 : f32 to vector<32x64xf32>
    %141 = arith.mulf %140, %139 : vector<32x64xf32>
    %cst_64 = arith.constant 0.707106769 : f32
    %142 = vector.broadcast %cst_64 : f32 to vector<32x64xf32>
    %143 = arith.mulf %139, %142 : vector<32x64xf32>
    %cst_65 = arith.constant 0.000000e+00 : f32
    %144 = vector.broadcast %cst_65 : f32 to vector<32x64xf32>
    %145 = arith.cmpf olt, %143, %144 : vector<32x64xf32>
    %cst_66 = arith.constant -1.000000e+00 : f32
    %cst_67 = arith.constant 1.000000e+00 : f32
    %146 = vector.broadcast %cst_66 : f32 to vector<32x64xf32>
    %147 = vector.broadcast %cst_67 : f32 to vector<32x64xf32>
    %148 = arith.select %145, %146, %147 : vector<32x64xi1>, vector<32x64xf32>
    %149 = math.absf %143 : vector<32x64xf32>
    %cst_68 = arith.constant 0.327591091 : f32
    %150 = vector.broadcast %cst_68 : f32 to vector<32x64xf32>
    %151 = arith.mulf %150, %149 : vector<32x64xf32>
    %cst_69 = arith.constant 1.000000e+00 : f32
    %152 = vector.broadcast %cst_69 : f32 to vector<32x64xf32>
    %153 = arith.addf %152, %151 : vector<32x64xf32>
    %cst_70 = arith.constant 1.000000e+00 : f32
    %154 = vector.broadcast %cst_70 : f32 to vector<32x64xf32>
    %155 = arith.divf %154, %153 : vector<32x64xf32>
    %cst_71 = arith.constant 1.06140542 : f32
    %156 = vector.broadcast %cst_71 : f32 to vector<32x64xf32>
    %157 = arith.mulf %155, %156 : vector<32x64xf32>
    %cst_72 = arith.constant -1.45315206 : f32
    %158 = vector.broadcast %cst_72 : f32 to vector<32x64xf32>
    %159 = arith.addf %158, %157 : vector<32x64xf32>
    %160 = arith.mulf %155, %159 : vector<32x64xf32>
    %cst_73 = arith.constant 1.42141378 : f32
    %161 = vector.broadcast %cst_73 : f32 to vector<32x64xf32>
    %162 = arith.addf %161, %160 : vector<32x64xf32>
    %163 = arith.mulf %155, %162 : vector<32x64xf32>
    %cst_74 = arith.constant -0.284496725 : f32
    %164 = vector.broadcast %cst_74 : f32 to vector<32x64xf32>
    %165 = arith.addf %164, %163 : vector<32x64xf32>
    %166 = arith.mulf %155, %165 : vector<32x64xf32>
    %cst_75 = arith.constant 0.254829586 : f32
    %167 = vector.broadcast %cst_75 : f32 to vector<32x64xf32>
    %168 = arith.addf %167, %166 : vector<32x64xf32>
    %169 = arith.mulf %155, %168 : vector<32x64xf32>
    %cst_76 = arith.constant 0.000000e+00 : f32
    %170 = vector.broadcast %cst_76 : f32 to vector<32x64xf32>
    %171 = arith.subf %170, %149 : vector<32x64xf32>
    %172 = arith.mulf %171, %149 : vector<32x64xf32>
    %173 = math.exp %172 : vector<32x64xf32>
    %174 = arith.mulf %169, %173 : vector<32x64xf32>
    %cst_77 = arith.constant 1.000000e+00 : f32
    %175 = vector.broadcast %cst_77 : f32 to vector<32x64xf32>
    %176 = arith.subf %175, %174 : vector<32x64xf32>
    %177 = arith.mulf %148, %176 : vector<32x64xf32>
    %cst_78 = arith.constant 1.000000e+00 : f32
    %178 = vector.broadcast %cst_78 : f32 to vector<32x64xf32>
    %179 = arith.addf %178, %177 : vector<32x64xf32>
    %180 = arith.mulf %141, %179 : vector<32x64xf32>
    %cst_79 = arith.constant dense<0.000000e+00> : vector<32x32xf32>
    %181 = tpu.matmul %180, %111, %cst_79 {dimension_numbers = #tpu.dot_dimension_numbers<[1], [0], [0], [1], [0, 0, 1, 1], [], []>} : vector<32x64xf32>, vector<64x32xf32>, vector<32x32xf32> -> vector<32x32xf32>
    %182 = vector.broadcast %112 : vector<1x32xf32> to vector<32x32xf32>
    %183 = arith.addf %181, %182 : vector<32x32xf32>
    %184 = arith.addf %4, %183 : vector<32x32xf32>
    %c0_80 = arith.constant 0 : index
    %c0_81 = arith.constant 0 : index
    %185 = vector.load %arg16[%c0_80, %c0_81] : memref<32x64xf32, #tpu.memory_space<vmem>>, vector<32x64xf32>
    %cst_82 = arith.constant dense<0.000000e+00> : vector<32x64xf32>
    %186 = tpu.matmul %184, %185, %cst_82 {dimension_numbers = #tpu.dot_dimension_numbers<[1], [0], [0], [1], [0, 0, 1, 1], [], []>} : vector<32x32xf32>, vector<32x64xf32>, vector<32x64xf32> -> vector<32x64xf32>
    %c0_83 = arith.constant 0 : index
    %c0_84 = arith.constant 0 : index
    %187 = vector.load %arg17[%c0_83, %c0_84] : memref<1x64xf32, #tpu.memory_space<vmem>>, vector<1x64xf32>
    %188 = vector.broadcast %187 : vector<1x64xf32> to vector<32x64xf32>
    %189 = arith.addf %186, %188 : vector<32x64xf32>
    %190 = vector.extract_strided_slice %189 {offsets = [0, 0], sizes = [32, 32], strides = [1, 1]} : vector<32x64xf32> to vector<32x32xf32>
    %191 = vector.extract_strided_slice %189 {offsets = [0, 32], sizes = [32, 32], strides = [1, 1]} : vector<32x64xf32> to vector<32x32xf32>
    %192 = vector.extract_strided_slice %190 {offsets = [0, 0], sizes = [32, 8], strides = [1, 1]} : vector<32x32xf32> to vector<32x8xf32>
    %193 = vector.extract_strided_slice %190 {offsets = [0, 0], sizes = [32, 8], strides = [1, 1]} : vector<32x32xf32> to vector<32x8xf32>
    %cst_85 = arith.constant dense<0.000000e+00> : vector<32x32xf32>
    %194 = tpu.matmul %192, %193, %cst_85 {dimension_numbers = #tpu.dot_dimension_numbers<[1], [1], [0], [0], [0, 0, 1, 0], [], []>} : vector<32x8xf32>, vector<32x8xf32>, vector<32x32xf32> -> vector<32x32xf32>
    %195 = arith.addf %194, %22 : vector<32x32xf32>
    %cst_86 = arith.constant dense<0xFF800000> : vector<32xf32>
    %196 = vector.multi_reduction <maximumf>, %195, %cst_86 [1] : vector<32x32xf32> to vector<32xf32>
    %197 = vector.shape_cast %196 : vector<32xf32> to vector<32x1xf32>
    %198 = vector.broadcast %197 : vector<32x1xf32> to vector<32x32xf32>
    %199 = arith.subf %195, %198 : vector<32x32xf32>
    %200 = math.exp %199 : vector<32x32xf32>
    %cst_87 = arith.constant dense<0.000000e+00> : vector<32xf32>
    %201 = vector.multi_reduction <add>, %200, %cst_87 [1] : vector<32x32xf32> to vector<32xf32>
    %202 = vector.shape_cast %201 : vector<32xf32> to vector<32x1xf32>
    %203 = tpu.reciprocal %202 {approx = true} : vector<32x1xf32> -> vector<32x1xf32>
    %204 = vector.broadcast %203 : vector<32x1xf32> to vector<32x32xf32>
    %205 = arith.mulf %200, %204 : vector<32x32xf32>
    %206 = vector.extract_strided_slice %191 {offsets = [0, 0], sizes = [32, 8], strides = [1, 1]} : vector<32x32xf32> to vector<32x8xf32>
    %cst_88 = arith.constant dense<0.000000e+00> : vector<32x8xf32>
    %207 = tpu.matmul %205, %206, %cst_88 {dimension_numbers = #tpu.dot_dimension_numbers<[1], [0], [0], [1], [0, 0, 1, 1], [], []>} : vector<32x32xf32>, vector<32x8xf32>, vector<32x8xf32> -> vector<32x8xf32>
    %208 = vector.extract_strided_slice %190 {offsets = [0, 8], sizes = [32, 8], strides = [1, 1]} : vector<32x32xf32> to vector<32x8xf32>
    %209 = vector.extract_strided_slice %190 {offsets = [0, 8], sizes = [32, 8], strides = [1, 1]} : vector<32x32xf32> to vector<32x8xf32>
    %cst_89 = arith.constant dense<0.000000e+00> : vector<32x32xf32>
    %210 = tpu.matmul %208, %209, %cst_89 {dimension_numbers = #tpu.dot_dimension_numbers<[1], [1], [0], [0], [0, 0, 1, 0], [], []>} : vector<32x8xf32>, vector<32x8xf32>, vector<32x32xf32> -> vector<32x32xf32>
    %211 = arith.addf %210, %22 : vector<32x32xf32>
    %cst_90 = arith.constant dense<0xFF800000> : vector<32xf32>
    %212 = vector.multi_reduction <maximumf>, %211, %cst_90 [1] : vector<32x32xf32> to vector<32xf32>
    %213 = vector.shape_cast %212 : vector<32xf32> to vector<32x1xf32>
    %214 = vector.broadcast %213 : vector<32x1xf32> to vector<32x32xf32>
    %215 = arith.subf %211, %214 : vector<32x32xf32>
    %216 = math.exp %215 : vector<32x32xf32>
    %cst_91 = arith.constant dense<0.000000e+00> : vector<32xf32>
    %217 = vector.multi_reduction <add>, %216, %cst_91 [1] : vector<32x32xf32> to vector<32xf32>
    %218 = vector.shape_cast %217 : vector<32xf32> to vector<32x1xf32>
    %219 = tpu.reciprocal %218 {approx = true} : vector<32x1xf32> -> vector<32x1xf32>
    %220 = vector.broadcast %219 : vector<32x1xf32> to vector<32x32xf32>
    %221 = arith.mulf %216, %220 : vector<32x32xf32>
    %222 = vector.extract_strided_slice %191 {offsets = [0, 8], sizes = [32, 8], strides = [1, 1]} : vector<32x32xf32> to vector<32x8xf32>
    %cst_92 = arith.constant dense<0.000000e+00> : vector<32x8xf32>
    %223 = tpu.matmul %221, %222, %cst_92 {dimension_numbers = #tpu.dot_dimension_numbers<[1], [0], [0], [1], [0, 0, 1, 1], [], []>} : vector<32x32xf32>, vector<32x8xf32>, vector<32x8xf32> -> vector<32x8xf32>
    %224 = vector.extract_strided_slice %190 {offsets = [0, 16], sizes = [32, 8], strides = [1, 1]} : vector<32x32xf32> to vector<32x8xf32>
    %225 = vector.extract_strided_slice %190 {offsets = [0, 16], sizes = [32, 8], strides = [1, 1]} : vector<32x32xf32> to vector<32x8xf32>
    %cst_93 = arith.constant dense<0.000000e+00> : vector<32x32xf32>
    %226 = tpu.matmul %224, %225, %cst_93 {dimension_numbers = #tpu.dot_dimension_numbers<[1], [1], [0], [0], [0, 0, 1, 0], [], []>} : vector<32x8xf32>, vector<32x8xf32>, vector<32x32xf32> -> vector<32x32xf32>
    %227 = arith.addf %226, %22 : vector<32x32xf32>
    %cst_94 = arith.constant dense<0xFF800000> : vector<32xf32>
    %228 = vector.multi_reduction <maximumf>, %227, %cst_94 [1] : vector<32x32xf32> to vector<32xf32>
    %229 = vector.shape_cast %228 : vector<32xf32> to vector<32x1xf32>
    %230 = vector.broadcast %229 : vector<32x1xf32> to vector<32x32xf32>
    %231 = arith.subf %227, %230 : vector<32x32xf32>
    %232 = math.exp %231 : vector<32x32xf32>
    %cst_95 = arith.constant dense<0.000000e+00> : vector<32xf32>
    %233 = vector.multi_reduction <add>, %232, %cst_95 [1] : vector<32x32xf32> to vector<32xf32>
    %234 = vector.shape_cast %233 : vector<32xf32> to vector<32x1xf32>
    %235 = tpu.reciprocal %234 {approx = true} : vector<32x1xf32> -> vector<32x1xf32>
    %236 = vector.broadcast %235 : vector<32x1xf32> to vector<32x32xf32>
    %237 = arith.mulf %232, %236 : vector<32x32xf32>
    %238 = vector.extract_strided_slice %191 {offsets = [0, 16], sizes = [32, 8], strides = [1, 1]} : vector<32x32xf32> to vector<32x8xf32>
    %cst_96 = arith.constant dense<0.000000e+00> : vector<32x8xf32>
    %239 = tpu.matmul %237, %238, %cst_96 {dimension_numbers = #tpu.dot_dimension_numbers<[1], [0], [0], [1], [0, 0, 1, 1], [], []>} : vector<32x32xf32>, vector<32x8xf32>, vector<32x8xf32> -> vector<32x8xf32>
    %240 = vector.extract_strided_slice %190 {offsets = [0, 24], sizes = [32, 8], strides = [1, 1]} : vector<32x32xf32> to vector<32x8xf32>
    %241 = vector.extract_strided_slice %190 {offsets = [0, 24], sizes = [32, 8], strides = [1, 1]} : vector<32x32xf32> to vector<32x8xf32>
    %cst_97 = arith.constant dense<0.000000e+00> : vector<32x32xf32>
    %242 = tpu.matmul %240, %241, %cst_97 {dimension_numbers = #tpu.dot_dimension_numbers<[1], [1], [0], [0], [0, 0, 1, 0], [], []>} : vector<32x8xf32>, vector<32x8xf32>, vector<32x32xf32> -> vector<32x32xf32>
    %243 = arith.addf %242, %22 : vector<32x32xf32>
    %cst_98 = arith.constant dense<0xFF800000> : vector<32xf32>
    %244 = vector.multi_reduction <maximumf>, %243, %cst_98 [1] : vector<32x32xf32> to vector<32xf32>
    %245 = vector.shape_cast %244 : vector<32xf32> to vector<32x1xf32>
    %246 = vector.broadcast %245 : vector<32x1xf32> to vector<32x32xf32>
    %247 = arith.subf %243, %246 : vector<32x32xf32>
    %248 = math.exp %247 : vector<32x32xf32>
    %cst_99 = arith.constant dense<0.000000e+00> : vector<32xf32>
    %249 = vector.multi_reduction <add>, %248, %cst_99 [1] : vector<32x32xf32> to vector<32xf32>
    %250 = vector.shape_cast %249 : vector<32xf32> to vector<32x1xf32>
    %251 = tpu.reciprocal %250 {approx = true} : vector<32x1xf32> -> vector<32x1xf32>
    %252 = vector.broadcast %251 : vector<32x1xf32> to vector<32x32xf32>
    %253 = arith.mulf %248, %252 : vector<32x32xf32>
    %254 = vector.extract_strided_slice %191 {offsets = [0, 24], sizes = [32, 8], strides = [1, 1]} : vector<32x32xf32> to vector<32x8xf32>
    %cst_100 = arith.constant dense<0.000000e+00> : vector<32x8xf32>
    %255 = tpu.matmul %253, %254, %cst_100 {dimension_numbers = #tpu.dot_dimension_numbers<[1], [0], [0], [1], [0, 0, 1, 1], [], []>} : vector<32x32xf32>, vector<32x8xf32>, vector<32x8xf32> -> vector<32x8xf32>
    %256 = tpu.concatenate %207, %223, %239, %255 in 1 : vector<32x8xf32>, vector<32x8xf32>, vector<32x8xf32>, vector<32x8xf32> -> vector<32x32xf32>
    %c0_101 = arith.constant 0 : index
    %c0_102 = arith.constant 0 : index
    %257 = vector.load %arg18[%c0_101, %c0_102] : memref<32x32xf32, #tpu.memory_space<vmem>>, vector<32x32xf32>
    %cst_103 = arith.constant dense<0.000000e+00> : vector<32x32xf32>
    %258 = tpu.matmul %256, %257, %cst_103 {dimension_numbers = #tpu.dot_dimension_numbers<[1], [0], [0], [1], [0, 0, 1, 1], [], []>} : vector<32x32xf32>, vector<32x32xf32>, vector<32x32xf32> -> vector<32x32xf32>
    %c0_104 = arith.constant 0 : index
    %c0_105 = arith.constant 0 : index
    %259 = vector.load %arg19[%c0_104, %c0_105] : memref<1x32xf32, #tpu.memory_space<vmem>>, vector<1x32xf32>
    %260 = vector.broadcast %259 : vector<1x32xf32> to vector<32x32xf32>
    %261 = arith.addf %258, %260 : vector<32x32xf32>
    %c0_106 = arith.constant 0 : index
    %c0_107 = arith.constant 0 : index
    %262 = vector.load %arg20[%c0_106, %c0_107] : memref<32x64xf32, #tpu.memory_space<vmem>>, vector<32x64xf32>
    %c0_108 = arith.constant 0 : index
    %c0_109 = arith.constant 0 : index
    %263 = vector.load %arg21[%c0_108, %c0_109] : memref<32x64xf32, #tpu.memory_space<vmem>>, vector<32x64xf32>
    %c0_110 = arith.constant 0 : index
    %c0_111 = arith.constant 0 : index
    %264 = vector.load %arg22[%c0_110, %c0_111] : memref<1x64xf32, #tpu.memory_space<vmem>>, vector<1x64xf32>
    %c0_112 = arith.constant 0 : index
    %c0_113 = arith.constant 0 : index
    %265 = vector.load %arg23[%c0_112, %c0_113] : memref<1x64xf32, #tpu.memory_space<vmem>>, vector<1x64xf32>
    %c0_114 = arith.constant 0 : index
    %c0_115 = arith.constant 0 : index
    %266 = vector.load %arg24[%c0_114, %c0_115] : memref<1x64xf32, #tpu.memory_space<vmem>>, vector<1x64xf32>
    %c0_116 = arith.constant 0 : index
    %c0_117 = arith.constant 0 : index
    %267 = vector.load %arg25[%c0_116, %c0_117] : memref<64x32xf32, #tpu.memory_space<vmem>>, vector<64x32xf32>
    %c0_118 = arith.constant 0 : index
    %c0_119 = arith.constant 0 : index
    %268 = vector.load %arg26[%c0_118, %c0_119] : memref<1x32xf32, #tpu.memory_space<vmem>>, vector<1x32xf32>
    %cst_120 = arith.constant dense<0.000000e+00> : vector<32x64xf32>
    %269 = tpu.matmul %184, %262, %cst_120 {dimension_numbers = #tpu.dot_dimension_numbers<[1], [0], [0], [1], [0, 0, 1, 1], [], []>} : vector<32x32xf32>, vector<32x64xf32>, vector<32x64xf32> -> vector<32x64xf32>
    %cst_121 = arith.constant dense<0.000000e+00> : vector<32x64xf32>
    %270 = tpu.matmul %261, %263, %cst_121 {dimension_numbers = #tpu.dot_dimension_numbers<[1], [0], [0], [1], [0, 0, 1, 1], [], []>} : vector<32x32xf32>, vector<32x64xf32>, vector<32x64xf32> -> vector<32x64xf32>
    %271 = arith.addf %269, %270 : vector<32x64xf32>
    %272 = vector.broadcast %264 : vector<1x64xf32> to vector<32x64xf32>
    %273 = arith.addf %271, %272 : vector<32x64xf32>
    %cst_122 = arith.constant dense<0.000000e+00> : vector<32xf32>
    %274 = vector.multi_reduction <add>, %273, %cst_122 [1] : vector<32x64xf32> to vector<32xf32>
    %275 = vector.shape_cast %274 : vector<32xf32> to vector<32x1xf32>
    %cst_123 = arith.constant 6.400000e+01 : f32
    %276 = vector.broadcast %cst_123 : f32 to vector<32x1xf32>
    %277 = arith.divf %275, %276 : vector<32x1xf32>
    %278 = vector.broadcast %277 : vector<32x1xf32> to vector<32x64xf32>
    %279 = arith.subf %273, %278 : vector<32x64xf32>
    %280 = arith.mulf %279, %279 : vector<32x64xf32>
    %cst_124 = arith.constant dense<0.000000e+00> : vector<32xf32>
    %281 = vector.multi_reduction <add>, %280, %cst_124 [1] : vector<32x64xf32> to vector<32xf32>
    %282 = vector.shape_cast %281 : vector<32xf32> to vector<32x1xf32>
    %cst_125 = arith.constant 6.400000e+01 : f32
    %283 = vector.broadcast %cst_125 : f32 to vector<32x1xf32>
    %284 = arith.divf %282, %283 : vector<32x1xf32>
    %285 = vector.broadcast %277 : vector<32x1xf32> to vector<32x64xf32>
    %286 = arith.subf %273, %285 : vector<32x64xf32>
    %cst_126 = arith.constant 9.99999974E-6 : f32
    %287 = vector.broadcast %cst_126 : f32 to vector<32x1xf32>
    %288 = arith.addf %284, %287 : vector<32x1xf32>
    %289 = math.rsqrt %288 : vector<32x1xf32>
    %290 = vector.broadcast %289 : vector<32x1xf32> to vector<32x64xf32>
    %291 = arith.mulf %286, %290 : vector<32x64xf32>
    %292 = vector.broadcast %265 : vector<1x64xf32> to vector<32x64xf32>
    %293 = arith.mulf %291, %292 : vector<32x64xf32>
    %294 = vector.broadcast %266 : vector<1x64xf32> to vector<32x64xf32>
    %295 = arith.addf %293, %294 : vector<32x64xf32>
    %cst_127 = arith.constant 5.000000e-01 : f32
    %296 = vector.broadcast %cst_127 : f32 to vector<32x64xf32>
    %297 = arith.mulf %296, %295 : vector<32x64xf32>
    %cst_128 = arith.constant 0.707106769 : f32
    %298 = vector.broadcast %cst_128 : f32 to vector<32x64xf32>
    %299 = arith.mulf %295, %298 : vector<32x64xf32>
    %cst_129 = arith.constant 0.000000e+00 : f32
    %300 = vector.broadcast %cst_129 : f32 to vector<32x64xf32>
    %301 = arith.cmpf olt, %299, %300 : vector<32x64xf32>
    %cst_130 = arith.constant -1.000000e+00 : f32
    %cst_131 = arith.constant 1.000000e+00 : f32
    %302 = vector.broadcast %cst_130 : f32 to vector<32x64xf32>
    %303 = vector.broadcast %cst_131 : f32 to vector<32x64xf32>
    %304 = arith.select %301, %302, %303 : vector<32x64xi1>, vector<32x64xf32>
    %305 = math.absf %299 : vector<32x64xf32>
    %cst_132 = arith.constant 0.327591091 : f32
    %306 = vector.broadcast %cst_132 : f32 to vector<32x64xf32>
    %307 = arith.mulf %306, %305 : vector<32x64xf32>
    %cst_133 = arith.constant 1.000000e+00 : f32
    %308 = vector.broadcast %cst_133 : f32 to vector<32x64xf32>
    %309 = arith.addf %308, %307 : vector<32x64xf32>
    %cst_134 = arith.constant 1.000000e+00 : f32
    %310 = vector.broadcast %cst_134 : f32 to vector<32x64xf32>
    %311 = arith.divf %310, %309 : vector<32x64xf32>
    %cst_135 = arith.constant 1.06140542 : f32
    %312 = vector.broadcast %cst_135 : f32 to vector<32x64xf32>
    %313 = arith.mulf %311, %312 : vector<32x64xf32>
    %cst_136 = arith.constant -1.45315206 : f32
    %314 = vector.broadcast %cst_136 : f32 to vector<32x64xf32>
    %315 = arith.addf %314, %313 : vector<32x64xf32>
    %316 = arith.mulf %311, %315 : vector<32x64xf32>
    %cst_137 = arith.constant 1.42141378 : f32
    %317 = vector.broadcast %cst_137 : f32 to vector<32x64xf32>
    %318 = arith.addf %317, %316 : vector<32x64xf32>
    %319 = arith.mulf %311, %318 : vector<32x64xf32>
    %cst_138 = arith.constant -0.284496725 : f32
    %320 = vector.broadcast %cst_138 : f32 to vector<32x64xf32>
    %321 = arith.addf %320, %319 : vector<32x64xf32>
    %322 = arith.mulf %311, %321 : vector<32x64xf32>
    %cst_139 = arith.constant 0.254829586 : f32
    %323 = vector.broadcast %cst_139 : f32 to vector<32x64xf32>
    %324 = arith.addf %323, %322 : vector<32x64xf32>
    %325 = arith.mulf %311, %324 : vector<32x64xf32>
    %cst_140 = arith.constant 0.000000e+00 : f32
    %326 = vector.broadcast %cst_140 : f32 to vector<32x64xf32>
    %327 = arith.subf %326, %305 : vector<32x64xf32>
    %328 = arith.mulf %327, %305 : vector<32x64xf32>
    %329 = math.exp %328 : vector<32x64xf32>
    %330 = arith.mulf %325, %329 : vector<32x64xf32>
    %cst_141 = arith.constant 1.000000e+00 : f32
    %331 = vector.broadcast %cst_141 : f32 to vector<32x64xf32>
    %332 = arith.subf %331, %330 : vector<32x64xf32>
    %333 = arith.mulf %304, %332 : vector<32x64xf32>
    %cst_142 = arith.constant 1.000000e+00 : f32
    %334 = vector.broadcast %cst_142 : f32 to vector<32x64xf32>
    %335 = arith.addf %334, %333 : vector<32x64xf32>
    %336 = arith.mulf %297, %335 : vector<32x64xf32>
    %cst_143 = arith.constant dense<0.000000e+00> : vector<32x32xf32>
    %337 = tpu.matmul %336, %267, %cst_143 {dimension_numbers = #tpu.dot_dimension_numbers<[1], [0], [0], [1], [0, 0, 1, 1], [], []>} : vector<32x64xf32>, vector<64x32xf32>, vector<32x32xf32> -> vector<32x32xf32>
    %338 = vector.broadcast %268 : vector<1x32xf32> to vector<32x32xf32>
    %339 = arith.addf %337, %338 : vector<32x32xf32>
    %340 = arith.addf %184, %339 : vector<32x32xf32>
    %341 = vector.extract_strided_slice %340 {offsets = [0, 0], sizes = [16, 32], strides = [1, 1]} : vector<32x32xf32> to vector<16x32xf32>
    %c0_144 = arith.constant 0 : index
    %c0_145 = arith.constant 0 : index
    %c0_146 = arith.constant 0 : index
    %342 = vector.load %arg27[%c0_144, %c0_145, %c0_146] : memref<1x16x32xf32, #tpu.memory_space<vmem>>, vector<1x16x32xf32>
    %343 = vector.shape_cast %342 : vector<1x16x32xf32> to vector<16x32xf32>
    %344 = vector.shape_cast %341 : vector<16x32xf32> to vector<1x16x32xf32>
    tpu.vector_store %arg27[%c0_144, %c0_145, %c0_146], %344 {strides = array<i32>} : memref<1x16x32xf32, #tpu.memory_space<vmem>>, vector<1x16x32xf32>,
    %345 = vector.extract_strided_slice %340 {offsets = [16, 0], sizes = [16, 32], strides = [1, 1]} : vector<32x32xf32> to vector<16x32xf32>
    %c0_147 = arith.constant 0 : index
    %c0_148 = arith.constant 0 : index
    %c0_149 = arith.constant 0 : index
    %346 = vector.load %arg28[%c0_147, %c0_148, %c0_149] : memref<1x16x32xf32, #tpu.memory_space<vmem>>, vector<1x16x32xf32>
    %347 = vector.shape_cast %346 : vector<1x16x32xf32> to vector<16x32xf32>
    %348 = vector.shape_cast %345 : vector<16x32xf32> to vector<1x16x32xf32>
    tpu.vector_store %arg28[%c0_147, %c0_148, %c0_149], %348 {strides = array<i32>} : memref<1x16x32xf32, #tpu.memory_space<vmem>>, vector<1x16x32xf32>,
    return
  }
  func.func @transform_0(%arg0: i32) -> (i32, i32, i32) {
    %c0_i32 = arith.constant 0 : i32
    %c0_i32_0 = arith.constant 0 : i32
    %c0_i32_1 = arith.constant 0 : i32
    return %arg0, %c0_i32, %c0_i32_0 : i32, i32, i32
  }
  func.func @transform_1(%arg0: i32) -> (i32, i32, i32) {
    %c0_i32 = arith.constant 0 : i32
    %c0_i32_0 = arith.constant 0 : i32
    %c0_i32_1 = arith.constant 0 : i32
    return %arg0, %c0_i32, %c0_i32_0 : i32, i32, i32
  }
  func.func @transform_2(%arg0: i32) -> (i32, i32, i32) {
    %c0_i32 = arith.constant 0 : i32
    %c0_i32_0 = arith.constant 0 : i32
    %c0_i32_1 = arith.constant 0 : i32
    return %arg0, %c0_i32, %c0_i32_0 : i32, i32, i32
  }
  func.func @transform_3(%arg0: i32) -> (i32, i32, i32) {
    %c0_i32 = arith.constant 0 : i32
    %c0_i32_0 = arith.constant 0 : i32
    %c0_i32_1 = arith.constant 0 : i32
    return %arg0, %c0_i32, %c0_i32_0 : i32, i32, i32
  }
  func.func @transform_4(%arg0: i32) -> (i32, i32) {
    %c0_i32 = arith.constant 0 : i32
    %c0_i32_0 = arith.constant 0 : i32
    %c0_i32_1 = arith.constant 0 : i32
    return %c0_i32, %c0_i32_0 : i32, i32
  }
  func.func @transform_5(%arg0: i32) -> (i32, i32) {
    %c0_i32 = arith.constant 0 : i32
    %c0_i32_0 = arith.constant 0 : i32
    %c0_i32_1 = arith.constant 0 : i32
    return %c0_i32, %c0_i32_0 : i32, i32
  }
  func.func @transform_6(%arg0: i32) -> (i32, i32) {
    %c0_i32 = arith.constant 0 : i32
    %c0_i32_0 = arith.constant 0 : i32
    %c0_i32_1 = arith.constant 0 : i32
    return %c0_i32, %c0_i32_0 : i32, i32
  }
  func.func @transform_7(%arg0: i32) -> (i32, i32) {
    %c0_i32 = arith.constant 0 : i32
    %c0_i32_0 = arith.constant 0 : i32
    %c0_i32_1 = arith.constant 0 : i32
    return %c0_i32, %c0_i32_0 : i32, i32
  }
  func.func @transform_8(%arg0: i32) -> (i32, i32) {
    %c0_i32 = arith.constant 0 : i32
    %c0_i32_0 = arith.constant 0 : i32
    %c0_i32_1 = arith.constant 0 : i32
    return %c0_i32, %c0_i32_0 : i32, i32
  }
  func.func @transform_9(%arg0: i32) -> (i32, i32) {
    %c0_i32 = arith.constant 0 : i32
    %c0_i32_0 = arith.constant 0 : i32
    %c0_i32_1 = arith.constant 0 : i32
    return %c0_i32, %c0_i32_0 : i32, i32
  }
  func.func @transform_10(%arg0: i32) -> (i32, i32) {
    %c0_i32 = arith.constant 0 : i32
    %c0_i32_0 = arith.constant 0 : i32
    %c0_i32_1 = arith.constant 0 : i32
    return %c0_i32, %c0_i32_0 : i32, i32
  }
  func.func @transform_11(%arg0: i32) -> (i32, i32) {
    %c0_i32 = arith.constant 0 : i32
    %c0_i32_0 = arith.constant 0 : i32
    %c0_i32_1 = arith.constant 0 : i32
    return %c0_i32, %c0_i32_0 : i32, i32
  }
  func.func @transform_12(%arg0: i32) -> (i32, i32) {
    %c0_i32 = arith.constant 0 : i32
    %c0_i32_0 = arith.constant 0 : i32
    %c0_i32_1 = arith.constant 0 : i32
    return %c0_i32, %c0_i32_0 : i32, i32
  }
  func.func @transform_13(%arg0: i32) -> (i32, i32) {
    %c0_i32 = arith.constant 0 : i32
    %c0_i32_0 = arith.constant 0 : i32
    %c0_i32_1 = arith.constant 0 : i32
    return %c0_i32, %c0_i32_0 : i32, i32
  }
  func.func @transform_14(%arg0: i32) -> (i32, i32) {
    %c0_i32 = arith.constant 0 : i32
    %c0_i32_0 = arith.constant 0 : i32
    %c0_i32_1 = arith.constant 0 : i32
    return %c0_i32, %c0_i32_0 : i32, i32
  }
  func.func @transform_15(%arg0: i32) -> (i32, i32) {
    %c0_i32 = arith.constant 0 : i32
    %c0_i32_0 = arith.constant 0 : i32
    %c0_i32_1 = arith.constant 0 : i32
    return %c0_i32, %c0_i32_0 : i32, i32
  }
  func.func @transform_16(%arg0: i32) -> (i32, i32) {
    %c0_i32 = arith.constant 0 : i32
    %c0_i32_0 = arith.constant 0 : i32
    %c0_i32_1 = arith.constant 0 : i32
    return %c0_i32, %c0_i32_0 : i32, i32
  }
  func.func @transform_17(%arg0: i32) -> (i32, i32) {
    %c0_i32 = arith.constant 0 : i32
    %c0_i32_0 = arith.constant 0 : i32
    %c0_i32_1 = arith.constant 0 : i32
    return %c0_i32, %c0_i32_0 : i32, i32
  }
  func.func @transform_18(%arg0: i32) -> (i32, i32) {
    %c0_i32 = arith.constant 0 : i32
    %c0_i32_0 = arith.constant 0 : i32
    %c0_i32_1 = arith.constant 0 : i32
    return %c0_i32, %c0_i32_0 : i32, i32
  }
  func.func @transform_19(%arg0: i32) -> (i32, i32) {
    %c0_i32 = arith.constant 0 : i32
    %c0_i32_0 = arith.constant 0 : i32
    %c0_i32_1 = arith.constant 0 : i32
    return %c0_i32, %c0_i32_0 : i32, i32
  }
  func.func @transform_20(%arg0: i32) -> (i32, i32) {
    %c0_i32 = arith.constant 0 : i32
    %c0_i32_0 = arith.constant 0 : i32
    %c0_i32_1 = arith.constant 0 : i32
    return %c0_i32, %c0_i32_0 : i32, i32
  }
  func.func @transform_21(%arg0: i32) -> (i32, i32) {
    %c0_i32 = arith.constant 0 : i32
    %c0_i32_0 = arith.constant 0 : i32
    %c0_i32_1 = arith.constant 0 : i32
    return %c0_i32, %c0_i32_0 : i32, i32
  }
  func.func @transform_22(%arg0: i32) -> (i32, i32) {
    %c0_i32 = arith.constant 0 : i32
    %c0_i32_0 = arith.constant 0 : i32
    %c0_i32_1 = arith.constant 0 : i32
    return %c0_i32, %c0_i32_0 : i32, i32
  }
  func.func @transform_23(%arg0: i32) -> (i32, i32) {
    %c0_i32 = arith.constant 0 : i32
    %c0_i32_0 = arith.constant 0 : i32
    %c0_i32_1 = arith.constant 0 : i32
    return %c0_i32, %c0_i32_0 : i32, i32
  }
  func.func @transform_24(%arg0: i32) -> (i32, i32) {
    %c0_i32 = arith.constant 0 : i32
    %c0_i32_0 = arith.constant 0 : i32
    %c0_i32_1 = arith.constant 0 : i32
    return %c0_i32, %c0_i32_0 : i32, i32
  }
  func.func @transform_25(%arg0: i32) -> (i32, i32) {
    %c0_i32 = arith.constant 0 : i32
    %c0_i32_0 = arith.constant 0 : i32
    %c0_i32_1 = arith.constant 0 : i32
    return %c0_i32, %c0_i32_0 : i32, i32
  }
  func.func @transform_26(%arg0: i32) -> (i32, i32, i32) {
    %c0_i32 = arith.constant 0 : i32
    %c0_i32_0 = arith.constant 0 : i32
    %c0_i32_1 = arith.constant 0 : i32
    return %arg0, %c0_i32, %c0_i32_0 : i32, i32, i32
  }
  func.func @transform_27(%arg0: i32) -> (i32, i32, i32) {
    %c0_i32 = arith.constant 0 : i32
    %c0_i32_0 = arith.constant 0 : i32
    %c0_i32_1 = arith.constant 0 : i32
    return %arg0, %c0_i32, %c0_i32_0 : i32, i32, i32
  }
}

</mosaic_0001>

<llo_original>
// kernel: tpu_custom_call.1
$region0: #{tpu_custom_call.1}
  #allocation0 [shape = 'u32[]', space=smem, size = 0x4, offset = 0x4, fixed_abs, tag = 'smem constant byte address 0x4 - core index']
  #allocation1 [shape = 'u32[144,128]{1,0:T(1,128)}', space=vmem, size = 0x12000, scoped, tag = 'internal scratch']
  %s0 = inlined_call_operand.hbm [shape: f32[8,128], index: 0, kind: input, shape index: {}]
  %s1 = inlined_call_operand.hbm [shape: f32[8,128], index: 1, kind: output, shape index: {}]
  %s2 = sld [smem:[#allocation0]]
  $region18: #{tpu_custom_call.1} parent=0
    _
  %s4 = ssub.s32 1, %s2
  %s5 = scalar_select 0, %s4, %s2
  $region1: #{tpu_custom_call.1} parent=0
    #allocation2 [shape = 'u8[4096]{0}', space=vmem, size = 0x1000, scoped, tag = 'input window, operand 0, single buffered']
    #allocation3 [shape = 's32[1]{0}', space=sflag, size = 0x4, scoped, tag = 'scoped memory for tpu_custom_call.1']
    #allocation4 [shape = 's32[1]{0}', space=sflag, size = 0x4, scoped, tag = 'scoped memory for tpu_custom_call.1']
    #allocation5 [shape = 'u8[4096]{0}', space=vmem, size = 0x1000, scoped, tag = 'output window, operand 0, single buffered']
    %6 = vsyncpa [#allocation3], 0
    %7 = vsyncpa [#allocation4], 0
    // Predicated region
    $region2: #{tpu_custom_call.1} parent=1 // pred_check
      _
    $region3: #{tpu_custom_call.1} parent=1 // pred_check_branch
      %9 = sbr.rel (0) target = $region5
    $region4: #{tpu_custom_call.1} parent=1 // pred_region
      %s11 = ssub.s32 128, 128
      %12 = vsyncadd [#allocation3], %s11
      %s14 = sshll.u32 [#allocation2], 4
      %s15 = int_to_ptr.vmem [resolvable:$true] %s14
      %17 = dma.hbm_to_vmem [thread:$0]  %s0, 128, %s15, [#allocation3]
    $region5: #{tpu_custom_call.1} parent=1 // pred_fallthru
      _
    // Predicated region
    $region6: #{tpu_custom_call.1} parent=1 // pred_check
      _
    $region7: #{tpu_custom_call.1} parent=1 // pred_check_branch
      %19 = sbr.rel (0) target = $region9
    $region8: #{tpu_custom_call.1} parent=1 // pred_region
      %20 = dma.done [#allocation3], 128
    $region9: #{tpu_custom_call.1} parent=1 // pred_fallthru
      _
    %v21 = vld [vmem:[#allocation2] sm:$0xff]
    %v22 = verf.f32.pop %v21
    %23 = vst [vmem:[#allocation5] sm:$0xff] %v22
    // Predicated region
    $region10: #{tpu_custom_call.1} parent=1 // pred_check
      _
    $region11: #{tpu_custom_call.1} parent=1 // pred_check_branch
      %25 = sbr.rel (0) target = $region13
    $region12: #{tpu_custom_call.1} parent=1 // pred_region
      %s27 = ssub.s32 128, 128
      %28 = vsyncadd [#allocation4], %s27
      %s30 = sshll.u32 [#allocation5], 4
      %s31 = int_to_ptr.vmem [resolvable:$true] %s30
      %33 = dma.vmem_to_hbm [thread:$0]  %s31, 128, %s1, [#allocation4]
    $region13: #{tpu_custom_call.1} parent=1 // pred_fallthru
      _
    // Predicated region
    $region14: #{tpu_custom_call.1} parent=1 // pred_check
      _
    $region15: #{tpu_custom_call.1} parent=1 // pred_check_branch
      %35 = sbr.rel (0) target = $region17
    $region16: #{tpu_custom_call.1} parent=1 // pred_region
      %36 = dma.done [#allocation4], 128
    $region17: #{tpu_custom_call.1} parent=1 // pred_fallthru
      _
    %37 = vsyncpa [#allocation3], 1
    %38 = vsyncpa [#allocation4], 1

// kernel: transformer_layer_fused.1
$region0: #{transformer_layer_fused.1}
  #allocation0 [shape = 'u32[]', space=smem, size = 0x4, offset = 0x4, fixed_abs, tag = 'smem constant byte address 0x4 - core index']
  #allocation1 [shape = 'u32[144,128]{1,0:T(1,128)}', space=vmem, size = 0x12000, scoped, tag = 'internal scratch']
  %s0 = inlined_call_operand.hbm [shape: f32[2,16,32], index: 0, kind: input, shape index: {}]
  %s1 = inlined_call_operand.hbm [shape: f32[2,16,32], index: 1, kind: input, shape index: {}]
  %s2 = inlined_call_operand.vmem [shape: f32[2,32,64], index: 2, kind: input, shape index: {}]
  %s3 = inlined_call_operand.vmem [shape: f32[2,32,64], index: 3, kind: input, shape index: {}]
  %s4 = inlined_call_operand.vmem [shape: f32[32,160], index: 4, kind: input, shape index: {}]
  %s5 = inlined_call_operand.hbm [shape: f32[1,160], index: 5, kind: input, shape index: {}]
  %s6 = inlined_call_operand.hbm [shape: f32[32,32], index: 6, kind: input, shape index: {}]
  %s7 = inlined_call_operand.hbm [shape: f32[1,32], index: 7, kind: input, shape index: {}]
  %s8 = inlined_call_operand.hbm [shape: f32[32,64], index: 8, kind: input, shape index: {}]
  %s9 = inlined_call_operand.hbm [shape: f32[32,64], index: 9, kind: input, shape index: {}]
  %s10 = inlined_call_operand.hbm [shape: f32[1,64], index: 10, kind: input, shape index: {}]
  %s11 = inlined_call_operand.hbm [shape: f32[1,64], index: 11, kind: input, shape index: {}]
  %s12 = inlined_call_operand.hbm [shape: f32[1,64], index: 12, kind: input, shape index: {}]
  %s13 = inlined_call_operand.vmem [shape: f32[64,32], index: 13, kind: input, shape index: {}]
  %s14 = inlined_call_operand.hbm [shape: f32[1,32], index: 14, kind: input, shape index: {}]
  %s15 = inlined_call_operand.hbm [shape: f32[32,64], index: 15, kind: input, shape index: {}]
  %s16 = inlined_call_operand.vmem [shape: f32[1,64], index: 16, kind: input, shape index: {}]
  %s17 = inlined_call_operand.hbm [shape: f32[32,32], index: 17, kind: input, shape index: {}]
  %s18 = inlined_call_operand.vmem [shape: f32[1,32], index: 18, kind: input, shape index: {}]
  %s19 = inlined_call_operand.hbm [shape: f32[32,64], index: 19, kind: input, shape index: {}]
  %s20 = inlined_call_operand.hbm [shape: f32[32,64], index: 20, kind: input, shape index: {}]
  %s21 = inlined_call_operand.hbm [shape: f32[1,64], index: 21, kind: input, shape index: {}]
  %s22 = inlined_call_operand.vmem [shape: f32[1,64], index: 22, kind: input, shape index: {}]
  %s23 = inlined_call_operand.hbm [shape: f32[1,64], index: 23, kind: input, shape index: {}]
  %s24 = inlined_call_operand.vmem [shape: f32[64,32], index: 24, kind: input, shape index: {}]
  %s25 = inlined_call_operand.hbm [shape: f32[1,32], index: 25, kind: input, shape index: {}]
  %s26 = inlined_call_operand.hbm [shape: f32[2,16,32], index: 26, kind: output, shape index: {0}]
  %s27 = inlined_call_operand.hbm [shape: f32[2,16,32], index: 27, kind: output, shape index: {1}]
  %28 = xla_tuple %s26, %s27
  %s29 = sld [smem:[#allocation0]]
  $region217: #{transformer_layer_fused.1} parent=0
    _
  %s31 = ssub.s32 1, %s29
  %s32 = scalar_select 0, %s31, %s29
  $region1: #{transformer_layer_fused.1} parent=0
    #allocation2 [shape = 'u8[16384]{0}', space=vmem, size = 0x4000, scoped, tag = 'input window, operand 0']
    #allocation3 [shape = 's32[2]{0}', space=sflag, size = 0x8, scoped, tag = 'scoped memory for transformer_layer_fused.1']
    #allocation4 [shape = 's32[2]{0}', space=sflag, size = 0x8, scoped, tag = 'scoped memory for transformer_layer_fused.1']
    #allocation5 [shape = 'u8[16384]{0}', space=vmem, size = 0x4000, scoped, tag = 'input window, operand 1']
    #allocation6 [shape = 's32[2]{0}', space=sflag, size = 0x8, scoped, tag = 'scoped memory for transformer_layer_fused.1']
    #allocation7 [shape = 'u8[1024]{0}', space=vmem, size = 0x400, scoped, tag = 'input window, operand 5, single buffered']
    #allocation8 [shape = 'u8[16384]{0}', space=vmem, size = 0x4000, scoped, tag = 'input window, operand 6, single buffered']
    #allocation9 [shape = 's32[1]{0}', space=sflag, size = 0x4, scoped, tag = 'scoped memory for transformer_layer_fused.1']
    #allocation10 [shape = 'u8[512]{0}', space=vmem, size = 0x400, scoped, tag = 'input window, operand 7, single buffered']
    #allocation11 [shape = 'u8[16384]{0}', space=vmem, size = 0x4000, scoped, tag = 'input window, operand 8, single buffered']
    #allocation12 [shape = 's32[1]{0}', space=sflag, size = 0x4, scoped, tag = 'scoped memory for transformer_layer_fused.1']
    #allocation13 [shape = 'u8[16384]{0}', space=vmem, size = 0x4000, scoped, tag = 'input window, operand 9, single buffered']
    #allocation14 [shape = 'u8[512]{0}', space=vmem, size = 0x400, scoped, tag = 'input window, operand 10, single buffered']
    #allocation15 [shape = 's32[1]{0}', space=sflag, size = 0x4, scoped, tag = 'scoped memory for transformer_layer_fused.1']
    #allocation16 [shape = 'u8[512]{0}', space=vmem, size = 0x400, scoped, tag = 'input window, operand 11, single buffered']
    #allocation17 [shape = 'u8[512]{0}', space=vmem, size = 0x400, scoped, tag = 'input window, operand 12, single buffered']
    #allocation18 [shape = 's32[1]{0}', space=sflag, size = 0x4, scoped, tag = 'scoped memory for transformer_layer_fused.1']
    #allocation19 [shape = 'u8[512]{0}', space=vmem, size = 0x400, scoped, tag = 'input window, operand 14, single buffered']
    #allocation20 [shape = 'u8[16384]{0}', space=vmem, size = 0x4000, scoped, tag = 'input window, operand 15, single buffered']
    #allocation21 [shape = 's32[1]{0}', space=sflag, size = 0x4, scoped, tag = 'scoped memory for transformer_layer_fused.1']
    #allocation22 [shape = 'u8[16384]{0}', space=vmem, size = 0x4000, scoped, tag = 'input window, operand 17, single buffered']
    #allocation23 [shape = 'u8[16384]{0}', space=vmem, size = 0x4000, scoped, tag = 'input window, operand 19, single buffered']
    #allocation24 [shape = 's32[1]{0}', space=sflag, size = 0x4, scoped, tag = 'scoped memory for transformer_layer_fused.1']
    #allocation25 [shape = 'u8[16384]{0}', space=vmem, size = 0x4000, scoped, tag = 'input window, operand 20, single buffered']
    #allocation26 [shape = 'u8[512]{0}', space=vmem, size = 0x400, scoped, tag = 'input window, operand 21, single buffered']
    #allocation27 [shape = 's32[1]{0}', space=sflag, size = 0x4, scoped, tag = 'scoped memory for transformer_layer_fused.1']
    #allocation28 [shape = 'u8[512]{0}', space=vmem, size = 0x400, scoped, tag = 'input window, operand 23, single buffered']
    #allocation29 [shape = 'u8[512]{0}', space=vmem, size = 0x400, scoped, tag = 'input window, operand 25, single buffered']
    #allocation30 [shape = 's32[1]{0}', space=sflag, size = 0x4, scoped, tag = 'scoped memory for transformer_layer_fused.1']
    #allocation31 [shape = 'u8[16384]{0}', space=vmem, size = 0x4000, scoped, tag = 'output window, operand 0']
    #allocation32 [shape = 'u8[16384]{0}', space=vmem, size = 0x4000, scoped, tag = 'output window, operand 1']
    #allocation33 [shape = 's32[2]{0}', space=sflag, size = 0x8, scoped, tag = 'scoped memory for transformer_layer_fused.1']
    %33 = vsyncpa [#allocation3], 0
    %s34 = scalar_lea.sflag [#allocation3], 1
    %35 = vsyncpa %s34, 0
    %36 = vsyncpa [#allocation6], 0
    %s37 = scalar_lea.sflag [#allocation6], 1
    %38 = vsyncpa %s37, 0
    %39 = vsyncpa [#allocation9], 0
    %40 = vsyncpa [#allocation12], 0
    %41 = vsyncpa [#allocation15], 0
    %42 = vsyncpa [#allocation18], 0
    %43 = vsyncpa [#allocation21], 0
    %44 = vsyncpa [#allocation24], 0
    %45 = vsyncpa [#allocation27], 0
    %46 = vsyncpa [#allocation30], 0
    %47 = vsyncpa [#allocation4], 0
    %s48 = scalar_lea.sflag [#allocation4], 1
    %49 = vsyncpa %s48, 0
    %50 = vsyncpa [#allocation33], 0
    %s51 = scalar_lea.sflag [#allocation33], 1
    %52 = vsyncpa %s51, 0
    loop: start=0, step=1, limit=4
    $region2: #{transformer_layer_fused.1} parent=1 // loop_pre_header
      _
    $region3: #{transformer_layer_fused.1} parent=1 // loop_header
      %s54 = sphi 0, %s58
      %p55 = scmp.ge.s32.totalorder %s54, 4
      %s64 = sphi 0, %s66
      %s67 = sphi 0, %s64
      %s68 = sphi 0, %s67
      %s84 = sphi 0, %s68
      %s90 = sphi 0, %s92
      %s93 = sphi 0, %s90
      %s94 = sphi 0, %s93
      %s110 = sphi 0, %s94
      %s116 = sphi 0, %s118
      %s119 = sphi 0, %s116
      %s120 = sphi 0, %s119
      %s136 = sphi 0, %s120
      %s142 = sphi 0, %s144
      %s145 = sphi 0, %s142
      %s146 = sphi 0, %s145
      %s162 = sphi 0, %s146
      %s166 = sphi 0, %s166
      %s168 = sphi 0, %s166
      %s169 = sphi 0, %s168
      %s183 = sphi 0, %s169
      %s187 = sphi 0, %s187
      %s189 = sphi 0, %s187
      %s190 = sphi 0, %s189
      %s204 = sphi 0, %s190
      %s208 = sphi 0, %s208
      %s210 = sphi 0, %s208
      %s211 = sphi 0, %s210
      %s225 = sphi 0, %s211
      %s229 = sphi 0, %s229
      %s231 = sphi 0, %s229
      %s232 = sphi 0, %s231
      %s246 = sphi 0, %s232
      %s250 = sphi 0, %s250
      %s252 = sphi 0, %s250
      %s253 = sphi 0, %s252
      %s267 = sphi 0, %s253
      %s271 = sphi 0, %s271
      %s273 = sphi 0, %s271
      %s274 = sphi 0, %s273
      %s288 = sphi 0, %s274
      %s292 = sphi 0, %s292
      %s294 = sphi 0, %s292
      %s295 = sphi 0, %s294
      %s309 = sphi 0, %s295
      %s313 = sphi 0, %s313
      %s315 = sphi 0, %s313
      %s316 = sphi 0, %s315
      %s330 = sphi 0, %s316
      %s334 = sphi 0, %s334
      %s336 = sphi 0, %s334
      %s337 = sphi 0, %s336
      %s351 = sphi 0, %s337
      %s355 = sphi 0, %s355
      %s357 = sphi 0, %s355
      %s358 = sphi 0, %s357
      %s372 = sphi 0, %s358
      %s376 = sphi 0, %s376
      %s378 = sphi 0, %s376
      %s379 = sphi 0, %s378
      %s393 = sphi 0, %s379
      %s397 = sphi 0, %s397
      %s399 = sphi 0, %s397
      %s400 = sphi 0, %s399
      %s414 = sphi 0, %s400
      %s418 = sphi 0, %s418
      %s420 = sphi 0, %s418
      %s421 = sphi 0, %s420
      %s435 = sphi 0, %s421
      %s439 = sphi 0, %s439
      %s441 = sphi 0, %s439
      %s442 = sphi 0, %s441
      %s456 = sphi 0, %s442
      %s460 = sphi 0, %s460
      %s462 = sphi 0, %s460
      %s463 = sphi 0, %s462
      %s477 = sphi 0, %s463
      %s481 = sphi 0, %s481
      %s483 = sphi 0, %s481
      %s484 = sphi 0, %s483
      %s498 = sphi 0, %s484
      %s502 = sphi 0, %s502
      %s504 = sphi 0, %s502
      %s505 = sphi 0, %s504
      %s519 = sphi 0, %s505
      %s523 = sphi 0, %s523
      %s525 = sphi 0, %s523
      %s526 = sphi 0, %s525
      %s540 = sphi 0, %s526
      %s544 = sphi 0, %s544
      %s546 = sphi 0, %s544
      %s547 = sphi 0, %s546
      %s561 = sphi 0, %s547
      %s565 = sphi 0, %s565
      %s567 = sphi 0, %s565
      %s568 = sphi 0, %s567
      %s582 = sphi 0, %s568
      %s586 = sphi 0, %s586
      %s588 = sphi 0, %s586
      %s589 = sphi 0, %s588
      %s603 = sphi 0, %s589
      %s607 = sphi 0, %s607
      %s609 = sphi 0, %s607
      %s610 = sphi 0, %s609
      %s624 = sphi 0, %s610
      %s630 = sphi 0, %s632
      %s633 = sphi 0, %s630
      %s634 = sphi 0, %s633
      %s650 = sphi 0, %s634
      %s656 = sphi 0, %s658
      %s659 = sphi 0, %s656
      %s660 = sphi 0, %s659
      %s676 = sphi 0, %s660
    $region4: #{transformer_layer_fused.1} parent=1 // loop_header_branch
      %57 = sbr.rel (%p55) target = $region8
    $region5: #{transformer_layer_fused.1} parent=1 // loop_body
      %s59 = ssub.s32 %s54, 1
      %s60 = ssub.s32 %s54, 2
      %s61 = sadd.s32 %s54, 1
      %s62 = ssub.s32 %s54, %s61
      %p63 = scmp.eq.s32.totalorder %s62, 0
      %s65 = sadd.s32 %s64, 1
      %s66 = scalar_select %p63, %s64, %s65
      %p69 = pneg %p63
      %p70 = scmp.eq.s32.totalorder %s54, 1
      %p71 = por %p69, %p70
      %p72 = scmp.ne.s32.totalorder %s64, %s67
      %p73 = scmp.eq.s32.totalorder %s54, 0
      %p74 = por %p72, %p73
      %p75 = scmp.ne.s32.totalorder %s64, %s67
      %p76 = scmp.eq.s32.totalorder %s59, 1
      %p77 = por %p75, %p76
      %p78 = scmp.ne.s32.totalorder %s67, %s68
      %p79 = scmp.eq.s32.totalorder %s59, 0
      %p80 = por %p78, %p79
      %p81 = scmp.ne.s32.totalorder %s67, %s68
      %p82 = scmp.eq.s32.totalorder %s60, 1
      %p83 = por %p81, %p82
      %p85 = scmp.ne.s32.totalorder %s68, %s84
      %p86 = scmp.eq.s32.totalorder %s60, 0
      %p87 = por %p85, %p86
      %s88 = ssub.s32 %s54, %s61
      %p89 = scmp.eq.s32.totalorder %s88, 0
      %s91 = sadd.s32 %s90, 1
      %s92 = scalar_select %p89, %s90, %s91
      %p95 = pneg %p89
      %p96 = scmp.eq.s32.totalorder %s54, 1
      %p97 = por %p95, %p96
      %p98 = scmp.ne.s32.totalorder %s90, %s93
      %p99 = scmp.eq.s32.totalorder %s54, 0
      %p100 = por %p98, %p99
      %p101 = scmp.ne.s32.totalorder %s90, %s93
      %p102 = scmp.eq.s32.totalorder %s59, 1
      %p103 = por %p101, %p102
      %p104 = scmp.ne.s32.totalorder %s93, %s94
      %p105 = scmp.eq.s32.totalorder %s59, 0
      %p106 = por %p104, %p105
      %p107 = scmp.ne.s32.totalorder %s93, %s94
      %p108 = scmp.eq.s32.totalorder %s60, 1
      %p109 = por %p107, %p108
      %p111 = scmp.ne.s32.totalorder %s94, %s110
      %p112 = scmp.eq.s32.totalorder %s60, 0
      %p113 = por %p111, %p112
      %s114 = ssub.s32 %s54, %s61
      %p115 = scmp.eq.s32.totalorder %s114, 0
      %s117 = sadd.s32 %s116, 1
      %s118 = scalar_select %p115, %s116, %s117
      %p121 = pneg %p115
      %p122 = scmp.eq.s32.totalorder %s54, 1
      %p123 = por %p121, %p122
      %p124 = scmp.ne.s32.totalorder %s116, %s119
      %p125 = scmp.eq.s32.totalorder %s54, 0
      %p126 = por %p124, %p125
      %p127 = scmp.ne.s32.totalorder %s116, %s119
      %p128 = scmp.eq.s32.totalorder %s59, 1
      %p129 = por %p127, %p128
      %p130 = scmp.ne.s32.totalorder %s119, %s120
      %p131 = scmp.eq.s32.totalorder %s59, 0
      %p132 = por %p130, %p131
      %p133 = scmp.ne.s32.totalorder %s119, %s120
      %p134 = scmp.eq.s32.totalorder %s60, 1
      %p135 = por %p133, %p134
      %p137 = scmp.ne.s32.totalorder %s120, %s136
      %p138 = scmp.eq.s32.totalorder %s60, 0
      %p139 = por %p137, %p138
      %s140 = ssub.s32 %s54, %s61
      %p141 = scmp.eq.s32.totalorder %s140, 0
      %s143 = sadd.s32 %s142, 1
      %s144 = scalar_select %p141, %s142, %s143
      %p147 = pneg %p141
      %p148 = scmp.eq.s32.totalorder %s54, 1
      %p149 = por %p147, %p148
      %p150 = scmp.ne.s32.totalorder %s142, %s145
      %p151 = scmp.eq.s32.totalorder %s54, 0
      %p152 = por %p150, %p151
      %p153 = scmp.ne.s32.totalorder %s142, %s145
      %p154 = scmp.eq.s32.totalorder %s59, 1
      %p155 = por %p153, %p154
      %p156 = scmp.ne.s32.totalorder %s145, %s146
      %p157 = scmp.eq.s32.totalorder %s59, 0
      %p158 = por %p156, %p157
      %p159 = scmp.ne.s32.totalorder %s145, %s146
      %p160 = scmp.eq.s32.totalorder %s60, 1
      %p161 = por %p159, %p160
      %p163 = scmp.ne.s32.totalorder %s146, %s162
      %p164 = scmp.eq.s32.totalorder %s60, 0
      %p165 = por %p163, %p164
      %s167 = sadd.s32 %s166, 1
      %p170 = scmp.eq.s32.totalorder %s54, 1
      %p171 = scmp.ne.s32.totalorder %s166, %s168
      %p172 = scmp.eq.s32.totalorder %s54, 0
      %p173 = por %p171, %p172
      %p174 = scmp.ne.s32.totalorder %s166, %s168
      %p175 = scmp.eq.s32.totalorder %s59, 1
      %p176 = por %p174, %p175
      %p177 = scmp.ne.s32.totalorder %s168, %s169
      %p178 = scmp.eq.s32.totalorder %s59, 0
      %p179 = por %p177, %p178
      %p180 = scmp.ne.s32.totalorder %s168, %s169
      %p181 = scmp.eq.s32.totalorder %s60, 1
      %p182 = por %p180, %p181
      %p184 = scmp.ne.s32.totalorder %s169, %s183
      %p185 = scmp.eq.s32.totalorder %s60, 0
      %p186 = por %p184, %p185
      %s188 = sadd.s32 %s187, 1
      %p191 = scmp.eq.s32.totalorder %s54, 1
      %p192 = scmp.ne.s32.totalorder %s187, %s189
      %p193 = scmp.eq.s32.totalorder %s54, 0
      %p194 = por %p192, %p193
      %p195 = scmp.ne.s32.totalorder %s187, %s189
      %p196 = scmp.eq.s32.totalorder %s59, 1
      %p197 = por %p195, %p196
      %p198 = scmp.ne.s32.totalorder %s189, %s190
      %p199 = scmp.eq.s32.totalorder %s59, 0
      %p200 = por %p198, %p199
      %p201 = scmp.ne.s32.totalorder %s189, %s190
      %p202 = scmp.eq.s32.totalorder %s60, 1
      %p203 = por %p201, %p202
      %p205 = scmp.ne.s32.totalorder %s190, %s204
      %p206 = scmp.eq.s32.totalorder %s60, 0
      %p207 = por %p205, %p206
      %s209 = sadd.s32 %s208, 1
      %p212 = scmp.eq.s32.totalorder %s54, 1
      %p213 = scmp.ne.s32.totalorder %s208, %s210
      %p214 = scmp.eq.s32.totalorder %s54, 0
      %p215 = por %p213, %p214
      %p216 = scmp.ne.s32.totalorder %s208, %s210
      %p217 = scmp.eq.s32.totalorder %s59, 1
      %p218 = por %p216, %p217
      %p219 = scmp.ne.s32.totalorder %s210, %s211
      %p220 = scmp.eq.s32.totalorder %s59, 0
      %p221 = por %p219, %p220
      %p222 = scmp.ne.s32.totalorder %s210, %s211
      %p223 = scmp.eq.s32.totalorder %s60, 1
      %p224 = por %p222, %p223
      %p226 = scmp.ne.s32.totalorder %s211, %s225
      %p227 = scmp.eq.s32.totalorder %s60, 0
      %p228 = por %p226, %p227
      %s230 = sadd.s32 %s229, 1
      %p233 = scmp.eq.s32.totalorder %s54, 1
      %p234 = scmp.ne.s32.totalorder %s229, %s231
      %p235 = scmp.eq.s32.totalorder %s54, 0
      %p236 = por %p234, %p235
      %p237 = scmp.ne.s32.totalorder %s229, %s231
      %p238 = scmp.eq.s32.totalorder %s59, 1
      %p239 = por %p237, %p238
      %p240 = scmp.ne.s32.totalorder %s231, %s232
      %p241 = scmp.eq.s32.totalorder %s59, 0
      %p242 = por %p240, %p241
      %p243 = scmp.ne.s32.totalorder %s231, %s232
      %p244 = scmp.eq.s32.totalorder %s60, 1
      %p245 = por %p243, %p244
      %p247 = scmp.ne.s32.totalorder %s232, %s246
      %p248 = scmp.eq.s32.totalorder %s60, 0
      %p249 = por %p247, %p248
      %s251 = sadd.s32 %s250, 1
      %p254 = scmp.eq.s32.totalorder %s54, 1
      %p255 = scmp.ne.s32.totalorder %s250, %s252
      %p256 = scmp.eq.s32.totalorder %s54, 0
      %p257 = por %p255, %p256
      %p258 = scmp.ne.s32.totalorder %s250, %s252
      %p259 = scmp.eq.s32.totalorder %s59, 1
      %p260 = por %p258, %p259
      %p261 = scmp.ne.s32.totalorder %s252, %s253
      %p262 = scmp.eq.s32.totalorder %s59, 0
      %p263 = por %p261, %p262
      %p264 = scmp.ne.s32.totalorder %s252, %s253
      %p265 = scmp.eq.s32.totalorder %s60, 1
      %p266 = por %p264, %p265
      %p268 = scmp.ne.s32.totalorder %s253, %s267
      %p269 = scmp.eq.s32.totalorder %s60, 0
      %p270 = por %p268, %p269
      %s272 = sadd.s32 %s271, 1
      %p275 = scmp.eq.s32.totalorder %s54, 1
      %p276 = scmp.ne.s32.totalorder %s271, %s273
      %p277 = scmp.eq.s32.totalorder %s54, 0
      %p278 = por %p276, %p277
      %p279 = scmp.ne.s32.totalorder %s271, %s273
      %p280 = scmp.eq.s32.totalorder %s59, 1
      %p281 = por %p279, %p280
      %p282 = scmp.ne.s32.totalorder %s273, %s274
      %p283 = scmp.eq.s32.totalorder %s59, 0
      %p284 = por %p282, %p283
      %p285 = scmp.ne.s32.totalorder %s273, %s274
      %p286 = scmp.eq.s32.totalorder %s60, 1
      %p287 = por %p285, %p286
      %p289 = scmp.ne.s32.totalorder %s274, %s288
      %p290 = scmp.eq.s32.totalorder %s60, 0
      %p291 = por %p289, %p290
      %s293 = sadd.s32 %s292, 1
      %p296 = scmp.eq.s32.totalorder %s54, 1
      %p297 = scmp.ne.s32.totalorder %s292, %s294
      %p298 = scmp.eq.s32.totalorder %s54, 0
      %p299 = por %p297, %p298
      %p300 = scmp.ne.s32.totalorder %s292, %s294
      %p301 = scmp.eq.s32.totalorder %s59, 1
      %p302 = por %p300, %p301
      %p303 = scmp.ne.s32.totalorder %s294, %s295
      %p304 = scmp.eq.s32.totalorder %s59, 0
      %p305 = por %p303, %p304
      %p306 = scmp.ne.s32.totalorder %s294, %s295
      %p307 = scmp.eq.s32.totalorder %s60, 1
      %p308 = por %p306, %p307
      %p310 = scmp.ne.s32.totalorder %s295, %s309
      %p311 = scmp.eq.s32.totalorder %s60, 0
      %p312 = por %p310, %p311
      %s314 = sadd.s32 %s313, 1
      %p317 = scmp.eq.s32.totalorder %s54, 1
      %p318 = scmp.ne.s32.totalorder %s313, %s315
      %p319 = scmp.eq.s32.totalorder %s54, 0
      %p320 = por %p318, %p319
      %p321 = scmp.ne.s32.totalorder %s313, %s315
      %p322 = scmp.eq.s32.totalorder %s59, 1
      %p323 = por %p321, %p322
      %p324 = scmp.ne.s32.totalorder %s315, %s316
      %p325 = scmp.eq.s32.totalorder %s59, 0
      %p326 = por %p324, %p325
      %p327 = scmp.ne.s32.totalorder %s315, %s316
      %p328 = scmp.eq.s32.totalorder %s60, 1
      %p329 = por %p327, %p328
      %p331 = scmp.ne.s32.totalorder %s316, %s330
      %p332 = scmp.eq.s32.totalorder %s60, 0
      %p333 = por %p331, %p332
      %s335 = sadd.s32 %s334, 1
      %p338 = scmp.eq.s32.totalorder %s54, 1
      %p339 = scmp.ne.s32.totalorder %s334, %s336
      %p340 = scmp.eq.s32.totalorder %s54, 0
      %p341 = por %p339, %p340
      %p342 = scmp.ne.s32.totalorder %s334, %s336
      %p343 = scmp.eq.s32.totalorder %s59, 1
      %p344 = por %p342, %p343
      %p345 = scmp.ne.s32.totalorder %s336, %s337
      %p346 = scmp.eq.s32.totalorder %s59, 0
      %p347 = por %p345, %p346
      %p348 = scmp.ne.s32.totalorder %s336, %s337
      %p349 = scmp.eq.s32.totalorder %s60, 1
      %p350 = por %p348, %p349
      %p352 = scmp.ne.s32.totalorder %s337, %s351
      %p353 = scmp.eq.s32.totalorder %s60, 0
      %p354 = por %p352, %p353
      %s356 = sadd.s32 %s355, 1
      %p359 = scmp.eq.s32.totalorder %s54, 1
      %p360 = scmp.ne.s32.totalorder %s355, %s357
      %p361 = scmp.eq.s32.totalorder %s54, 0
      %p362 = por %p360, %p361
      %p363 = scmp.ne.s32.totalorder %s355, %s357
      %p364 = scmp.eq.s32.totalorder %s59, 1
      %p365 = por %p363, %p364
      %p366 = scmp.ne.s32.totalorder %s357, %s358
      %p367 = scmp.eq.s32.totalorder %s59, 0
      %p368 = por %p366, %p367
      %p369 = scmp.ne.s32.totalorder %s357, %s358
      %p370 = scmp.eq.s32.totalorder %s60, 1
      %p371 = por %p369, %p370
      %p373 = scmp.ne.s32.totalorder %s358, %s372
      %p374 = scmp.eq.s32.totalorder %s60, 0
      %p375 = por %p373, %p374
      %s377 = sadd.s32 %s376, 1
      %p380 = scmp.eq.s32.totalorder %s54, 1
      %p381 = scmp.ne.s32.totalorder %s376, %s378
      %p382 = scmp.eq.s32.totalorder %s54, 0
      %p383 = por %p381, %p382
      %p384 = scmp.ne.s32.totalorder %s376, %s378
      %p385 = scmp.eq.s32.totalorder %s59, 1
      %p386 = por %p384, %p385
      %p387 = scmp.ne.s32.totalorder %s378, %s379
      %p388 = scmp.eq.s32.totalorder %s59, 0
      %p389 = por %p387, %p388
      %p390 = scmp.ne.s32.totalorder %s378, %s379
      %p391 = scmp.eq.s32.totalorder %s60, 1
      %p392 = por %p390, %p391
      %p394 = scmp.ne.s32.totalorder %s379, %s393
      %p395 = scmp.eq.s32.totalorder %s60, 0
      %p396 = por %p394, %p395
      %s398 = sadd.s32 %s397, 1
      %p401 = scmp.eq.s32.totalorder %s54, 1
      %p402 = scmp.ne.s32.totalorder %s397, %s399
      %p403 = scmp.eq.s32.totalorder %s54, 0
      %p404 = por %p402, %p403
      %p405 = scmp.ne.s32.totalorder %s397, %s399
      %p406 = scmp.eq.s32.totalorder %s59, 1
      %p407 = por %p405, %p406
      %p408 = scmp.ne.s32.totalorder %s399, %s400
      %p409 = scmp.eq.s32.totalorder %s59, 0
      %p410 = por %p408, %p409
      %p411 = scmp.ne.s32.totalorder %s399, %s400
      %p412 = scmp.eq.s32.totalorder %s60, 1
      %p413 = por %p411, %p412
      %p415 = scmp.ne.s32.totalorder %s400, %s414
      %p416 = scmp.eq.s32.totalorder %s60, 0
      %p417 = por %p415, %p416
      %s419 = sadd.s32 %s418, 1
      %p422 = scmp.eq.s32.totalorder %s54, 1
      %p423 = scmp.ne.s32.totalorder %s418, %s420
      %p424 = scmp.eq.s32.totalorder %s54, 0
      %p425 = por %p423, %p424
      %p426 = scmp.ne.s32.totalorder %s418, %s420
      %p427 = scmp.eq.s32.totalorder %s59, 1
      %p428 = por %p426, %p427
      %p429 = scmp.ne.s32.totalorder %s420, %s421
      %p430 = scmp.eq.s32.totalorder %s59, 0
      %p431 = por %p429, %p430
      %p432 = scmp.ne.s32.totalorder %s420, %s421
      %p433 = scmp.eq.s32.totalorder %s60, 1
      %p434 = por %p432, %p433
      %p436 = scmp.ne.s32.totalorder %s421, %s435
      %p437 = scmp.eq.s32.totalorder %s60, 0
      %p438 = por %p436, %p437
      %s440 = sadd.s32 %s439, 1
      %p443 = scmp.eq.s32.totalorder %s54, 1
      %p444 = scmp.ne.s32.totalorder %s439, %s441
      %p445 = scmp.eq.s32.totalorder %s54, 0
      %p446 = por %p444, %p445
      %p447 = scmp.ne.s32.totalorder %s439, %s441
      %p448 = scmp.eq.s32.totalorder %s59, 1
      %p449 = por %p447, %p448
      %p450 = scmp.ne.s32.totalorder %s441, %s442
      %p451 = scmp.eq.s32.totalorder %s59, 0
      %p452 = por %p450, %p451
      %p453 = scmp.ne.s32.totalorder %s441, %s442
      %p454 = scmp.eq.s32.totalorder %s60, 1
      %p455 = por %p453, %p454
      %p457 = scmp.ne.s32.totalorder %s442, %s456
      %p458 = scmp.eq.s32.totalorder %s60, 0
      %p459 = por %p457, %p458
      %s461 = sadd.s32 %s460, 1
      %p464 = scmp.eq.s32.totalorder %s54, 1
      %p465 = scmp.ne.s32.totalorder %s460, %s462
      %p466 = scmp.eq.s32.totalorder %s54, 0
      %p467 = por %p465, %p466
      %p468 = scmp.ne.s32.totalorder %s460, %s462
      %p469 = scmp.eq.s32.totalorder %s59, 1
      %p470 = por %p468, %p469
      %p471 = scmp.ne.s32.totalorder %s462, %s463
      %p472 = scmp.eq.s32.totalorder %s59, 0
      %p473 = por %p471, %p472
      %p474 = scmp.ne.s32.totalorder %s462, %s463
      %p475 = scmp.eq.s32.totalorder %s60, 1
      %p476 = por %p474, %p475
      %p478 = scmp.ne.s32.totalorder %s463, %s477
      %p479 = scmp.eq.s32.totalorder %s60, 0
      %p480 = por %p478, %p479
      %s482 = sadd.s32 %s481, 1
      %p485 = scmp.eq.s32.totalorder %s54, 1
      %p486 = scmp.ne.s32.totalorder %s481, %s483
      %p487 = scmp.eq.s32.totalorder %s54, 0
      %p488 = por %p486, %p487
      %p489 = scmp.ne.s32.totalorder %s481, %s483
      %p490 = scmp.eq.s32.totalorder %s59, 1
      %p491 = por %p489, %p490
      %p492 = scmp.ne.s32.totalorder %s483, %s484
      %p493 = scmp.eq.s32.totalorder %s59, 0
      %p494 = por %p492, %p493
      %p495 = scmp.ne.s32.totalorder %s483, %s484
      %p496 = scmp.eq.s32.totalorder %s60, 1
      %p497 = por %p495, %p496
      %p499 = scmp.ne.s32.totalorder %s484, %s498
      %p500 = scmp.eq.s32.totalorder %s60, 0
      %p501 = por %p499, %p500
      %s503 = sadd.s32 %s502, 1
      %p506 = scmp.eq.s32.totalorder %s54, 1
      %p507 = scmp.ne.s32.totalorder %s502, %s504
      %p508 = scmp.eq.s32.totalorder %s54, 0
      %p509 = por %p507, %p508
      %p510 = scmp.ne.s32.totalorder %s502, %s504
      %p511 = scmp.eq.s32.totalorder %s59, 1
      %p512 = por %p510, %p511
      %p513 = scmp.ne.s32.totalorder %s504, %s505
      %p514 = scmp.eq.s32.totalorder %s59, 0
      %p515 = por %p513, %p514
      %p516 = scmp.ne.s32.totalorder %s504, %s505
      %p517 = scmp.eq.s32.totalorder %s60, 1
      %p518 = por %p516, %p517
      %p520 = scmp.ne.s32.totalorder %s505, %s519
      %p521 = scmp.eq.s32.totalorder %s60, 0
      %p522 = por %p520, %p521
      %s524 = sadd.s32 %s523, 1
      %p527 = scmp.eq.s32.totalorder %s54, 1
      %p528 = scmp.ne.s32.totalorder %s523, %s525
      %p529 = scmp.eq.s32.totalorder %s54, 0
      %p530 = por %p528, %p529
      %p531 = scmp.ne.s32.totalorder %s523, %s525
      %p532 = scmp.eq.s32.totalorder %s59, 1
      %p533 = por %p531, %p532
      %p534 = scmp.ne.s32.totalorder %s525, %s526
      %p535 = scmp.eq.s32.totalorder %s59, 0
      %p536 = por %p534, %p535
      %p537 = scmp.ne.s32.totalorder %s525, %s526
      %p538 = scmp.eq.s32.totalorder %s60, 1
      %p539 = por %p537, %p538
      %p541 = scmp.ne.s32.totalorder %s526, %s540
      %p542 = scmp.eq.s32.totalorder %s60, 0
      %p543 = por %p541, %p542
      %s545 = sadd.s32 %s544, 1
      %p548 = scmp.eq.s32.totalorder %s54, 1
      %p549 = scmp.ne.s32.totalorder %s544, %s546
      %p550 = scmp.eq.s32.totalorder %s54, 0
      %p551 = por %p549, %p550
      %p552 = scmp.ne.s32.totalorder %s544, %s546
      %p553 = scmp.eq.s32.totalorder %s59, 1
      %p554 = por %p552, %p553
      %p555 = scmp.ne.s32.totalorder %s546, %s547
      %p556 = scmp.eq.s32.totalorder %s59, 0
      %p557 = por %p555, %p556
      %p558 = scmp.ne.s32.totalorder %s546, %s547
      %p559 = scmp.eq.s32.totalorder %s60, 1
      %p560 = por %p558, %p559
      %p562 = scmp.ne.s32.totalorder %s547, %s561
      %p563 = scmp.eq.s32.totalorder %s60, 0
      %p564 = por %p562, %p563
      %s566 = sadd.s32 %s565, 1
      %p569 = scmp.eq.s32.totalorder %s54, 1
      %p570 = scmp.ne.s32.totalorder %s565, %s567
      %p571 = scmp.eq.s32.totalorder %s54, 0
      %p572 = por %p570, %p571
      %p573 = scmp.ne.s32.totalorder %s565, %s567
      %p574 = scmp.eq.s32.totalorder %s59, 1
      %p575 = por %p573, %p574
      %p576 = scmp.ne.s32.totalorder %s567, %s568
      %p577 = scmp.eq.s32.totalorder %s59, 0
      %p578 = por %p576, %p577
      %p579 = scmp.ne.s32.totalorder %s567, %s568
      %p580 = scmp.eq.s32.totalorder %s60, 1
      %p581 = por %p579, %p580
      %p583 = scmp.ne.s32.totalorder %s568, %s582
      %p584 = scmp.eq.s32.totalorder %s60, 0
      %p585 = por %p583, %p584
      %s587 = sadd.s32 %s586, 1
      %p590 = scmp.eq.s32.totalorder %s54, 1
      %p591 = scmp.ne.s32.totalorder %s586, %s588
      %p592 = scmp.eq.s32.totalorder %s54, 0
      %p593 = por %p591, %p592
      %p594 = scmp.ne.s32.totalorder %s586, %s588
      %p595 = scmp.eq.s32.totalorder %s59, 1
      %p596 = por %p594, %p595
      %p597 = scmp.ne.s32.totalorder %s588, %s589
      %p598 = scmp.eq.s32.totalorder %s59, 0
      %p599 = por %p597, %p598
      %p600 = scmp.ne.s32.totalorder %s588, %s589
      %p601 = scmp.eq.s32.totalorder %s60, 1
      %p602 = por %p600, %p601
      %p604 = scmp.ne.s32.totalorder %s589, %s603
      %p605 = scmp.eq.s32.totalorder %s60, 0
      %p606 = por %p604, %p605
      %s608 = sadd.s32 %s607, 1
      %p611 = scmp.eq.s32.totalorder %s54, 1
      %p612 = scmp.ne.s32.totalorder %s607, %s609
      %p613 = scmp.eq.s32.totalorder %s54, 0
      %p614 = por %p612, %p613
      %p615 = scmp.ne.s32.totalorder %s607, %s609
      %p616 = scmp.eq.s32.totalorder %s59, 1
      %p617 = por %p615, %p616
      %p618 = scmp.ne.s32.totalorder %s609, %s610
      %p619 = scmp.eq.s32.totalorder %s59, 0
      %p620 = por %p618, %p619
      %p621 = scmp.ne.s32.totalorder %s609, %s610
      %p622 = scmp.eq.s32.totalorder %s60, 1
      %p623 = por %p621, %p622
      %p625 = scmp.ne.s32.totalorder %s610, %s624
      %p626 = scmp.eq.s32.totalorder %s60, 0
      %p627 = por %p625, %p626
      %s628 = ssub.s32 %s54, %s61
      %p629 = scmp.eq.s32.totalorder %s628, 0
      %s631 = sadd.s32 %s630, 1
      %s632 = scalar_select %p629, %s630, %s631
      %p635 = pneg %p629
      %p636 = scmp.eq.s32.totalorder %s54, 1
      %p637 = por %p635, %p636
      %p638 = scmp.ne.s32.totalorder %s630, %s633
      %p639 = scmp.eq.s32.totalorder %s54, 0
      %p640 = por %p638, %p639
      %p641 = scmp.ne.s32.totalorder %s630, %s633
      %p642 = scmp.eq.s32.totalorder %s59, 1
      %p643 = por %p641, %p642
      %p644 = scmp.ne.s32.totalorder %s633, %s634
      %p645 = scmp.eq.s32.totalorder %s59, 0
      %p646 = por %p644, %p645
      %p647 = scmp.ne.s32.totalorder %s633, %s634
      %p648 = scmp.eq.s32.totalorder %s60, 1
      %p649 = por %p647, %p648
      %p651 = scmp.ne.s32.totalorder %s634, %s650
      %p652 = scmp.eq.s32.totalorder %s60, 0
      %p653 = por %p651, %p652
      %s654 = ssub.s32 %s54, %s61
      %p655 = scmp.eq.s32.totalorder %s654, 0
      %s657 = sadd.s32 %s656, 1
      %s658 = scalar_select %p655, %s656, %s657
      %p661 = pneg %p655
      %p662 = scmp.eq.s32.totalorder %s54, 1
      %p663 = por %p661, %p662
      %p664 = scmp.ne.s32.totalorder %s656, %s659
      %p665 = scmp.eq.s32.totalorder %s54, 0
      %p666 = por %p664, %p665
      %p667 = scmp.ne.s32.totalorder %s656, %s659
      %p668 = scmp.eq.s32.totalorder %s59, 1
      %p669 = por %p667, %p668
      %p670 = scmp.ne.s32.totalorder %s659, %s660
      %p671 = scmp.eq.s32.totalorder %s59, 0
      %p672 = por %p670, %p671
      %p673 = scmp.ne.s32.totalorder %s659, %s660
      %p674 = scmp.eq.s32.totalorder %s60, 1
      %p675 = por %p673, %p674
      %p677 = scmp.ne.s32.totalorder %s660, %s676
      %p678 = scmp.eq.s32.totalorder %s60, 0
      %p679 = por %p677, %p678
      %p680 = scmp.le.s32.totalorder 1, %s54
      %p681 = scmp.lt.s32.totalorder %s54, 3
      %p682 = pnand %p680, %p681
      %p683 = pneg %p682
      // Predicated region
      $region9: #{transformer_layer_fused.1} parent=5 // pred_check
        _
      $region10: #{transformer_layer_fused.1} parent=5 // pred_check_branch
        %685 = sbr.rel (%p682) target = $region12
      $region11: #{transformer_layer_fused.1} parent=5 // pred_region
        %s686 = ssub.s32 %s54, 1
        // Predicated region
        $region13: #{transformer_layer_fused.1} parent=11 // pred_check
          %p687 = pneg %p179
        $region14: #{transformer_layer_fused.1} parent=11 // pred_check_branch
          %689 = sbr.rel (%p687) target = $region16
        $region15: #{transformer_layer_fused.1} parent=11 // pred_region
          _
        $region16: #{transformer_layer_fused.1} parent=11 // pred_fallthru
          _
        // Predicated region
        $region17: #{transformer_layer_fused.1} parent=11 // pred_check
          %p690 = pneg %p200
        $region18: #{transformer_layer_fused.1} parent=11 // pred_check_branch
          %692 = sbr.rel (%p690) target = $region20
        $region19: #{transformer_layer_fused.1} parent=11 // pred_region
          %s694 = ssub.s32 32, 32
          %695 = vsyncadd [#allocation6], %s694
          %s697 = sshll.u32 [#allocation7], 4
          %s698 = int_to_ptr.vmem [resolvable:$true] %s697
          %700 = dma.hbm_to_vmem [thread:$0]  %s5, 32, %s698, [#allocation6]
        $region20: #{transformer_layer_fused.1} parent=11 // pred_fallthru
          _
        // Predicated region
        $region21: #{transformer_layer_fused.1} parent=11 // pred_check
          %p701 = pneg %p221
        $region22: #{transformer_layer_fused.1} parent=11 // pred_check_branch
          %703 = sbr.rel (%p701) target = $region24
        $region23: #{transformer_layer_fused.1} parent=11 // pred_region
          %s705 = ssub.s32 512, 512
          %706 = vsyncadd [#allocation9], %s705
          %s707 = sshll.u32 [#allocation8], 4
          %s708 = int_to_ptr.vmem [resolvable:$true] %s707
          %713 = dma.hbm_to_vmem [thread:$0]  %s6, 512, %s708, [#allocation9], 128, 128, 8
        $region24: #{transformer_layer_fused.1} parent=11 // pred_fallthru
          _
        // Predicated region
        $region25: #{transformer_layer_fused.1} parent=11 // pred_check
          %p714 = pneg %p242
        $region26: #{transformer_layer_fused.1} parent=11 // pred_check_branch
          %716 = sbr.rel (%p714) target = $region28
        $region27: #{transformer_layer_fused.1} parent=11 // pred_region
          %s718 = ssub.s32 16, 16
          %719 = vsyncadd [#allocation9], %s718
          %s721 = sshll.u32 [#allocation10], 4
          %s722 = int_to_ptr.vmem [resolvable:$true] %s721
          %724 = dma.hbm_to_vmem [thread:$0]  %s7, 16, %s722, [#allocation9]
        $region28: #{transformer_layer_fused.1} parent=11 // pred_fallthru
          _
        // Predicated region
        $region29: #{transformer_layer_fused.1} parent=11 // pred_check
          %p725 = pneg %p263
        $region30: #{transformer_layer_fused.1} parent=11 // pred_check_branch
          %727 = sbr.rel (%p725) target = $region32
        $region31: #{transformer_layer_fused.1} parent=11 // pred_region
          %s729 = ssub.s32 512, 512
          %730 = vsyncadd [#allocation12], %s729
          %s731 = sshll.u32 [#allocation11], 4
          %s732 = int_to_ptr.vmem [resolvable:$true] %s731
          %737 = dma.hbm_to_vmem [thread:$0]  %s8, 512, %s732, [#allocation12], 128, 128, 8
        $region32: #{transformer_layer_fused.1} parent=11 // pred_fallthru
          _
        // Predicated region
        $region33: #{transformer_layer_fused.1} parent=11 // pred_check
          %p738 = pneg %p284
        $region34: #{transformer_layer_fused.1} parent=11 // pred_check_branch
          %740 = sbr.rel (%p738) target = $region36
        $region35: #{transformer_layer_fused.1} parent=11 // pred_region
          %s742 = ssub.s32 512, 512
          %743 = vsyncadd [#allocation12], %s742
          %s744 = sshll.u32 [#allocation13], 4
          %s745 = int_to_ptr.vmem [resolvable:$true] %s744
          %750 = dma.hbm_to_vmem [thread:$0]  %s9, 512, %s745, [#allocation12], 128, 128, 8
        $region36: #{transformer_layer_fused.1} parent=11 // pred_fallthru
          _
        // Predicated region
        $region37: #{transformer_layer_fused.1} parent=11 // pred_check
          %p751 = pneg %p305
        $region38: #{transformer_layer_fused.1} parent=11 // pred_check_branch
          %753 = sbr.rel (%p751) target = $region40
        $region39: #{transformer_layer_fused.1} parent=11 // pred_region
          %s755 = ssub.s32 16, 16
          %756 = vsyncadd [#allocation15], %s755
          %s758 = sshll.u32 [#allocation14], 4
          %s759 = int_to_ptr.vmem [resolvable:$true] %s758
          %761 = dma.hbm_to_vmem [thread:$0]  %s10, 16, %s759, [#allocation15]
        $region40: #{transformer_layer_fused.1} parent=11 // pred_fallthru
          _
        // Predicated region
        $region41: #{transformer_layer_fused.1} parent=11 // pred_check
          %p762 = pneg %p326
        $region42: #{transformer_layer_fused.1} parent=11 // pred_check_branch
          %764 = sbr.rel (%p762) target = $region44
        $region43: #{transformer_layer_fused.1} parent=11 // pred_region
          %s766 = ssub.s32 16, 16
          %767 = vsyncadd [#allocation15], %s766
          %s769 = sshll.u32 [#allocation16], 4
          %s770 = int_to_ptr.vmem [resolvable:$true] %s769
          %772 = dma.hbm_to_vmem [thread:$0]  %s11, 16, %s770, [#allocation15]
        $region44: #{transformer_layer_fused.1} parent=11 // pred_fallthru
          _
        // Predicated region
        $region45: #{transformer_layer_fused.1} parent=11 // pred_check
          %p773 = pneg %p347
        $region46: #{transformer_layer_fused.1} parent=11 // pred_check_branch
          %775 = sbr.rel (%p773) target = $region48
        $region47: #{transformer_layer_fused.1} parent=11 // pred_region
          %s777 = ssub.s32 16, 16
          %778 = vsyncadd [#allocation18], %s777
          %s780 = sshll.u32 [#allocation17], 4
          %s781 = int_to_ptr.vmem [resolvable:$true] %s780
          %783 = dma.hbm_to_vmem [thread:$0]  %s12, 16, %s781, [#allocation18]
        $region48: #{transformer_layer_fused.1} parent=11 // pred_fallthru
          _
        // Predicated region
        $region49: #{transformer_layer_fused.1} parent=11 // pred_check
          %p784 = pneg %p368
        $region50: #{transformer_layer_fused.1} parent=11 // pred_check_branch
          %786 = sbr.rel (%p784) target = $region52
        $region51: #{transformer_layer_fused.1} parent=11 // pred_region
          _
        $region52: #{transformer_layer_fused.1} parent=11 // pred_fallthru
          _
        // Predicated region
        $region53: #{transformer_layer_fused.1} parent=11 // pred_check
          %p787 = pneg %p389
        $region54: #{transformer_layer_fused.1} parent=11 // pred_check_branch
          %789 = sbr.rel (%p787) target = $region56
        $region55: #{transformer_layer_fused.1} parent=11 // pred_region
          %s791 = ssub.s32 16, 16
          %792 = vsyncadd [#allocation18], %s791
          %s794 = sshll.u32 [#allocation19], 4
          %s795 = int_to_ptr.vmem [resolvable:$true] %s794
          %797 = dma.hbm_to_vmem [thread:$0]  %s14, 16, %s795, [#allocation18]
        $region56: #{transformer_layer_fused.1} parent=11 // pred_fallthru
          _
        // Predicated region
        $region57: #{transformer_layer_fused.1} parent=11 // pred_check
          %p798 = pneg %p410
        $region58: #{transformer_layer_fused.1} parent=11 // pred_check_branch
          %800 = sbr.rel (%p798) target = $region60
        $region59: #{transformer_layer_fused.1} parent=11 // pred_region
          %s802 = ssub.s32 512, 512
          %803 = vsyncadd [#allocation21], %s802
          %s804 = sshll.u32 [#allocation20], 4
          %s805 = int_to_ptr.vmem [resolvable:$true] %s804
          %810 = dma.hbm_to_vmem [thread:$0]  %s15, 512, %s805, [#allocation21], 128, 128, 8
        $region60: #{transformer_layer_fused.1} parent=11 // pred_fallthru
          _
        // Predicated region
        $region61: #{transformer_layer_fused.1} parent=11 // pred_check
          %p811 = pneg %p431
        $region62: #{transformer_layer_fused.1} parent=11 // pred_check_branch
          %813 = sbr.rel (%p811) target = $region64
        $region63: #{transformer_layer_fused.1} parent=11 // pred_region
          _
        $region64: #{transformer_layer_fused.1} parent=11 // pred_fallthru
          _
        // Predicated region
        $region65: #{transformer_layer_fused.1} parent=11 // pred_check
          %p814 = pneg %p452
        $region66: #{transformer_layer_fused.1} parent=11 // pred_check_branch
          %816 = sbr.rel (%p814) target = $region68
        $region67: #{transformer_layer_fused.1} parent=11 // pred_region
          %s818 = ssub.s32 512, 512
          %819 = vsyncadd [#allocation21], %s818
          %s820 = sshll.u32 [#allocation22], 4
          %s821 = int_to_ptr.vmem [resolvable:$true] %s820
          %826 = dma.hbm_to_vmem [thread:$0]  %s17, 512, %s821, [#allocation21], 128, 128, 8
        $region68: #{transformer_layer_fused.1} parent=11 // pred_fallthru
          _
        // Predicated region
        $region69: #{transformer_layer_fused.1} parent=11 // pred_check
          %p827 = pneg %p473
        $region70: #{transformer_layer_fused.1} parent=11 // pred_check_branch
          %829 = sbr.rel (%p827) target = $region72
        $region71: #{transformer_layer_fused.1} parent=11 // pred_region
          _
        $region72: #{transformer_layer_fused.1} parent=11 // pred_fallthru
          _
        // Predicated region
        $region73: #{transformer_layer_fused.1} parent=11 // pred_check
          %p830 = pneg %p494
        $region74: #{transformer_layer_fused.1} parent=11 // pred_check_branch
          %832 = sbr.rel (%p830) target = $region76
        $region75: #{transformer_layer_fused.1} parent=11 // pred_region
          %s834 = ssub.s32 512, 512
          %835 = vsyncadd [#allocation24], %s834
          %s836 = sshll.u32 [#allocation23], 4
          %s837 = int_to_ptr.vmem [resolvable:$true] %s836
          %842 = dma.hbm_to_vmem [thread:$0]  %s19, 512, %s837, [#allocation24], 128, 128, 8
        $region76: #{transformer_layer_fused.1} parent=11 // pred_fallthru
          _
        // Predicated region
        $region77: #{transformer_layer_fused.1} parent=11 // pred_check
          %p843 = pneg %p515
        $region78: #{transformer_layer_fused.1} parent=11 // pred_check_branch
          %845 = sbr.rel (%p843) target = $region80
        $region79: #{transformer_layer_fused.1} parent=11 // pred_region
          %s847 = ssub.s32 512, 512
          %848 = vsyncadd [#allocation24], %s847
          %s849 = sshll.u32 [#allocation25], 4
          %s850 = int_to_ptr.vmem [resolvable:$true] %s849
          %855 = dma.hbm_to_vmem [thread:$0]  %s20, 512, %s850, [#allocation24], 128, 128, 8
        $region80: #{transformer_layer_fused.1} parent=11 // pred_fallthru
          _
        // Predicated region
        $region81: #{transformer_layer_fused.1} parent=11 // pred_check
          %p856 = pneg %p536
        $region82: #{transformer_layer_fused.1} parent=11 // pred_check_branch
          %858 = sbr.rel (%p856) target = $region84
        $region83: #{transformer_layer_fused.1} parent=11 // pred_region
          %s860 = ssub.s32 16, 16
          %861 = vsyncadd [#allocation27], %s860
          %s863 = sshll.u32 [#allocation26], 4
          %s864 = int_to_ptr.vmem [resolvable:$true] %s863
          %866 = dma.hbm_to_vmem [thread:$0]  %s21, 16, %s864, [#allocation27]
        $region84: #{transformer_layer_fused.1} parent=11 // pred_fallthru
          _
        // Predicated region
        $region85: #{transformer_layer_fused.1} parent=11 // pred_check
          %p867 = pneg %p557
        $region86: #{transformer_layer_fused.1} parent=11 // pred_check_branch
          %869 = sbr.rel (%p867) target = $region88
        $region87: #{transformer_layer_fused.1} parent=11 // pred_region
          _
        $region88: #{transformer_layer_fused.1} parent=11 // pred_fallthru
          _
        // Predicated region
        $region89: #{transformer_layer_fused.1} parent=11 // pred_check
          %p870 = pneg %p578
        $region90: #{transformer_layer_fused.1} parent=11 // pred_check_branch
          %872 = sbr.rel (%p870) target = $region92
        $region91: #{transformer_layer_fused.1} parent=11 // pred_region
          %s874 = ssub.s32 16, 16
          %875 = vsyncadd [#allocation27], %s874
          %s877 = sshll.u32 [#allocation28], 4
          %s878 = int_to_ptr.vmem [resolvable:$true] %s877
          %880 = dma.hbm_to_vmem [thread:$0]  %s23, 16, %s878, [#allocation27]
        $region92: #{transformer_layer_fused.1} parent=11 // pred_fallthru
          _
        // Predicated region
        $region93: #{transformer_layer_fused.1} parent=11 // pred_check
          %p881 = pneg %p599
        $region94: #{transformer_layer_fused.1} parent=11 // pred_check_branch
          %883 = sbr.rel (%p881) target = $region96
        $region95: #{transformer_layer_fused.1} parent=11 // pred_region
          _
        $region96: #{transformer_layer_fused.1} parent=11 // pred_fallthru
          _
        // Predicated region
        $region97: #{transformer_layer_fused.1} parent=11 // pred_check
          %p884 = pneg %p620
        $region98: #{transformer_layer_fused.1} parent=11 // pred_check_branch
          %886 = sbr.rel (%p884) target = $region100
        $region99: #{transformer_layer_fused.1} parent=11 // pred_region
          %s888 = ssub.s32 16, 16
          %889 = vsyncadd [#allocation30], %s888
          %s891 = sshll.u32 [#allocation29], 4
          %s892 = int_to_ptr.vmem [resolvable:$true] %s891
          %894 = dma.hbm_to_vmem [thread:$0]  %s25, 16, %s892, [#allocation30]
        $region100: #{transformer_layer_fused.1} parent=11 // pred_fallthru
          _
      $region12: #{transformer_layer_fused.1} parent=5 // pred_fallthru
        _
      %p895 = scmp.lt.s32.totalorder %s54, 2
      // Predicated region
      $region101: #{transformer_layer_fused.1} parent=5 // pred_check
        %p896 = pneg %p895
      $region102: #{transformer_layer_fused.1} parent=5 // pred_check_branch
        %898 = sbr.rel (%p896) target = $region104
      $region103: #{transformer_layer_fused.1} parent=5 // pred_region
        // Predicated region
        $region105: #{transformer_layer_fused.1} parent=103 // pred_check
          %p899 = pneg %p74
        $region106: #{transformer_layer_fused.1} parent=103 // pred_check_branch
          %901 = sbr.rel (%p899) target = $region108
        $region107: #{transformer_layer_fused.1} parent=103 // pred_region
          %s902 = sand.u32 %s64, 1
          %s903 = scalar_lea.sflag [#allocation3], %s902
          %s904 = sand.u32 %s64, 1
          %s905 = smul.addr %s904, 16
          %s906 = scalar_lea.vmem [#allocation2], %s905
          %s908 = ssub.s32 256, 256
          %909 = vsyncadd %s903, %s908
          %s910 = smul.addr %s54, 2
          %s911 = smul.addr %s910, 128
          %s912 = scalar_lea.hbm %s0, %s911
          %s913 = sshll.u32 %s906, 4
          %s914 = int_to_ptr.vmem [resolvable:$true] %s913
          %919 = dma.hbm_to_vmem [thread:$0]  %s912, 256, %s914, %s903, 128, 128, 8
        $region108: #{transformer_layer_fused.1} parent=103 // pred_fallthru
          _
        // Predicated region
        $region109: #{transformer_layer_fused.1} parent=103 // pred_check
          %p920 = pneg %p100
        $region110: #{transformer_layer_fused.1} parent=103 // pred_check_branch
          %922 = sbr.rel (%p920) target = $region112
        $region111: #{transformer_layer_fused.1} parent=103 // pred_region
          %s923 = sand.u32 %s54, 1
          %s924 = scalar_lea.sflag [#allocation6], %s923
          %s925 = sand.u32 %s90, 1
          %s926 = smul.addr %s925, 16
          %s927 = scalar_lea.vmem [#allocation5], %s926
          %s929 = ssub.s32 256, 256
          %930 = vsyncadd %s924, %s929
          %s931 = smul.addr %s54, 2
          %s932 = smul.addr %s931, 128
          %s933 = scalar_lea.hbm %s1, %s932
          %s934 = sshll.u32 %s927, 4
          %s935 = int_to_ptr.vmem [resolvable:$true] %s934
          %940 = dma.hbm_to_vmem [thread:$0]  %s933, 256, %s935, %s924, 128, 128, 8
        $region112: #{transformer_layer_fused.1} parent=103 // pred_fallthru
          _
        // Predicated region
        $region113: #{transformer_layer_fused.1} parent=103 // pred_check
          %p941 = pneg %p126
        $region114: #{transformer_layer_fused.1} parent=103 // pred_check_branch
          %943 = sbr.rel (%p941) target = $region116
        $region115: #{transformer_layer_fused.1} parent=103 // pred_region
          %p944 = scmp.lt.s32.totalorder %s54, 1
          %s945 = scalar_select %p944, %s54, 1
          %s946 = smul.addr %s945, 4
          %s947 = smul.addr %s946, 8
          %s948 = scalar_lea.vmem %s2, %s947
        $region116: #{transformer_layer_fused.1} parent=103 // pred_fallthru
          _
        // Predicated region
        $region117: #{transformer_layer_fused.1} parent=103 // pred_check
          %p949 = pneg %p152
        $region118: #{transformer_layer_fused.1} parent=103 // pred_check_branch
          %951 = sbr.rel (%p949) target = $region120
        $region119: #{transformer_layer_fused.1} parent=103 // pred_region
          %p952 = scmp.lt.s32.totalorder %s54, 1
          %s953 = scalar_select %p952, %s54, 1
          %s954 = smul.addr %s953, 4
          %s955 = smul.addr %s954, 8
          %s956 = scalar_lea.vmem %s3, %s955
        $region120: #{transformer_layer_fused.1} parent=103 // pred_fallthru
          _
      $region104: #{transformer_layer_fused.1} parent=5 // pred_fallthru
        _
      %p957 = scmp.le.s32.totalorder 1, %s54
      %p958 = scmp.lt.s32.totalorder %s54, 3
      %p959 = pnand %p957, %p958
      %p960 = pneg %p959
      // Predicated region
      $region121: #{transformer_layer_fused.1} parent=5 // pred_check
        _
      $region122: #{transformer_layer_fused.1} parent=5 // pred_check_branch
        %962 = sbr.rel (%p959) target = $region124
      $region123: #{transformer_layer_fused.1} parent=5 // pred_region
        %s963 = ssub.s32 %s54, 1
        %s964 = sand.u32 %s67, 1
        %s965 = scalar_lea.sflag [#allocation3], %s964
        %s966 = sand.u32 %s67, 1
        %s967 = smul.addr %s966, 16
        %s968 = scalar_lea.vmem [#allocation2], %s967
        // Predicated region
        $region125: #{transformer_layer_fused.1} parent=123 // pred_check
          %p969 = pneg %p80
        $region126: #{transformer_layer_fused.1} parent=123 // pred_check_branch
          %971 = sbr.rel (%p969) target = $region128
        $region127: #{transformer_layer_fused.1} parent=123 // pred_region
          %972 = dma.done %s965, 256
        $region128: #{transformer_layer_fused.1} parent=123 // pred_fallthru
          _
        %s973 = sand.u32 %s59, 1
        %s974 = scalar_lea.sflag [#allocation6], %s973
        %s975 = sand.u32 %s93, 1
        %s976 = smul.addr %s975, 16
        %s977 = scalar_lea.vmem [#allocation5], %s976
        // Predicated region
        $region129: #{transformer_layer_fused.1} parent=123 // pred_check
          %p978 = pneg %p106
        $region130: #{transformer_layer_fused.1} parent=123 // pred_check_branch
          %980 = sbr.rel (%p978) target = $region132
        $region131: #{transformer_layer_fused.1} parent=123 // pred_region
          %981 = dma.done %s974, 256
        $region132: #{transformer_layer_fused.1} parent=123 // pred_fallthru
          _
        // Predicated region
        $region133: #{transformer_layer_fused.1} parent=123 // pred_check
          %p982 = pneg %p200
        $region134: #{transformer_layer_fused.1} parent=123 // pred_check_branch
          %984 = sbr.rel (%p982) target = $region136
        $region135: #{transformer_layer_fused.1} parent=123 // pred_region
          %985 = dma.done [#allocation6], 32
        $region136: #{transformer_layer_fused.1} parent=123 // pred_fallthru
          _
        // Predicated region
        $region137: #{transformer_layer_fused.1} parent=123 // pred_check
          %p986 = pneg %p221
        $region138: #{transformer_layer_fused.1} parent=123 // pred_check_branch
          %988 = sbr.rel (%p986) target = $region140
        $region139: #{transformer_layer_fused.1} parent=123 // pred_region
          %989 = dma.done [#allocation9], 512
        $region140: #{transformer_layer_fused.1} parent=123 // pred_fallthru
          _
        // Predicated region
        $region141: #{transformer_layer_fused.1} parent=123 // pred_check
          %p990 = pneg %p242
        $region142: #{transformer_layer_fused.1} parent=123 // pred_check_branch
          %992 = sbr.rel (%p990) target = $region144
        $region143: #{transformer_layer_fused.1} parent=123 // pred_region
          %993 = dma.done [#allocation9], 16
        $region144: #{transformer_layer_fused.1} parent=123 // pred_fallthru
          _
        // Predicated region
        $region145: #{transformer_layer_fused.1} parent=123 // pred_check
          %p994 = pneg %p263
        $region146: #{transformer_layer_fused.1} parent=123 // pred_check_branch
          %996 = sbr.rel (%p994) target = $region148
        $region147: #{transformer_layer_fused.1} parent=123 // pred_region
          %997 = dma.done [#allocation12], 512
        $region148: #{transformer_layer_fused.1} parent=123 // pred_fallthru
          _
        // Predicated region
        $region149: #{transformer_layer_fused.1} parent=123 // pred_check
          %p998 = pneg %p284
        $region150: #{transformer_layer_fused.1} parent=123 // pred_check_branch
          %1000 = sbr.rel (%p998) target = $region152
        $region151: #{transformer_layer_fused.1} parent=123 // pred_region
          %1001 = dma.done [#allocation12], 512
        $region152: #{transformer_layer_fused.1} parent=123 // pred_fallthru
          _
        // Predicated region
        $region153: #{transformer_layer_fused.1} parent=123 // pred_check
          %p1002 = pneg %p305
        $region154: #{transformer_layer_fused.1} parent=123 // pred_check_branch
          %1004 = sbr.rel (%p1002) target = $region156
        $region155: #{transformer_layer_fused.1} parent=123 // pred_region
          %1005 = dma.done [#allocation15], 16
        $region156: #{transformer_layer_fused.1} parent=123 // pred_fallthru
          _
        // Predicated region
        $region157: #{transformer_layer_fused.1} parent=123 // pred_check
          %p1006 = pneg %p326
        $region158: #{transformer_layer_fused.1} parent=123 // pred_check_branch
          %1008 = sbr.rel (%p1006) target = $region160
        $region159: #{transformer_layer_fused.1} parent=123 // pred_region
          %1009 = dma.done [#allocation15], 16
        $region160: #{transformer_layer_fused.1} parent=123 // pred_fallthru
          _
        // Predicated region
        $region161: #{transformer_layer_fused.1} parent=123 // pred_check
          %p1010 = pneg %p347
        $region162: #{transformer_layer_fused.1} parent=123 // pred_check_branch
          %1012 = sbr.rel (%p1010) target = $region164
        $region163: #{transformer_layer_fused.1} parent=123 // pred_region
          %1013 = dma.done [#allocation18], 16
        $region164: #{transformer_layer_fused.1} parent=123 // pred_fallthru
          _
        // Predicated region
        $region165: #{transformer_layer_fused.1} parent=123 // pred_check
          %p1014 = pneg %p389
        $region166: #{transformer_layer_fused.1} parent=123 // pred_check_branch
          %1016 = sbr.rel (%p1014) target = $region168
        $region167: #{transformer_layer_fused.1} parent=123 // pred_region
          %1017 = dma.done [#allocation18], 16
        $region168: #{transformer_layer_fused.1} parent=123 // pred_fallthru
          _
        // Predicated region
        $region169: #{transformer_layer_fused.1} parent=123 // pred_check
          %p1018 = pneg %p410
        $region170: #{transformer_layer_fused.1} parent=123 // pred_check_branch
          %1020 = sbr.rel (%p1018) target = $region172
        $region171: #{transformer_layer_fused.1} parent=123 // pred_region
          %1021 = dma.done [#allocation21], 512
        $region172: #{transformer_layer_fused.1} parent=123 // pred_fallthru
          _
        // Predicated region
        $region173: #{transformer_layer_fused.1} parent=123 // pred_check
          %p1022 = pneg %p452
        $region174: #{transformer_layer_fused.1} parent=123 // pred_check_branch
          %1024 = sbr.rel (%p1022) target = $region176
        $region175: #{transformer_layer_fused.1} parent=123 // pred_region
          %1025 = dma.done [#allocation21], 512
        $region176: #{transformer_layer_fused.1} parent=123 // pred_fallthru
          _
        // Predicated region
        $region177: #{transformer_layer_fused.1} parent=123 // pred_check
          %p1026 = pneg %p494
        $region178: #{transformer_layer_fused.1} parent=123 // pred_check_branch
          %1028 = sbr.rel (%p1026) target = $region180
        $region179: #{transformer_layer_fused.1} parent=123 // pred_region
          %1029 = dma.done [#allocation24], 512
        $region180: #{transformer_layer_fused.1} parent=123 // pred_fallthru
          _
        // Predicated region
        $region181: #{transformer_layer_fused.1} parent=123 // pred_check
          %p1030 = pneg %p515
        $region182: #{transformer_layer_fused.1} parent=123 // pred_check_branch
          %1032 = sbr.rel (%p1030) target = $region184
        $region183: #{transformer_layer_fused.1} parent=123 // pred_region
          %1033 = dma.done [#allocation24], 512
        $region184: #{transformer_layer_fused.1} parent=123 // pred_fallthru
          _
        // Predicated region
        $region185: #{transformer_layer_fused.1} parent=123 // pred_check
          %p1034 = pneg %p536
        $region186: #{transformer_layer_fused.1} parent=123 // pred_check_branch
          %1036 = sbr.rel (%p1034) target = $region188
        $region187: #{transformer_layer_fused.1} parent=123 // pred_region
          %1037 = dma.done [#allocation27], 16
        $region188: #{transformer_layer_fused.1} parent=123 // pred_fallthru
          _
        // Predicated region
        $region189: #{transformer_layer_fused.1} parent=123 // pred_check
          %p1038 = pneg %p578
        $region190: #{transformer_layer_fused.1} parent=123 // pred_check_branch
          %1040 = sbr.rel (%p1038) target = $region192
        $region191: #{transformer_layer_fused.1} parent=123 // pred_region
          %1041 = dma.done [#allocation27], 16
        $region192: #{transformer_layer_fused.1} parent=123 // pred_fallthru
          _
        // Predicated region
        $region193: #{transformer_layer_fused.1} parent=123 // pred_check
          %p1042 = pneg %p620
        $region194: #{transformer_layer_fused.1} parent=123 // pred_check_branch
          %1044 = sbr.rel (%p1042) target = $region196
        $region195: #{transformer_layer_fused.1} parent=123 // pred_region
          %1045 = dma.done [#allocation30], 16
        $region196: #{transformer_layer_fused.1} parent=123 // pred_fallthru
          _
        %s1046 = sand.u32 %s67, 1
        %s1047 = scalar_lea.sflag [#allocation3], %s1046
        %s1048 = sand.u32 %s67, 1
        %s1049 = smul.addr %s1048, 16
        %s1050 = scalar_lea.vmem [#allocation2], %s1049
        %p1051 = pneg %p80
        %p1052 = pneg %p77
        %s1053 = sand.u32 %s59, 1
        %s1054 = scalar_lea.sflag [#allocation6], %s1053
        %s1055 = sand.u32 %s93, 1
        %s1056 = smul.addr %s1055, 16
        %s1057 = scalar_lea.vmem [#allocation5], %s1056
        %p1058 = pneg %p106
        %p1059 = pneg %p103
        %p1060 = scmp.lt.s32.totalorder %s59, 1
        %s1061 = scalar_select %p1060, %s59, 1
        %s1062 = smul.addr %s1061, 4
        %s1063 = smul.addr %s1062, 8
        %s1064 = scalar_lea.vmem %s2, %s1063
        %p1065 = pneg %p132
        %p1066 = pneg %p129
        %p1067 = scmp.lt.s32.totalorder %s59, 1
        %s1068 = scalar_select %p1067, %s59, 1
        %s1069 = smul.addr %s1068, 4
        %s1070 = smul.addr %s1069, 8
        %s1071 = scalar_lea.vmem %s3, %s1070
        %p1072 = pneg %p158
        %p1073 = pneg %p155
        %p1074 = pneg %p179
        %p1075 = pneg %p176
        %p1076 = pneg %p200
        %p1077 = pneg %p197
        %p1078 = pneg %p221
        %p1079 = pneg %p218
        %p1080 = pneg %p242
        %p1081 = pneg %p239
        %p1082 = pneg %p263
        %p1083 = pneg %p260
        %p1084 = pneg %p284
        %p1085 = pneg %p281
        %p1086 = pneg %p305
        %p1087 = pneg %p302
        %p1088 = pneg %p326
        %p1089 = pneg %p323
        %p1090 = pneg %p347
        %p1091 = pneg %p344
        %p1092 = pneg %p368
        %p1093 = pneg %p365
        %p1094 = pneg %p389
        %p1095 = pneg %p386
        %p1096 = pneg %p410
        %p1097 = pneg %p407
        %p1098 = pneg %p431
        %p1099 = pneg %p428
        %p1100 = pneg %p452
        %p1101 = pneg %p449
        %p1102 = pneg %p473
        %p1103 = pneg %p470
        %p1104 = pneg %p494
        %p1105 = pneg %p491
        %p1106 = pneg %p515
        %p1107 = pneg %p512
        %p1108 = pneg %p536
        %p1109 = pneg %p533
        %p1110 = pneg %p557
        %p1111 = pneg %p554
        %p1112 = pneg %p578
        %p1113 = pneg %p575
        %p1114 = pneg %p599
        %p1115 = pneg %p596
        %p1116 = pneg %p620
        %p1117 = pneg %p617
        %p1118 = pneg %p646
        %p1119 = pneg %p643
        %s1120 = sand.u32 %s633, 1
        %s1121 = scalar_lea.sflag [#allocation4], %s1120
        %s1122 = sand.u32 %s633, 1
        %s1123 = smul.addr %s1122, 16
        %s1124 = scalar_lea.vmem [#allocation31], %s1123
        %p1125 = pneg %p672
        %p1126 = pneg %p669
        %s1127 = sand.u32 %s659, 1
        %s1128 = scalar_lea.sflag [#allocation33], %s1127
        %s1129 = sand.u32 %s659, 1
        %s1130 = smul.addr %s1129, 16
        %s1131 = scalar_lea.vmem [#allocation32], %s1130
        %p1132 = scmp.lt.s32.totalorder %s59, 1
        %s1133 = scalar_select %p1132, %s59, 1
        %s1134 = smul.addr %s1133, 4
        %s1135 = smul.addr %s1134, 8
        %s1136 = scalar_lea.vmem %s2, %s1135
        %p1137 = scmp.lt.s32.totalorder %s59, 1
        %s1138 = scalar_select %p1137, %s59, 1
        %s1139 = smul.addr %s1138, 4
        %s1140 = smul.addr %s1139, 8
        %s1141 = scalar_lea.vmem %s3, %s1140
        %v1142 = vld [vmem:[%s968] sm:$0xff]
        %v1143 = vld [vmem:[%s968 + $0x8] sm:$0xff]
        %v1144 = vld [vmem:[%s977] sm:$0xff]
        %v1145 = vld [vmem:[%s977 + $0x8] sm:$0xff]
        %v1146 = vld [vmem:[%s1136] sm:$0xff]
        %v1147 = vld [vmem:[%s1136 + $0x8] sm:$0xff]
        %v1148 = vld [vmem:[%s1136 + $0x10] sm:$0xff]
        %v1149 = vld [vmem:[%s1136 + $0x18] sm:$0xff]
        %v1150 = vld [vmem:[%s1141] sm:$0xff]
        %v1151 = vld [vmem:[%s1141 + $0x8] sm:$0xff]
        %v1152 = vld [vmem:[%s1141 + $0x10] sm:$0xff]
        %v1153 = vld [vmem:[%s1141 + $0x18] sm:$0xff]
        %v1154 = vlaneseq
        %v1155 = vshrl.u32 %v1154, 7
        %v1156 = vadd.s32 %v1155, 8
        %v1157 = vadd.s32 %v1155, 16
        %v1158 = vadd.s32 %v1155, 24
        %vm1159 = vcmp.ge.s32.totalorder %v1155, 16
        %vm1160 = vcmp.ge.s32.totalorder %v1156, 16
        %vm1161 = vcmp.ge.s32.totalorder %v1157, 16
        %vm1162 = vcmp.ge.s32.totalorder %v1158, 16
        %v1163 = vlaneseq
        %v1164 = vand.u32 %v1163, 127
        %vm1165 = vcmp.ge.s32.totalorder %v1164, 16
        %vm1166 = vmxor %vm1159, %vm1165
        %vm1167 = vmxor %vm1160, %vm1165
        %vm1168 = vmxor %vm1161, %vm1165
        %vm1169 = vmxor %vm1162, %vm1165
        %vm1170 = vmxor %vm1166, 1
        %vm1171 = vmxor %vm1167, 1
        %vm1172 = vmxor %vm1168, 1
        %vm1173 = vmxor %vm1169, 1
        %v1174 = vsel %vm1170, 0.0, -1e+30
        %v1175 = vsel %vm1171, 0.0, -1e+30
        %v1176 = vsel %vm1172, 0.0, -1e+30
        %v1177 = vsel %vm1173, 0.0, -1e+30
        %v1178 = vsel %vm1170, -1e+30, 0.0
        %v1179 = vsel %vm1171, -1e+30, 0.0
        %v1180 = vsel %vm1172, -1e+30, 0.0
        %v1181 = vsel %vm1173, -1e+30, 0.0
        %v1182 = vld [vmem:[%s4] sm:$0xff]
        %v1183 = vld [vmem:[%s4 + $0x8] sm:$0xff]
        %v1184 = vld [vmem:[%s4 + $0x10] sm:$0xff]
        %v1185 = vld [vmem:[%s4 + $0x18] sm:$0xff]
        %v1186 = vld [vmem:[%s4 + $0x20] sm:$0xff]
        %v1187 = vld [vmem:[%s4 + $0x28] sm:$0xff]
        %v1188 = vld [vmem:[%s4 + $0x30] sm:$0xff]
        %v1189 = vld [vmem:[%s4 + $0x38] sm:$0xff]
        %v1190 = vld [vmem:[#allocation7] sm:$0x3]
        %v1192 = vlaneseq
        %v1193 = vshrl.u32 %v1192, 7
        %v1194 = vsub.s32 0, %v1193
        %v1195 = vrot.slane %v1190, %v1194
        %v1196 = vlaneseq
        %v1197 = vshrl.u32 %v1196, 7
        %v1198 = vsub.s32 1, %v1197
        %v1199 = vrot.slane %v1190, %v1198
        %vm1202 = vcmask 261120
        %v1204 = vsel %vm1202, %v1142, 0
        %v1207 = vsel %vm1202, %v1143, 0
        %v1210 = vsel %vm1202, %v1144, 0
        %v1213 = vsel %vm1202, %v1145, 0
        %1215 = vmatprep.subr.mxu0 %v1183
        %1216 = vmatpush1.msra.mxu0 %v1182
        %1217 = vmatprep.subr.mxu0 %v1185
        %1218 = vmatpush1.msra.mxu0 %v1184
        %1219 = vmatprep.subr.mxu0 %v1187
        %1220 = vmatpush1.msra.mxu0 %v1186
        %1221 = vmatprep.subr.mxu0 %v1189
        %1222 = vmatpush1.msra.mxu0 %v1188
        %1223 = vmatprep.subr.mxu0 0.0
        %1224 = vmatpush1.msra.mxu0 0.0
        %1225 = vmatprep.subr.mxu0 0.0
        %1226 = vmatpush1.msra.mxu0 0.0
        %1227 = vmatprep.subr.mxu0 0.0
        %1228 = vmatpush1.msra.mxu0 0.0
        %1229 = vmatprep.subr.mxu0 0.0
        %1230 = vmatpush1.msra.mxu0 0.0
        %1231 = vmatprep.subr.mxu0 0.0
        %1232 = vmatpush1.msra.mxu0 0.0
        %1233 = vmatprep.subr.mxu0 0.0
        %1234 = vmatpush1.msra.mxu0 0.0
        %1235 = vmatprep.subr.mxu0 0.0
        %1236 = vmatpush1.msra.mxu0 0.0
        %1237 = vmatprep.subr.mxu0 0.0
        %1238 = vmatpush1.msra.mxu0 0.0
        %1239 = vmatprep.subr.mxu0 0.0
        %1240 = vmatpush1.msra.mxu0 0.0
        %1241 = vmatprep.subr.mxu0 0.0
        %1242 = vmatpush1.msra.mxu0 0.0
        %1243 = vmatprep.subr.mxu0 0.0
        %1244 = vmatpush1.msra.mxu0 0.0
        %1245 = vmatprep.subr.mxu0 0.0
        %1246 = vmatpush1.msra.mxu0 0.0
        %1247 = vmatprep.subr.mxu0 0.0
        %1248 = vmatpush1.msra.mxu0 0.0
        %1249 = vmatprep.subr.mxu0 0.0
        %1250 = vmatpush1.msra.mxu0 0.0
        %1251 = vmatprep.subr.mxu0 0.0
        %1252 = vmatpush1.msra.mxu0 0.0
        %1253 = vmatprep.subr.mxu0 0.0
        %1254 = vmatpush1.msra.mxu0 0.0
        %1255 = vmatprep.subr.mxu0 0.0
        %1256 = vmatpush1.msra.mxu0 0.0
        %1257 = vmatprep.subr.mxu0 0.0
        %1258 = vmatpush1.msra.mxu0 0.0
        %1259 = vmatprep.subr.mxu0 0.0
        %1260 = vmatpush1.msra.mxu0 0.0
        %1261 = vmatprep.subr.mxu0 0.0
        %1262 = vmatpush1.msra.mxu0 0.0
        %1263 = vmatprep.subr.mxu0 0.0
        %1264 = vmatpush1.msra.mxu0 0.0
        %1265 = vmatprep.subr.mxu0 0.0
        %1266 = vmatpush1.msra.mxu0 0.0
        %1267 = vmatprep.subr.mxu0 0.0
        %1268 = vmatpush1.msra.mxu0 0.0
        %1269 = vmatprep.subr.mxu0 0.0
        %1270 = vmatpush1.msra.mxu0 0.0
        %1271 = vmatprep.subr.mxu0 0.0
        %1272 = vmatpush1.msra.mxu0 0.0
        %1273 = vmatprep.subr.mxu0 0.0
        %1274 = vmatpush1.msra.mxu0 0.0
        %1275 = vmatprep.subr.mxu0 0.0
        %1276 = vmatpush1.msra.mxu0 0.0
        %1277 = vmatprep.subr.mxu0 0.0
        %1278 = vmatpush1.msra.mxu0 0.0
        %1279 = vmatprep.mubr.f32.mxu0 0.0
        %1280 = vmatmul.mubr.f32.gmra.mrb[0].mxu0 %v1204
        %v1281 = vpop.f32.mrb[0].mxu0
        %v1282 = vadd.f32 %v1195, %v1281
        %v1283 = vpop.f32.mrb[0].mxu0
        %v1284 = vadd.f32 %v1199, %v1283
        %1285 = vmatprep.mubr.f32.mxu0 0.0
        %1286 = vmatmul.mubr.f32.gmra.mrb[0].mxu0 %v1207
        %v1287 = vpop.f32.mrb[0].mxu0
        %v1288 = vadd.f32 %v1195, %v1287
        %v1289 = vpop.f32.mrb[0].mxu0
        %v1290 = vadd.f32 %v1199, %v1289
        %1291 = vmatprep.mubr.f32.mxu0 0.0
        %1292 = vmatmul.mubr.f32.gmra.mrb[0].mxu0 %v1210
        %v1293 = vpop.f32.mrb[0].mxu0
        %v1294 = vadd.f32 %v1195, %v1293
        %v1295 = vpop.f32.mrb[0].mxu0
        %v1296 = vadd.f32 %v1199, %v1295
        %1297 = vmatprep.mubr.f32.mxu0 0.0
        %1298 = vmatmul.mubr.f32.gmra.mrb[0].mxu0 %v1213
        %v1299 = vpop.f32.mrb[0].mxu0
        %v1300 = vadd.f32 %v1195, %v1299
        %v1301 = vpop.f32.mrb[0].mxu0
        %v1302 = vadd.f32 %v1199, %v1301
        %1303 = vdwg.mxu0
        %v1304 = vmul.f32 %v1282, %v1146
        %v1305 = vmul.f32 %v1288, %v1147
        %v1306 = vmul.f32 %v1294, %v1148
        %v1307 = vmul.f32 %v1300, %v1149
        %1312 = vrot.lane.b32.xlu0 %v1150, 64
        %v1313 = vpop.permute.xlu0 %1312
        %1314 = vrot.lane.b32.xlu0 %v1151, 64
        %v1315 = vpop.permute.xlu0 %1314
        %1316 = vrot.lane.b32.xlu0 %v1152, 64
        %v1317 = vpop.permute.xlu0 %1316
        %1318 = vrot.lane.b32.xlu0 %v1153, 64
        %v1319 = vpop.permute.xlu0 %1318
        %v1324 = vmul.f32 %v1282, %v1313
        %v1325 = vmul.f32 %v1288, %v1315
        %v1326 = vmul.f32 %v1294, %v1317
        %v1327 = vmul.f32 %v1300, %v1319
        %1332 = vrot.lane.b32.xlu0 %v1324, 64
        %v1333 = vpop.permute.xlu0 %1332
        %1334 = vrot.lane.b32.xlu0 %v1325, 64
        %v1335 = vpop.permute.xlu0 %1334
        %1336 = vrot.lane.b32.xlu0 %v1326, 64
        %v1337 = vpop.permute.xlu0 %1336
        %1338 = vrot.lane.b32.xlu0 %v1327, 64
        %v1339 = vpop.permute.xlu0 %1338
        %v1344 = vadd.f32 %v1304, %v1333
        %v1345 = vadd.f32 %v1305, %v1335
        %v1346 = vadd.f32 %v1306, %v1337
        %v1347 = vadd.f32 %v1307, %v1339
        %1352 = vrot.lane.b32.xlu0 %v1344, 96
        %v1353 = vpop.permute.xlu0 %1352
        %1354 = vrot.lane.b32.xlu0 %v1345, 96
        %v1355 = vpop.permute.xlu0 %1354
        %1356 = vrot.lane.b32.xlu0 %v1346, 96
        %v1357 = vpop.permute.xlu0 %1356
        %1358 = vrot.lane.b32.xlu0 %v1347, 96
        %v1359 = vpop.permute.xlu0 %1358
        %vm1360 = vcmask 64512
        %v1361 = vsel %vm1360, %v1344, 0
        %v1363 = vsel %vm1360, %v1345, 0
        %v1365 = vsel %vm1360, %v1346, 0
        %v1367 = vsel %vm1360, %v1347, 0
        %v1369 = vsel %vm1360, %v1353, 0
        %v1371 = vsel %vm1360, %v1355, 0
        %v1373 = vsel %vm1360, %v1357, 0
        %v1375 = vsel %vm1360, %v1359, 0
        %1377 = vmatprep.subr.mxu0 0.0
        %1378 = vmatpush1.xpose.msra.mxu0 %v1369
        %1379 = vmatprep.subr.mxu0 0.0
        %1380 = vmatpush1.xpose.msra.mxu0 %v1371
        %1381 = vmatprep.subr.mxu0 0.0
        %1382 = vmatpush1.xpose.msra.mxu0 %v1373
        %1383 = vmatprep.subr.mxu0 0.0
        %1384 = vmatpush1.xpose.msra.mxu0 %v1375
        %1385 = vmatprep.subr.mxu0 0.0
        %1386 = vmatpush1.xpose.msra.mxu0 0.0
        %1387 = vmatprep.subr.mxu0 0.0
        %1388 = vmatpush1.xpose.msra.mxu0 0.0
        %1389 = vmatprep.subr.mxu0 0.0
        %1390 = vmatpush1.xpose.msra.mxu0 0.0
        %1391 = vmatprep.subr.mxu0 0.0
        %1392 = vmatpush1.xpose.msra.mxu0 0.0
        %1393 = vmatprep.subr.mxu0 0.0
        %1394 = vmatpush1.xpose.msra.mxu0 0.0
        %1395 = vmatprep.subr.mxu0 0.0
        %1396 = vmatpush1.xpose.msra.mxu0 0.0
        %1397 = vmatprep.subr.mxu0 0.0
        %1398 = vmatpush1.xpose.msra.mxu0 0.0
        %1399 = vmatprep.subr.mxu0 0.0
        %1400 = vmatpush1.xpose.msra.mxu0 0.0
        %1401 = vmatprep.subr.mxu0 0.0
        %1402 = vmatpush1.xpose.msra.mxu0 0.0
        %1403 = vmatprep.subr.mxu0 0.0
        %1404 = vmatpush1.xpose.msra.mxu0 0.0
        %1405 = vmatprep.subr.mxu0 0.0
        %1406 = vmatpush1.xpose.msra.mxu0 0.0
        %1407 = vmatprep.subr.mxu0 0.0
        %1408 = vmatpush1.xpose.msra.mxu0 0.0
        %1409 = vmatprep.subr.mxu0 0.0
        %1410 = vmatpush1.xpose.msra.mxu0 0.0
        %1411 = vmatprep.subr.mxu0 0.0
        %1412 = vmatpush1.xpose.msra.mxu0 0.0
        %1413 = vmatprep.subr.mxu0 0.0
        %1414 = vmatpush1.xpose.msra.mxu0 0.0
        %1415 = vmatprep.subr.mxu0 0.0
        %1416 = vmatpush1.xpose.msra.mxu0 0.0
        %1417 = vmatprep.subr.mxu0 0.0
        %1418 = vmatpush1.xpose.msra.mxu0 0.0
        %1419 = vmatprep.subr.mxu0 0.0
        %1420 = vmatpush1.xpose.msra.mxu0 0.0
        %1421 = vmatprep.subr.mxu0 0.0
        %1422 = vmatpush1.xpose.msra.mxu0 0.0
        %1423 = vmatprep.subr.mxu0 0.0
        %1424 = vmatpush1.xpose.msra.mxu0 0.0
        %1425 = vmatprep.subr.mxu0 0.0
        %1426 = vmatpush1.xpose.msra.mxu0 0.0
        %1427 = vmatprep.subr.mxu0 0.0
        %1428 = vmatpush1.xpose.msra.mxu0 0.0
        %1429 = vmatprep.subr.mxu0 0.0
        %1430 = vmatpush1.xpose.msra.mxu0 0.0
        %1431 = vmatprep.subr.mxu0 0.0
        %1432 = vmatpush1.xpose.msra.mxu0 0.0
        %1433 = vmatprep.subr.mxu0 0.0
        %1434 = vmatpush1.xpose.msra.mxu0 0.0
        %1435 = vmatprep.subr.mxu0 0.0
        %1436 = vmatpush1.xpose.msra.mxu0 0.0
        %1437 = vmatprep.subr.mxu0 0.0
        %1438 = vmatpush1.xpose.msra.mxu0 0.0
        %1439 = vmatprep.subr.mxu0 0.0
        %1440 = vmatpush1.xpose.msra.mxu0 0.0
        %1441 = vmatprep.mubr.f32.mxu0 0.0
        %1442 = vmatmul.mubr.f32.gmra.mrb[0].mxu0 %v1361
        %v1443 = vpop.f32.mrb[0].mxu0
        %v1444 = vadd.f32 %v1174, %v1443
        %v1445 = vpop.f32.mrb[0].mxu0
        %1446 = vmatprep.mubr.f32.mxu0 0.0
        %1447 = vmatmul.mubr.f32.gmra.mrb[0].mxu0 %v1363
        %v1448 = vpop.f32.mrb[0].mxu0
        %v1449 = vadd.f32 %v1175, %v1448
        %v1450 = vpop.f32.mrb[0].mxu0
        %1451 = vmatprep.mubr.f32.mxu0 0.0
        %1452 = vmatmul.mubr.f32.gmra.mrb[0].mxu0 %v1365
        %v1453 = vpop.f32.mrb[0].mxu0
        %v1454 = vadd.f32 %v1176, %v1453
        %v1455 = vpop.f32.mrb[0].mxu0
        %1456 = vmatprep.mubr.f32.mxu0 0.0
        %1457 = vmatmul.mubr.f32.gmra.mrb[0].mxu0 %v1367
        %v1458 = vpop.f32.mrb[0].mxu0
        %v1459 = vadd.f32 %v1177, %v1458
        %v1460 = vpop.f32.mrb[0].mxu0
        %1461 = vdwg.mxu0
        %v1462 = vsel %vm1202, %v1444, -inf
        %1463 = vmax.xlane.f32.xlu0 %v1462
        %v1464 = vpop.xlane.xlu0 %1463
        %v1465 = vsel %vm1202, %v1449, -inf
        %1466 = vmax.xlane.f32.xlu0 %v1465
        %v1467 = vpop.xlane.xlu0 %1466
        %v1468 = vsel %vm1202, %v1454, -inf
        %1469 = vmax.xlane.f32.xlu0 %v1468
        %v1470 = vpop.xlane.xlu0 %1469
        %v1471 = vsel %vm1202, %v1459, -inf
        %1472 = vmax.xlane.f32.xlu0 %v1471
        %v1473 = vpop.xlane.xlu0 %1472
        %v1474 = vsub.f32 %v1444, %v1464
        %v1475 = vsub.f32 %v1449, %v1467
        %v1476 = vsub.f32 %v1454, %v1470
        %v1477 = vsub.f32 %v1459, %v1473
        %v1478 = vmul.f32 %v1474, 1.442695
        %v1479 = vpow.pop %v1478
        %v1480 = vmul.f32 %v1475, 1.442695
        %v1481 = vpow.pop %v1480
        %v1482 = vmul.f32 %v1476, 1.442695
        %v1483 = vpow.pop %v1482
        %v1484 = vmul.f32 %v1477, 1.442695
        %v1485 = vpow.pop %v1484
        %v1486 = vsel %vm1202, %v1479, 0.0
        %1487 = vadd.xlane.f32.xlu0 %v1486
        %v1488 = vpop.xlane.xlu0 %1487
        %v1489 = vsel %vm1202, %v1481, 0.0
        %1490 = vadd.xlane.f32.xlu0 %v1489
        %v1491 = vpop.xlane.xlu0 %1490
        %v1492 = vsel %vm1202, %v1483, 0.0
        %1493 = vadd.xlane.f32.xlu0 %v1492
        %v1494 = vpop.xlane.xlu0 %1493
        %v1495 = vsel %vm1202, %v1485, 0.0
        %1496 = vadd.xlane.f32.xlu0 %v1495
        %v1497 = vpop.xlane.xlu0 %1496
        %v1498 = vrcp.pop %v1488
        %v1499 = vrcp.pop %v1491
        %v1500 = vrcp.pop %v1494
        %v1501 = vrcp.pop %v1497
        %v1502 = vmul.f32 %v1479, %v1498
        %v1503 = vmul.f32 %v1481, %v1499
        %v1504 = vmul.f32 %v1483, %v1500
        %v1505 = vmul.f32 %v1485, %v1501
        %v1507 = vsel %vm1202, %v1502, 0
        %v1510 = vsel %vm1202, %v1503, 0
        %v1513 = vsel %vm1202, %v1504, 0
        %v1516 = vsel %vm1202, %v1505, 0
        %1518 = vmatprep.subr.mxu0 0.0
        %1519 = vmatpush1.msra.mxu0 %v1284
        %1520 = vmatprep.subr.mxu0 0.0
        %1521 = vmatpush1.msra.mxu0 %v1290
        %1522 = vmatprep.subr.mxu0 0.0
        %1523 = vmatpush1.msra.mxu0 %v1296
        %1524 = vmatprep.subr.mxu0 0.0
        %1525 = vmatpush1.msra.mxu0 %v1302
        %1526 = vmatprep.subr.mxu0 0.0
        %1527 = vmatpush1.msra.mxu0 0.0
        %1528 = vmatprep.subr.mxu0 0.0
        %1529 = vmatpush1.msra.mxu0 0.0
        %1530 = vmatprep.subr.mxu0 0.0
        %1531 = vmatpush1.msra.mxu0 0.0
        %1532 = vmatprep.subr.mxu0 0.0
        %1533 = vmatpush1.msra.mxu0 0.0
        %1534 = vmatprep.subr.mxu0 0.0
        %1535 = vmatpush1.msra.mxu0 0.0
        %1536 = vmatprep.subr.mxu0 0.0
        %1537 = vmatpush1.msra.mxu0 0.0
        %1538 = vmatprep.subr.mxu0 0.0
        %1539 = vmatpush1.msra.mxu0 0.0
        %1540 = vmatprep.subr.mxu0 0.0
        %1541 = vmatpush1.msra.mxu0 0.0
        %1542 = vmatprep.subr.mxu0 0.0
        %1543 = vmatpush1.msra.mxu0 0.0
        %1544 = vmatprep.subr.mxu0 0.0
        %1545 = vmatpush1.msra.mxu0 0.0
        %1546 = vmatprep.subr.mxu0 0.0
        %1547 = vmatpush1.msra.mxu0 0.0
        %1548 = vmatprep.subr.mxu0 0.0
        %1549 = vmatpush1.msra.mxu0 0.0
        %1550 = vmatprep.subr.mxu0 0.0
        %1551 = vmatpush1.msra.mxu0 0.0
        %1552 = vmatprep.subr.mxu0 0.0
        %1553 = vmatpush1.msra.mxu0 0.0
        %1554 = vmatprep.subr.mxu0 0.0
        %1555 = vmatpush1.msra.mxu0 0.0
        %1556 = vmatprep.subr.mxu0 0.0
        %1557 = vmatpush1.msra.mxu0 0.0
        %1558 = vmatprep.subr.mxu0 0.0
        %1559 = vmatpush1.msra.mxu0 0.0
        %1560 = vmatprep.subr.mxu0 0.0
        %1561 = vmatpush1.msra.mxu0 0.0
        %1562 = vmatprep.subr.mxu0 0.0
        %1563 = vmatpush1.msra.mxu0 0.0
        %1564 = vmatprep.subr.mxu0 0.0
        %1565 = vmatpush1.msra.mxu0 0.0
        %1566 = vmatprep.subr.mxu0 0.0
        %1567 = vmatpush1.msra.mxu0 0.0
        %1568 = vmatprep.subr.mxu0 0.0
        %1569 = vmatpush1.msra.mxu0 0.0
        %1570 = vmatprep.subr.mxu0 0.0
        %1571 = vmatpush1.msra.mxu0 0.0
        %1572 = vmatprep.subr.mxu0 0.0
        %1573 = vmatpush1.msra.mxu0 0.0
        %1574 = vmatprep.subr.mxu0 0.0
        %1575 = vmatpush1.msra.mxu0 0.0
        %1576 = vmatprep.subr.mxu0 0.0
        %1577 = vmatpush1.msra.mxu0 0.0
        %1578 = vmatprep.subr.mxu0 0.0
        %1579 = vmatpush1.msra.mxu0 0.0
        %1580 = vmatprep.subr.mxu0 0.0
        %1581 = vmatpush1.msra.mxu0 0.0
        %1582 = vmatprep.mubr.f32.mxu0 0.0
        %1583 = vmatmul.mubr.f32.gmra.mrb[0].mxu0 %v1507
        %v1584 = vpop.f32.mrb[0].mxu0
        %v1585 = vadd.f32 0.0, %v1584
        %v1586 = vpop.f32.mrb[0].mxu0
        %1587 = vmatprep.mubr.f32.mxu0 0.0
        %1588 = vmatmul.mubr.f32.gmra.mrb[0].mxu0 %v1510
        %v1589 = vpop.f32.mrb[0].mxu0
        %v1590 = vadd.f32 0.0, %v1589
        %v1591 = vpop.f32.mrb[0].mxu0
        %1592 = vmatprep.mubr.f32.mxu0 0.0
        %1593 = vmatmul.mubr.f32.gmra.mrb[0].mxu0 %v1513
        %v1594 = vpop.f32.mrb[0].mxu0
        %v1595 = vadd.f32 0.0, %v1594
        %v1596 = vpop.f32.mrb[0].mxu0
        %1597 = vmatprep.mubr.f32.mxu0 0.0
        %1598 = vmatmul.mubr.f32.gmra.mrb[0].mxu0 %v1516
        %v1599 = vpop.f32.mrb[0].mxu0
        %v1600 = vadd.f32 0.0, %v1599
        %v1601 = vpop.f32.mrb[0].mxu0
        %1602 = vdwg.mxu0
        %1603 = vrot.lane.b32.xlu0 %v1344, 120
        %v1604 = vpop.permute.xlu0 %1603
        %1605 = vrot.lane.b32.xlu0 %v1345, 120
        %v1606 = vpop.permute.xlu0 %1605
        %1607 = vrot.lane.b32.xlu0 %v1346, 120
        %v1608 = vpop.permute.xlu0 %1607
        %1609 = vrot.lane.b32.xlu0 %v1347, 120
        %v1610 = vpop.permute.xlu0 %1609
        %1611 = vrot.lane.b32.xlu0 %v1344, 88
        %v1612 = vpop.permute.xlu0 %1611
        %1613 = vrot.lane.b32.xlu0 %v1345, 88
        %v1614 = vpop.permute.xlu0 %1613
        %1615 = vrot.lane.b32.xlu0 %v1346, 88
        %v1616 = vpop.permute.xlu0 %1615
        %1617 = vrot.lane.b32.xlu0 %v1347, 88
        %v1618 = vpop.permute.xlu0 %1617
        %v1619 = vsel %vm1360, %v1604, 0
        %v1621 = vsel %vm1360, %v1606, 0
        %v1623 = vsel %vm1360, %v1608, 0
        %v1625 = vsel %vm1360, %v1610, 0
        %v1627 = vsel %vm1360, %v1612, 0
        %v1629 = vsel %vm1360, %v1614, 0
        %v1631 = vsel %vm1360, %v1616, 0
        %v1633 = vsel %vm1360, %v1618, 0
        %1635 = vmatprep.subr.mxu0 0.0
        %1636 = vmatpush1.xpose.msra.mxu0 %v1627
        %1637 = vmatprep.subr.mxu0 0.0
        %1638 = vmatpush1.xpose.msra.mxu0 %v1629
        %1639 = vmatprep.subr.mxu0 0.0
        %1640 = vmatpush1.xpose.msra.mxu0 %v1631
        %1641 = vmatprep.subr.mxu0 0.0
        %1642 = vmatpush1.xpose.msra.mxu0 %v1633
        %1643 = vmatprep.subr.mxu0 0.0
        %1644 = vmatpush1.xpose.msra.mxu0 0.0
        %1645 = vmatprep.subr.mxu0 0.0
        %1646 = vmatpush1.xpose.msra.mxu0 0.0
        %1647 = vmatprep.subr.mxu0 0.0
        %1648 = vmatpush1.xpose.msra.mxu0 0.0
        %1649 = vmatprep.subr.mxu0 0.0
        %1650 = vmatpush1.xpose.msra.mxu0 0.0
        %1651 = vmatprep.subr.mxu0 0.0
        %1652 = vmatpush1.xpose.msra.mxu0 0.0
        %1653 = vmatprep.subr.mxu0 0.0
        %1654 = vmatpush1.xpose.msra.mxu0 0.0
        %1655 = vmatprep.subr.mxu0 0.0
        %1656 = vmatpush1.xpose.msra.mxu0 0.0
        %1657 = vmatprep.subr.mxu0 0.0
        %1658 = vmatpush1.xpose.msra.mxu0 0.0
        %1659 = vmatprep.subr.mxu0 0.0
        %1660 = vmatpush1.xpose.msra.mxu0 0.0
        %1661 = vmatprep.subr.mxu0 0.0
        %1662 = vmatpush1.xpose.msra.mxu0 0.0
        %1663 = vmatprep.subr.mxu0 0.0
        %1664 = vmatpush1.xpose.msra.mxu0 0.0
        %1665 = vmatprep.subr.mxu0 0.0
        %1666 = vmatpush1.xpose.msra.mxu0 0.0
        %1667 = vmatprep.subr.mxu0 0.0
        %1668 = vmatpush1.xpose.msra.mxu0 0.0
        %1669 = vmatprep.subr.mxu0 0.0
        %1670 = vmatpush1.xpose.msra.mxu0 0.0
        %1671 = vmatprep.subr.mxu0 0.0
        %1672 = vmatpush1.xpose.msra.mxu0 0.0
        %1673 = vmatprep.subr.mxu0 0.0
        %1674 = vmatpush1.xpose.msra.mxu0 0.0
        %1675 = vmatprep.subr.mxu0 0.0
        %1676 = vmatpush1.xpose.msra.mxu0 0.0
        %1677 = vmatprep.subr.mxu0 0.0
        %1678 = vmatpush1.xpose.msra.mxu0 0.0
        %1679 = vmatprep.subr.mxu0 0.0
        %1680 = vmatpush1.xpose.msra.mxu0 0.0
        %1681 = vmatprep.subr.mxu0 0.0
        %1682 = vmatpush1.xpose.msra.mxu0 0.0
        %1683 = vmatprep.subr.mxu0 0.0
        %1684 = vmatpush1.xpose.msra.mxu0 0.0
        %1685 = vmatprep.subr.mxu0 0.0
        %1686 = vmatpush1.xpose.msra.mxu0 0.0
        %1687 = vmatprep.subr.mxu0 0.0
        %1688 = vmatpush1.xpose.msra.mxu0 0.0
        %1689 = vmatprep.subr.mxu0 0.0
        %1690 = vmatpush1.xpose.msra.mxu0 0.0
        %1691 = vmatprep.subr.mxu0 0.0
        %1692 = vmatpush1.xpose.msra.mxu0 0.0
        %1693 = vmatprep.subr.mxu0 0.0
        %1694 = vmatpush1.xpose.msra.mxu0 0.0
        %1695 = vmatprep.subr.mxu0 0.0
        %1696 = vmatpush1.xpose.msra.mxu0 0.0
        %1697 = vmatprep.subr.mxu0 0.0
        %1698 = vmatpush1.xpose.msra.mxu0 0.0
        %1699 = vmatprep.mubr.f32.mxu0 0.0
        %1700 = vmatmul.mubr.f32.gmra.mrb[0].mxu0 %v1619
        %v1701 = vpop.f32.mrb[0].mxu0
        %v1702 = vadd.f32 %v1174, %v1701
        %v1703 = vpop.f32.mrb[0].mxu0
        %1704 = vmatprep.mubr.f32.mxu0 0.0
        %1705 = vmatmul.mubr.f32.gmra.mrb[0].mxu0 %v1621
        %v1706 = vpop.f32.mrb[0].mxu0
        %v1707 = vadd.f32 %v1175, %v1706
        %v1708 = vpop.f32.mrb[0].mxu0
        %1709 = vmatprep.mubr.f32.mxu0 0.0
        %1710 = vmatmul.mubr.f32.gmra.mrb[0].mxu0 %v1623
        %v1711 = vpop.f32.mrb[0].mxu0
        %v1712 = vadd.f32 %v1176, %v1711
        %v1713 = vpop.f32.mrb[0].mxu0
        %1714 = vmatprep.mubr.f32.mxu0 0.0
        %1715 = vmatmul.mubr.f32.gmra.mrb[0].mxu0 %v1625
        %v1716 = vpop.f32.mrb[0].mxu0
        %v1717 = vadd.f32 %v1177, %v1716
        %v1718 = vpop.f32.mrb[0].mxu0
        %1719 = vdwg.mxu0
        %v1720 = vsel %vm1202, %v1702, -inf
        %1721 = vmax.xlane.f32.xlu0 %v1720
        %v1722 = vpop.xlane.xlu0 %1721
        %v1723 = vsel %vm1202, %v1707, -inf
        %1724 = vmax.xlane.f32.xlu0 %v1723
        %v1725 = vpop.xlane.xlu0 %1724
        %v1726 = vsel %vm1202, %v1712, -inf
        %1727 = vmax.xlane.f32.xlu0 %v1726
        %v1728 = vpop.xlane.xlu0 %1727
        %v1729 = vsel %vm1202, %v1717, -inf
        %1730 = vmax.xlane.f32.xlu0 %v1729
        %v1731 = vpop.xlane.xlu0 %1730
        %v1732 = vsub.f32 %v1702, %v1722
        %v1733 = vsub.f32 %v1707, %v1725
        %v1734 = vsub.f32 %v1712, %v1728
        %v1735 = vsub.f32 %v1717, %v1731
        %v1736 = vmul.f32 %v1732, 1.442695
        %v1737 = vpow.pop %v1736
        %v1738 = vmul.f32 %v1733, 1.442695
        %v1739 = vpow.pop %v1738
        %v1740 = vmul.f32 %v1734, 1.442695
        %v1741 = vpow.pop %v1740
        %v1742 = vmul.f32 %v1735, 1.442695
        %v1743 = vpow.pop %v1742
        %v1744 = vsel %vm1202, %v1737, 0.0
        %1745 = vadd.xlane.f32.xlu0 %v1744
        %v1746 = vpop.xlane.xlu0 %1745
        %v1747 = vsel %vm1202, %v1739, 0.0
        %1748 = vadd.xlane.f32.xlu0 %v1747
        %v1749 = vpop.xlane.xlu0 %1748
        %v1750 = vsel %vm1202, %v1741, 0.0
        %1751 = vadd.xlane.f32.xlu0 %v1750
        %v1752 = vpop.xlane.xlu0 %1751
        %v1753 = vsel %vm1202, %v1743, 0.0
        %1754 = vadd.xlane.f32.xlu0 %v1753
        %v1755 = vpop.xlane.xlu0 %1754
        %v1756 = vrcp.pop %v1746
        %v1757 = vrcp.pop %v1749
        %v1758 = vrcp.pop %v1752
        %v1759 = vrcp.pop %v1755
        %v1760 = vmul.f32 %v1737, %v1756
        %v1761 = vmul.f32 %v1739, %v1757
        %v1762 = vmul.f32 %v1741, %v1758
        %v1763 = vmul.f32 %v1743, %v1759
        %1768 = vrot.lane.b32.xlu0 %v1284, 120
        %v1769 = vpop.permute.xlu0 %1768
        %1770 = vrot.lane.b32.xlu0 %v1290, 120
        %v1771 = vpop.permute.xlu0 %1770
        %1772 = vrot.lane.b32.xlu0 %v1296, 120
        %v1773 = vpop.permute.xlu0 %1772
        %1774 = vrot.lane.b32.xlu0 %v1302, 120
        %v1775 = vpop.permute.xlu0 %1774
        %v1781 = vsel %vm1202, %v1760, 0
        %v1784 = vsel %vm1202, %v1761, 0
        %v1787 = vsel %vm1202, %v1762, 0
        %v1790 = vsel %vm1202, %v1763, 0
        %1792 = vmatprep.subr.mxu0 0.0
        %1793 = vmatpush1.msra.mxu0 %v1769
        %1794 = vmatprep.subr.mxu0 0.0
        %1795 = vmatpush1.msra.mxu0 %v1771
        %1796 = vmatprep.subr.mxu0 0.0
        %1797 = vmatpush1.msra.mxu0 %v1773
        %1798 = vmatprep.subr.mxu0 0.0
        %1799 = vmatpush1.msra.mxu0 %v1775
        %1800 = vmatprep.subr.mxu0 0.0
        %1801 = vmatpush1.msra.mxu0 0.0
        %1802 = vmatprep.subr.mxu0 0.0
        %1803 = vmatpush1.msra.mxu0 0.0
        %1804 = vmatprep.subr.mxu0 0.0
        %1805 = vmatpush1.msra.mxu0 0.0
        %1806 = vmatprep.subr.mxu0 0.0
        %1807 = vmatpush1.msra.mxu0 0.0
        %1808 = vmatprep.subr.mxu0 0.0
        %1809 = vmatpush1.msra.mxu0 0.0
        %1810 = vmatprep.subr.mxu0 0.0
        %1811 = vmatpush1.msra.mxu0 0.0
        %1812 = vmatprep.subr.mxu0 0.0
        %1813 = vmatpush1.msra.mxu0 0.0
        %1814 = vmatprep.subr.mxu0 0.0
        %1815 = vmatpush1.msra.mxu0 0.0
        %1816 = vmatprep.subr.mxu0 0.0
        %1817 = vmatpush1.msra.mxu0 0.0
        %1818 = vmatprep.subr.mxu0 0.0
        %1819 = vmatpush1.msra.mxu0 0.0
        %1820 = vmatprep.subr.mxu0 0.0
        %1821 = vmatpush1.msra.mxu0 0.0
        %1822 = vmatprep.subr.mxu0 0.0
        %1823 = vmatpush1.msra.mxu0 0.0
        %1824 = vmatprep.subr.mxu0 0.0
        %1825 = vmatpush1.msra.mxu0 0.0
        %1826 = vmatprep.subr.mxu0 0.0
        %1827 = vmatpush1.msra.mxu0 0.0
        %1828 = vmatprep.subr.mxu0 0.0
        %1829 = vmatpush1.msra.mxu0 0.0
        %1830 = vmatprep.subr.mxu0 0.0
        %1831 = vmatpush1.msra.mxu0 0.0
        %1832 = vmatprep.subr.mxu0 0.0
        %1833 = vmatpush1.msra.mxu0 0.0
        %1834 = vmatprep.subr.mxu0 0.0
        %1835 = vmatpush1.msra.mxu0 0.0
        %1836 = vmatprep.subr.mxu0 0.0
        %1837 = vmatpush1.msra.mxu0 0.0
        %1838 = vmatprep.subr.mxu0 0.0
        %1839 = vmatpush1.msra.mxu0 0.0
        %1840 = vmatprep.subr.mxu0 0.0
        %1841 = vmatpush1.msra.mxu0 0.0
        %1842 = vmatprep.subr.mxu0 0.0
        %1843 = vmatpush1.msra.mxu0 0.0
        %1844 = vmatprep.subr.mxu0 0.0
        %1845 = vmatpush1.msra.mxu0 0.0
        %1846 = vmatprep.subr.mxu0 0.0
        %1847 = vmatpush1.msra.mxu0 0.0
        %1848 = vmatprep.subr.mxu0 0.0
        %1849 = vmatpush1.msra.mxu0 0.0
        %1850 = vmatprep.subr.mxu0 0.0
        %1851 = vmatpush1.msra.mxu0 0.0
        %1852 = vmatprep.subr.mxu0 0.0
        %1853 = vmatpush1.msra.mxu0 0.0
        %1854 = vmatprep.subr.mxu0 0.0
        %1855 = vmatpush1.msra.mxu0 0.0
        %1856 = vmatprep.mubr.f32.mxu0 0.0
        %1857 = vmatmul.mubr.f32.gmra.mrb[0].mxu0 %v1781
        %v1858 = vpop.f32.mrb[0].mxu0
        %v1859 = vadd.f32 0.0, %v1858
        %v1860 = vpop.f32.mrb[0].mxu0
        %1861 = vmatprep.mubr.f32.mxu0 0.0
        %1862 = vmatmul.mubr.f32.gmra.mrb[0].mxu0 %v1784
        %v1863 = vpop.f32.mrb[0].mxu0
        %v1864 = vadd.f32 0.0, %v1863
        %v1865 = vpop.f32.mrb[0].mxu0
        %1866 = vmatprep.mubr.f32.mxu0 0.0
        %1867 = vmatmul.mubr.f32.gmra.mrb[0].mxu0 %v1787
        %v1868 = vpop.f32.mrb[0].mxu0
        %v1869 = vadd.f32 0.0, %v1868
        %v1870 = vpop.f32.mrb[0].mxu0
        %1871 = vmatprep.mubr.f32.mxu0 0.0
        %1872 = vmatmul.mubr.f32.gmra.mrb[0].mxu0 %v1790
        %v1873 = vpop.f32.mrb[0].mxu0
        %v1874 = vadd.f32 0.0, %v1873
        %v1875 = vpop.f32.mrb[0].mxu0
        %1876 = vdwg.mxu0
        %1877 = vrot.lane.b32.xlu0 %v1344, 112
        %v1878 = vpop.permute.xlu0 %1877
        %1879 = vrot.lane.b32.xlu0 %v1345, 112
        %v1880 = vpop.permute.xlu0 %1879
        %1881 = vrot.lane.b32.xlu0 %v1346, 112
        %v1882 = vpop.permute.xlu0 %1881
        %1883 = vrot.lane.b32.xlu0 %v1347, 112
        %v1884 = vpop.permute.xlu0 %1883
        %1885 = vrot.lane.b32.xlu0 %v1344, 80
        %v1886 = vpop.permute.xlu0 %1885
        %1887 = vrot.lane.b32.xlu0 %v1345, 80
        %v1888 = vpop.permute.xlu0 %1887
        %1889 = vrot.lane.b32.xlu0 %v1346, 80
        %v1890 = vpop.permute.xlu0 %1889
        %1891 = vrot.lane.b32.xlu0 %v1347, 80
        %v1892 = vpop.permute.xlu0 %1891
        %v1893 = vsel %vm1360, %v1878, 0
        %v1895 = vsel %vm1360, %v1880, 0
        %v1897 = vsel %vm1360, %v1882, 0
        %v1899 = vsel %vm1360, %v1884, 0
        %v1901 = vsel %vm1360, %v1886, 0
        %v1903 = vsel %vm1360, %v1888, 0
        %v1905 = vsel %vm1360, %v1890, 0
        %v1907 = vsel %vm1360, %v1892, 0
        %1909 = vmatprep.subr.mxu0 0.0
        %1910 = vmatpush1.xpose.msra.mxu0 %v1901
        %1911 = vmatprep.subr.mxu0 0.0
        %1912 = vmatpush1.xpose.msra.mxu0 %v1903
        %1913 = vmatprep.subr.mxu0 0.0
        %1914 = vmatpush1.xpose.msra.mxu0 %v1905
        %1915 = vmatprep.subr.mxu0 0.0
        %1916 = vmatpush1.xpose.msra.mxu0 %v1907
        %1917 = vmatprep.subr.mxu0 0.0
        %1918 = vmatpush1.xpose.msra.mxu0 0.0
        %1919 = vmatprep.subr.mxu0 0.0
        %1920 = vmatpush1.xpose.msra.mxu0 0.0
        %1921 = vmatprep.subr.mxu0 0.0
        %1922 = vmatpush1.xpose.msra.mxu0 0.0
        %1923 = vmatprep.subr.mxu0 0.0
        %1924 = vmatpush1.xpose.msra.mxu0 0.0
        %1925 = vmatprep.subr.mxu0 0.0
        %1926 = vmatpush1.xpose.msra.mxu0 0.0
        %1927 = vmatprep.subr.mxu0 0.0
        %1928 = vmatpush1.xpose.msra.mxu0 0.0
        %1929 = vmatprep.subr.mxu0 0.0
        %1930 = vmatpush1.xpose.msra.mxu0 0.0
        %1931 = vmatprep.subr.mxu0 0.0
        %1932 = vmatpush1.xpose.msra.mxu0 0.0
        %1933 = vmatprep.subr.mxu0 0.0
        %1934 = vmatpush1.xpose.msra.mxu0 0.0
        %1935 = vmatprep.subr.mxu0 0.0
        %1936 = vmatpush1.xpose.msra.mxu0 0.0
        %1937 = vmatprep.subr.mxu0 0.0
        %1938 = vmatpush1.xpose.msra.mxu0 0.0
        %1939 = vmatprep.subr.mxu0 0.0
        %1940 = vmatpush1.xpose.msra.mxu0 0.0
        %1941 = vmatprep.subr.mxu0 0.0
        %1942 = vmatpush1.xpose.msra.mxu0 0.0
        %1943 = vmatprep.subr.mxu0 0.0
        %1944 = vmatpush1.xpose.msra.mxu0 0.0
        %1945 = vmatprep.subr.mxu0 0.0
        %1946 = vmatpush1.xpose.msra.mxu0 0.0
        %1947 = vmatprep.subr.mxu0 0.0
        %1948 = vmatpush1.xpose.msra.mxu0 0.0
        %1949 = vmatprep.subr.mxu0 0.0
        %1950 = vmatpush1.xpose.msra.mxu0 0.0
        %1951 = vmatprep.subr.mxu0 0.0
        %1952 = vmatpush1.xpose.msra.mxu0 0.0
        %1953 = vmatprep.subr.mxu0 0.0
        %1954 = vmatpush1.xpose.msra.mxu0 0.0
        %1955 = vmatprep.subr.mxu0 0.0
        %1956 = vmatpush1.xpose.msra.mxu0 0.0
        %1957 = vmatprep.subr.mxu0 0.0
        %1958 = vmatpush1.xpose.msra.mxu0 0.0
        %1959 = vmatprep.subr.mxu0 0.0
        %1960 = vmatpush1.xpose.msra.mxu0 0.0
        %1961 = vmatprep.subr.mxu0 0.0
        %1962 = vmatpush1.xpose.msra.mxu0 0.0
        %1963 = vmatprep.subr.mxu0 0.0
        %1964 = vmatpush1.xpose.msra.mxu0 0.0
        %1965 = vmatprep.subr.mxu0 0.0
        %1966 = vmatpush1.xpose.msra.mxu0 0.0
        %1967 = vmatprep.subr.mxu0 0.0
        %1968 = vmatpush1.xpose.msra.mxu0 0.0
        %1969 = vmatprep.subr.mxu0 0.0
        %1970 = vmatpush1.xpose.msra.mxu0 0.0
        %1971 = vmatprep.subr.mxu0 0.0
        %1972 = vmatpush1.xpose.msra.mxu0 0.0
        %1973 = vmatprep.mubr.f32.mxu0 0.0
        %1974 = vmatmul.mubr.f32.gmra.mrb[0].mxu0 %v1893
        %v1975 = vpop.f32.mrb[0].mxu0
        %v1976 = vadd.f32 %v1174, %v1975
        %v1977 = vpop.f32.mrb[0].mxu0
        %1978 = vmatprep.mubr.f32.mxu0 0.0
        %1979 = vmatmul.mubr.f32.gmra.mrb[0].mxu0 %v1895
        %v1980 = vpop.f32.mrb[0].mxu0
        %v1981 = vadd.f32 %v1175, %v1980
        %v1982 = vpop.f32.mrb[0].mxu0
        %1983 = vmatprep.mubr.f32.mxu0 0.0
        %1984 = vmatmul.mubr.f32.gmra.mrb[0].mxu0 %v1897
        %v1985 = vpop.f32.mrb[0].mxu0
        %v1986 = vadd.f32 %v1176, %v1985
        %v1987 = vpop.f32.mrb[0].mxu0
        %1988 = vmatprep.mubr.f32.mxu0 0.0
        %1989 = vmatmul.mubr.f32.gmra.mrb[0].mxu0 %v1899
        %v1990 = vpop.f32.mrb[0].mxu0
        %v1991 = vadd.f32 %v1177, %v1990
        %v1992 = vpop.f32.mrb[0].mxu0
        %1993 = vdwg.mxu0
        %v1994 = vsel %vm1202, %v1976, -inf
        %1995 = vmax.xlane.f32.xlu0 %v1994
        %v1996 = vpop.xlane.xlu0 %1995
        %v1997 = vsel %vm1202, %v1981, -inf
        %1998 = vmax.xlane.f32.xlu0 %v1997
        %v1999 = vpop.xlane.xlu0 %1998
        %v2000 = vsel %vm1202, %v1986, -inf
        %2001 = vmax.xlane.f32.xlu0 %v2000
        %v2002 = vpop.xlane.xlu0 %2001
        %v2003 = vsel %vm1202, %v1991, -inf
        %2004 = vmax.xlane.f32.xlu0 %v2003
        %v2005 = vpop.xlane.xlu0 %2004
        %v2006 = vsub.f32 %v1976, %v1996
        %v2007 = vsub.f32 %v1981, %v1999
        %v2008 = vsub.f32 %v1986, %v2002
        %v2009 = vsub.f32 %v1991, %v2005
        %v2010 = vmul.f32 %v2006, 1.442695
        %v2011 = vpow.pop %v2010
        %v2012 = vmul.f32 %v2007, 1.442695
        %v2013 = vpow.pop %v2012
        %v2014 = vmul.f32 %v2008, 1.442695
        %v2015 = vpow.pop %v2014
        %v2016 = vmul.f32 %v2009, 1.442695
        %v2017 = vpow.pop %v2016
        %v2018 = vsel %vm1202, %v2011, 0.0
        %2019 = vadd.xlane.f32.xlu0 %v2018
        %v2020 = vpop.xlane.xlu0 %2019
        %v2021 = vsel %vm1202, %v2013, 0.0
        %2022 = vadd.xlane.f32.xlu0 %v2021
        %v2023 = vpop.xlane.xlu0 %2022
        %v2024 = vsel %vm1202, %v2015, 0.0
        %2025 = vadd.xlane.f32.xlu0 %v2024
        %v2026 = vpop.xlane.xlu0 %2025
        %v2027 = vsel %vm1202, %v2017, 0.0
        %2028 = vadd.xlane.f32.xlu0 %v2027
        %v2029 = vpop.xlane.xlu0 %2028
        %v2030 = vrcp.pop %v2020
        %v2031 = vrcp.pop %v2023
        %v2032 = vrcp.pop %v2026
        %v2033 = vrcp.pop %v2029
        %v2034 = vmul.f32 %v2011, %v2030
        %v2035 = vmul.f32 %v2013, %v2031
        %v2036 = vmul.f32 %v2015, %v2032
        %v2037 = vmul.f32 %v2017, %v2033
        %2038 = vrot.lane.b32.xlu0 %v1284, 112
        %v2039 = vpop.permute.xlu0 %2038
        %2040 = vrot.lane.b32.xlu0 %v1290, 112
        %v2041 = vpop.permute.xlu0 %2040
        %2042 = vrot.lane.b32.xlu0 %v1296, 112
        %v2043 = vpop.permute.xlu0 %2042
        %2044 = vrot.lane.b32.xlu0 %v1302, 112
        %v2045 = vpop.permute.xlu0 %2044
        %v2051 = vsel %vm1202, %v2034, 0
        %v2054 = vsel %vm1202, %v2035, 0
        %v2057 = vsel %vm1202, %v2036, 0
        %v2060 = vsel %vm1202, %v2037, 0
        %2062 = vmatprep.subr.mxu0 0.0
        %2063 = vmatpush1.msra.mxu0 %v2039
        %2064 = vmatprep.subr.mxu0 0.0
        %2065 = vmatpush1.msra.mxu0 %v2041
        %2066 = vmatprep.subr.mxu0 0.0
        %2067 = vmatpush1.msra.mxu0 %v2043
        %2068 = vmatprep.subr.mxu0 0.0
        %2069 = vmatpush1.msra.mxu0 %v2045
        %2070 = vmatprep.subr.mxu0 0.0
        %2071 = vmatpush1.msra.mxu0 0.0
        %2072 = vmatprep.subr.mxu0 0.0
        %2073 = vmatpush1.msra.mxu0 0.0
        %2074 = vmatprep.subr.mxu0 0.0
        %2075 = vmatpush1.msra.mxu0 0.0
        %2076 = vmatprep.subr.mxu0 0.0
        %2077 = vmatpush1.msra.mxu0 0.0
        %2078 = vmatprep.subr.mxu0 0.0
        %2079 = vmatpush1.msra.mxu0 0.0
        %2080 = vmatprep.subr.mxu0 0.0
        %2081 = vmatpush1.msra.mxu0 0.0
        %2082 = vmatprep.subr.mxu0 0.0
        %2083 = vmatpush1.msra.mxu0 0.0
        %2084 = vmatprep.subr.mxu0 0.0
        %2085 = vmatpush1.msra.mxu0 0.0
        %2086 = vmatprep.subr.mxu0 0.0
        %2087 = vmatpush1.msra.mxu0 0.0
        %2088 = vmatprep.subr.mxu0 0.0
        %2089 = vmatpush1.msra.mxu0 0.0
        %2090 = vmatprep.subr.mxu0 0.0
        %2091 = vmatpush1.msra.mxu0 0.0
        %2092 = vmatprep.subr.mxu0 0.0
        %2093 = vmatpush1.msra.mxu0 0.0
        %2094 = vmatprep.subr.mxu0 0.0
        %2095 = vmatpush1.msra.mxu0 0.0
        %2096 = vmatprep.subr.mxu0 0.0
        %2097 = vmatpush1.msra.mxu0 0.0
        %2098 = vmatprep.subr.mxu0 0.0
        %2099 = vmatpush1.msra.mxu0 0.0
        %2100 = vmatprep.subr.mxu0 0.0
        %2101 = vmatpush1.msra.mxu0 0.0
        %2102 = vmatprep.subr.mxu0 0.0
        %2103 = vmatpush1.msra.mxu0 0.0
        %2104 = vmatprep.subr.mxu0 0.0
        %2105 = vmatpush1.msra.mxu0 0.0
        %2106 = vmatprep.subr.mxu0 0.0
        %2107 = vmatpush1.msra.mxu0 0.0
        %2108 = vmatprep.subr.mxu0 0.0
        %2109 = vmatpush1.msra.mxu0 0.0
        %2110 = vmatprep.subr.mxu0 0.0
        %2111 = vmatpush1.msra.mxu0 0.0
        %2112 = vmatprep.subr.mxu0 0.0
        %2113 = vmatpush1.msra.mxu0 0.0
        %2114 = vmatprep.subr.mxu0 0.0
        %2115 = vmatpush1.msra.mxu0 0.0
        %2116 = vmatprep.subr.mxu0 0.0
        %2117 = vmatpush1.msra.mxu0 0.0
        %2118 = vmatprep.subr.mxu0 0.0
        %2119 = vmatpush1.msra.mxu0 0.0
        %2120 = vmatprep.subr.mxu0 0.0
        %2121 = vmatpush1.msra.mxu0 0.0
        %2122 = vmatprep.subr.mxu0 0.0
        %2123 = vmatpush1.msra.mxu0 0.0
        %2124 = vmatprep.subr.mxu0 0.0
        %2125 = vmatpush1.msra.mxu0 0.0
        %2126 = vmatprep.mubr.f32.mxu0 0.0
        %2127 = vmatmul.mubr.f32.gmra.mrb[0].mxu0 %v2051
        %v2128 = vpop.f32.mrb[0].mxu0
        %v2129 = vadd.f32 0.0, %v2128
        %v2130 = vpop.f32.mrb[0].mxu0
        %2131 = vmatprep.mubr.f32.mxu0 0.0
        %2132 = vmatmul.mubr.f32.gmra.mrb[0].mxu0 %v2054
        %v2133 = vpop.f32.mrb[0].mxu0
        %v2134 = vadd.f32 0.0, %v2133
        %v2135 = vpop.f32.mrb[0].mxu0
        %2136 = vmatprep.mubr.f32.mxu0 0.0
        %2137 = vmatmul.mubr.f32.gmra.mrb[0].mxu0 %v2057
        %v2138 = vpop.f32.mrb[0].mxu0
        %v2139 = vadd.f32 0.0, %v2138
        %v2140 = vpop.f32.mrb[0].mxu0
        %2141 = vmatprep.mubr.f32.mxu0 0.0
        %2142 = vmatmul.mubr.f32.gmra.mrb[0].mxu0 %v2060
        %v2143 = vpop.f32.mrb[0].mxu0
        %v2144 = vadd.f32 0.0, %v2143
        %v2145 = vpop.f32.mrb[0].mxu0
        %2146 = vdwg.mxu0
        %2147 = vrot.lane.b32.xlu0 %v1344, 104
        %v2148 = vpop.permute.xlu0 %2147
        %2149 = vrot.lane.b32.xlu0 %v1345, 104
        %v2150 = vpop.permute.xlu0 %2149
        %2151 = vrot.lane.b32.xlu0 %v1346, 104
        %v2152 = vpop.permute.xlu0 %2151
        %2153 = vrot.lane.b32.xlu0 %v1347, 104
        %v2154 = vpop.permute.xlu0 %2153
        %2155 = vrot.lane.b32.xlu0 %v1344, 72
        %v2156 = vpop.permute.xlu0 %2155
        %2157 = vrot.lane.b32.xlu0 %v1345, 72
        %v2158 = vpop.permute.xlu0 %2157
        %2159 = vrot.lane.b32.xlu0 %v1346, 72
        %v2160 = vpop.permute.xlu0 %2159
        %2161 = vrot.lane.b32.xlu0 %v1347, 72
        %v2162 = vpop.permute.xlu0 %2161
        %v2163 = vsel %vm1360, %v2148, 0
        %v2165 = vsel %vm1360, %v2150, 0
        %v2167 = vsel %vm1360, %v2152, 0
        %v2169 = vsel %vm1360, %v2154, 0
        %v2171 = vsel %vm1360, %v2156, 0
        %v2173 = vsel %vm1360, %v2158, 0
        %v2175 = vsel %vm1360, %v2160, 0
        %v2177 = vsel %vm1360, %v2162, 0
        %2179 = vmatprep.subr.mxu0 0.0
        %2180 = vmatpush1.xpose.msra.mxu0 %v2171
        %2181 = vmatprep.subr.mxu0 0.0
        %2182 = vmatpush1.xpose.msra.mxu0 %v2173
        %2183 = vmatprep.subr.mxu0 0.0
        %2184 = vmatpush1.xpose.msra.mxu0 %v2175
        %2185 = vmatprep.subr.mxu0 0.0
        %2186 = vmatpush1.xpose.msra.mxu0 %v2177
        %2187 = vmatprep.subr.mxu0 0.0
        %2188 = vmatpush1.xpose.msra.mxu0 0.0
        %2189 = vmatprep.subr.mxu0 0.0
        %2190 = vmatpush1.xpose.msra.mxu0 0.0
        %2191 = vmatprep.subr.mxu0 0.0
        %2192 = vmatpush1.xpose.msra.mxu0 0.0
        %2193 = vmatprep.subr.mxu0 0.0
        %2194 = vmatpush1.xpose.msra.mxu0 0.0
        %2195 = vmatprep.subr.mxu0 0.0
        %2196 = vmatpush1.xpose.msra.mxu0 0.0
        %2197 = vmatprep.subr.mxu0 0.0
        %2198 = vmatpush1.xpose.msra.mxu0 0.0
        %2199 = vmatprep.subr.mxu0 0.0
        %2200 = vmatpush1.xpose.msra.mxu0 0.0
        %2201 = vmatprep.subr.mxu0 0.0
        %2202 = vmatpush1.xpose.msra.mxu0 0.0
        %2203 = vmatprep.subr.mxu0 0.0
        %2204 = vmatpush1.xpose.msra.mxu0 0.0
        %2205 = vmatprep.subr.mxu0 0.0
        %2206 = vmatpush1.xpose.msra.mxu0 0.0
        %2207 = vmatprep.subr.mxu0 0.0
        %2208 = vmatpush1.xpose.msra.mxu0 0.0
        %2209 = vmatprep.subr.mxu0 0.0
        %2210 = vmatpush1.xpose.msra.mxu0 0.0
        %2211 = vmatprep.subr.mxu0 0.0
        %2212 = vmatpush1.xpose.msra.mxu0 0.0
        %2213 = vmatprep.subr.mxu0 0.0
        %2214 = vmatpush1.xpose.msra.mxu0 0.0
        %2215 = vmatprep.subr.mxu0 0.0
        %2216 = vmatpush1.xpose.msra.mxu0 0.0
        %2217 = vmatprep.subr.mxu0 0.0
        %2218 = vmatpush1.xpose.msra.mxu0 0.0
        %2219 = vmatprep.subr.mxu0 0.0
        %2220 = vmatpush1.xpose.msra.mxu0 0.0
        %2221 = vmatprep.subr.mxu0 0.0
        %2222 = vmatpush1.xpose.msra.mxu0 0.0
        %2223 = vmatprep.subr.mxu0 0.0
        %2224 = vmatpush1.xpose.msra.mxu0 0.0
        %2225 = vmatprep.subr.mxu0 0.0
        %2226 = vmatpush1.xpose.msra.mxu0 0.0
        %2227 = vmatprep.subr.mxu0 0.0
        %2228 = vmatpush1.xpose.msra.mxu0 0.0
        %2229 = vmatprep.subr.mxu0 0.0
        %2230 = vmatpush1.xpose.msra.mxu0 0.0
        %2231 = vmatprep.subr.mxu0 0.0
        %2232 = vmatpush1.xpose.msra.mxu0 0.0
        %2233 = vmatprep.subr.mxu0 0.0
        %2234 = vmatpush1.xpose.msra.mxu0 0.0
        %2235 = vmatprep.subr.mxu0 0.0
        %2236 = vmatpush1.xpose.msra.mxu0 0.0
        %2237 = vmatprep.subr.mxu0 0.0
        %2238 = vmatpush1.xpose.msra.mxu0 0.0
        %2239 = vmatprep.subr.mxu0 0.0
        %2240 = vmatpush1.xpose.msra.mxu0 0.0
        %2241 = vmatprep.subr.mxu0 0.0
        %2242 = vmatpush1.xpose.msra.mxu0 0.0
        %2243 = vmatprep.mubr.f32.mxu0 0.0
        %2244 = vmatmul.mubr.f32.gmra.mrb[0].mxu0 %v2163
        %v2245 = vpop.f32.mrb[0].mxu0
        %v2246 = vadd.f32 %v1174, %v2245
        %v2247 = vpop.f32.mrb[0].mxu0
        %2248 = vmatprep.mubr.f32.mxu0 0.0
        %2249 = vmatmul.mubr.f32.gmra.mrb[0].mxu0 %v2165
        %v2250 = vpop.f32.mrb[0].mxu0
        %v2251 = vadd.f32 %v1175, %v2250
        %v2252 = vpop.f32.mrb[0].mxu0
        %2253 = vmatprep.mubr.f32.mxu0 0.0
        %2254 = vmatmul.mubr.f32.gmra.mrb[0].mxu0 %v2167
        %v2255 = vpop.f32.mrb[0].mxu0
        %v2256 = vadd.f32 %v1176, %v2255
        %v2257 = vpop.f32.mrb[0].mxu0
        %2258 = vmatprep.mubr.f32.mxu0 0.0
        %2259 = vmatmul.mubr.f32.gmra.mrb[0].mxu0 %v2169
        %v2260 = vpop.f32.mrb[0].mxu0
        %v2261 = vadd.f32 %v1177, %v2260
        %v2262 = vpop.f32.mrb[0].mxu0
        %2263 = vdwg.mxu0
        %v2264 = vsel %vm1202, %v2246, -inf
        %2265 = vmax.xlane.f32.xlu0 %v2264
        %v2266 = vpop.xlane.xlu0 %2265
        %v2267 = vsel %vm1202, %v2251, -inf
        %2268 = vmax.xlane.f32.xlu0 %v2267
        %v2269 = vpop.xlane.xlu0 %2268
        %v2270 = vsel %vm1202, %v2256, -inf
        %2271 = vmax.xlane.f32.xlu0 %v2270
        %v2272 = vpop.xlane.xlu0 %2271
        %v2273 = vsel %vm1202, %v2261, -inf
        %2274 = vmax.xlane.f32.xlu0 %v2273
        %v2275 = vpop.xlane.xlu0 %2274
        %v2276 = vsub.f32 %v2246, %v2266
        %v2277 = vsub.f32 %v2251, %v2269
        %v2278 = vsub.f32 %v2256, %v2272
        %v2279 = vsub.f32 %v2261, %v2275
        %v2280 = vmul.f32 %v2276, 1.442695
        %v2281 = vpow.pop %v2280
        %v2282 = vmul.f32 %v2277, 1.442695
        %v2283 = vpow.pop %v2282
        %v2284 = vmul.f32 %v2278, 1.442695
        %v2285 = vpow.pop %v2284
        %v2286 = vmul.f32 %v2279, 1.442695
        %v2287 = vpow.pop %v2286
        %v2288 = vsel %vm1202, %v2281, 0.0
        %2289 = vadd.xlane.f32.xlu0 %v2288
        %v2290 = vpop.xlane.xlu0 %2289
        %v2291 = vsel %vm1202, %v2283, 0.0
        %2292 = vadd.xlane.f32.xlu0 %v2291
        %v2293 = vpop.xlane.xlu0 %2292
        %v2294 = vsel %vm1202, %v2285, 0.0
        %2295 = vadd.xlane.f32.xlu0 %v2294
        %v2296 = vpop.xlane.xlu0 %2295
        %v2297 = vsel %vm1202, %v2287, 0.0
        %2298 = vadd.xlane.f32.xlu0 %v2297
        %v2299 = vpop.xlane.xlu0 %2298
        %v2300 = vrcp.pop %v2290
        %v2301 = vrcp.pop %v2293
        %v2302 = vrcp.pop %v2296
        %v2303 = vrcp.pop %v2299
        %v2304 = vmul.f32 %v2281, %v2300
        %v2305 = vmul.f32 %v2283, %v2301
        %v2306 = vmul.f32 %v2285, %v2302
        %v2307 = vmul.f32 %v2287, %v2303
        %2308 = vrot.lane.b32.xlu0 %v1284, 104
        %v2309 = vpop.permute.xlu0 %2308
        %2310 = vrot.lane.b32.xlu0 %v1290, 104
        %v2311 = vpop.permute.xlu0 %2310
        %2312 = vrot.lane.b32.xlu0 %v1296, 104
        %v2313 = vpop.permute.xlu0 %2312
        %2314 = vrot.lane.b32.xlu0 %v1302, 104
        %v2315 = vpop.permute.xlu0 %2314
        %v2321 = vsel %vm1202, %v2304, 0
        %v2324 = vsel %vm1202, %v2305, 0
        %v2327 = vsel %vm1202, %v2306, 0
        %v2330 = vsel %vm1202, %v2307, 0
        %2332 = vmatprep.subr.mxu0 0.0
        %2333 = vmatpush1.msra.mxu0 %v2309
        %2334 = vmatprep.subr.mxu0 0.0
        %2335 = vmatpush1.msra.mxu0 %v2311
        %2336 = vmatprep.subr.mxu0 0.0
        %2337 = vmatpush1.msra.mxu0 %v2313
        %2338 = vmatprep.subr.mxu0 0.0
        %2339 = vmatpush1.msra.mxu0 %v2315
        %2340 = vmatprep.subr.mxu0 0.0
        %2341 = vmatpush1.msra.mxu0 0.0
        %2342 = vmatprep.subr.mxu0 0.0
        %2343 = vmatpush1.msra.mxu0 0.0
        %2344 = vmatprep.subr.mxu0 0.0
        %2345 = vmatpush1.msra.mxu0 0.0
        %2346 = vmatprep.subr.mxu0 0.0
        %2347 = vmatpush1.msra.mxu0 0.0
        %2348 = vmatprep.subr.mxu0 0.0
        %2349 = vmatpush1.msra.mxu0 0.0
        %2350 = vmatprep.subr.mxu0 0.0
        %2351 = vmatpush1.msra.mxu0 0.0
        %2352 = vmatprep.subr.mxu0 0.0
        %2353 = vmatpush1.msra.mxu0 0.0
        %2354 = vmatprep.subr.mxu0 0.0
        %2355 = vmatpush1.msra.mxu0 0.0
        %2356 = vmatprep.subr.mxu0 0.0
        %2357 = vmatpush1.msra.mxu0 0.0
        %2358 = vmatprep.subr.mxu0 0.0
        %2359 = vmatpush1.msra.mxu0 0.0
        %2360 = vmatprep.subr.mxu0 0.0
        %2361 = vmatpush1.msra.mxu0 0.0
        %2362 = vmatprep.subr.mxu0 0.0
        %2363 = vmatpush1.msra.mxu0 0.0
        %2364 = vmatprep.subr.mxu0 0.0
        %2365 = vmatpush1.msra.mxu0 0.0
        %2366 = vmatprep.subr.mxu0 0.0
        %2367 = vmatpush1.msra.mxu0 0.0
        %2368 = vmatprep.subr.mxu0 0.0
        %2369 = vmatpush1.msra.mxu0 0.0
        %2370 = vmatprep.subr.mxu0 0.0
        %2371 = vmatpush1.msra.mxu0 0.0
        %2372 = vmatprep.subr.mxu0 0.0
        %2373 = vmatpush1.msra.mxu0 0.0
        %2374 = vmatprep.subr.mxu0 0.0
        %2375 = vmatpush1.msra.mxu0 0.0
        %2376 = vmatprep.subr.mxu0 0.0
        %2377 = vmatpush1.msra.mxu0 0.0
        %2378 = vmatprep.subr.mxu0 0.0
        %2379 = vmatpush1.msra.mxu0 0.0
        %2380 = vmatprep.subr.mxu0 0.0
        %2381 = vmatpush1.msra.mxu0 0.0
        %2382 = vmatprep.subr.mxu0 0.0
        %2383 = vmatpush1.msra.mxu0 0.0
        %2384 = vmatprep.subr.mxu0 0.0
        %2385 = vmatpush1.msra.mxu0 0.0
        %2386 = vmatprep.subr.mxu0 0.0
        %2387 = vmatpush1.msra.mxu0 0.0
        %2388 = vmatprep.subr.mxu0 0.0
        %2389 = vmatpush1.msra.mxu0 0.0
        %2390 = vmatprep.subr.mxu0 0.0
        %2391 = vmatpush1.msra.mxu0 0.0
        %2392 = vmatprep.subr.mxu0 0.0
        %2393 = vmatpush1.msra.mxu0 0.0
        %2394 = vmatprep.subr.mxu0 0.0
        %2395 = vmatpush1.msra.mxu0 0.0
        %2396 = vmatprep.mubr.f32.mxu0 0.0
        %2397 = vmatmul.mubr.f32.gmra.mrb[0].mxu0 %v2321
        %v2398 = vpop.f32.mrb[0].mxu0
        %v2399 = vadd.f32 0.0, %v2398
        %v2400 = vpop.f32.mrb[0].mxu0
        %2401 = vmatprep.mubr.f32.mxu0 0.0
        %2402 = vmatmul.mubr.f32.gmra.mrb[0].mxu0 %v2324
        %v2403 = vpop.f32.mrb[0].mxu0
        %v2404 = vadd.f32 0.0, %v2403
        %v2405 = vpop.f32.mrb[0].mxu0
        %2406 = vmatprep.mubr.f32.mxu0 0.0
        %2407 = vmatmul.mubr.f32.gmra.mrb[0].mxu0 %v2327
        %v2408 = vpop.f32.mrb[0].mxu0
        %v2409 = vadd.f32 0.0, %v2408
        %v2410 = vpop.f32.mrb[0].mxu0
        %2411 = vmatprep.mubr.f32.mxu0 0.0
        %2412 = vmatmul.mubr.f32.gmra.mrb[0].mxu0 %v2330
        %v2413 = vpop.f32.mrb[0].mxu0
        %v2414 = vadd.f32 0.0, %v2413
        %v2415 = vpop.f32.mrb[0].mxu0
        %2416 = vdwg.mxu0
        %2421 = vrot.lane.b32.xlu0 %v1859, 8
        %v2422 = vpop.permute.xlu0 %2421
        %2423 = vrot.lane.b32.xlu0 %v1864, 8
        %v2424 = vpop.permute.xlu0 %2423
        %2425 = vrot.lane.b32.xlu0 %v1869, 8
        %v2426 = vpop.permute.xlu0 %2425
        %2427 = vrot.lane.b32.xlu0 %v1874, 8
        %v2428 = vpop.permute.xlu0 %2427
        %2437 = vrot.lane.b32.xlu0 %v2129, 16
        %v2438 = vpop.permute.xlu0 %2437
        %2439 = vrot.lane.b32.xlu0 %v2134, 16
        %v2440 = vpop.permute.xlu0 %2439
        %2441 = vrot.lane.b32.xlu0 %v2139, 16
        %v2442 = vpop.permute.xlu0 %2441
        %2443 = vrot.lane.b32.xlu0 %v2144, 16
        %v2444 = vpop.permute.xlu0 %2443
        %2453 = vrot.lane.b32.xlu0 %v2399, 24
        %v2454 = vpop.permute.xlu0 %2453
        %2455 = vrot.lane.b32.xlu0 %v2404, 24
        %v2456 = vpop.permute.xlu0 %2455
        %2457 = vrot.lane.b32.xlu0 %v2409, 24
        %v2458 = vpop.permute.xlu0 %2457
        %2459 = vrot.lane.b32.xlu0 %v2414, 24
        %v2460 = vpop.permute.xlu0 %2459
        %v2465 = vsel %vm1360, %v1585, %v2422
        %v2466 = vsel %vm1360, %v1590, %v2424
        %v2467 = vsel %vm1360, %v1595, %v2426
        %v2468 = vsel %vm1360, %v1600, %v2428
        %vm2469 = vcmask 130048
        %v2470 = vsel %vm2469, %v2465, %v2438
        %v2471 = vsel %vm2469, %v2466, %v2440
        %v2472 = vsel %vm2469, %v2467, %v2442
        %v2473 = vsel %vm2469, %v2468, %v2444
        %vm2474 = vcmask 195584
        %v2475 = vsel %vm2474, %v2470, %v2454
        %v2476 = vsel %vm2474, %v2471, %v2456
        %v2477 = vsel %vm2474, %v2472, %v2458
        %v2478 = vsel %vm2474, %v2473, %v2460
        %v2479 = vld [vmem:[#allocation8] sm:$0xff]
        %v2480 = vld [vmem:[#allocation8 + $0x8] sm:$0xff]
        %v2481 = vld [vmem:[#allocation8 + $0x10] sm:$0xff]
        %v2482 = vld [vmem:[#allocation8 + $0x18] sm:$0xff]
        %v2483 = vld [vmem:[#allocation10] sm:$0x1]
        %v2485 = vlaneseq
        %v2486 = vshrl.u32 %v2485, 7
        %v2487 = vsub.s32 0, %v2486
        %v2488 = vrot.slane %v2483, %v2487
        %v2491 = vsel %vm1202, %v2475, 0
        %v2494 = vsel %vm1202, %v2476, 0
        %v2497 = vsel %vm1202, %v2477, 0
        %v2500 = vsel %vm1202, %v2478, 0
        %2502 = vmatprep.subr.mxu0 0.0
        %2503 = vmatpush1.msra.mxu0 %v2479
        %2504 = vmatprep.subr.mxu0 0.0
        %2505 = vmatpush1.msra.mxu0 %v2480
        %2506 = vmatprep.subr.mxu0 0.0
        %2507 = vmatpush1.msra.mxu0 %v2481
        %2508 = vmatprep.subr.mxu0 0.0
        %2509 = vmatpush1.msra.mxu0 %v2482
        %2510 = vmatprep.subr.mxu0 0.0
        %2511 = vmatpush1.msra.mxu0 0.0
        %2512 = vmatprep.subr.mxu0 0.0
        %2513 = vmatpush1.msra.mxu0 0.0
        %2514 = vmatprep.subr.mxu0 0.0
        %2515 = vmatpush1.msra.mxu0 0.0
        %2516 = vmatprep.subr.mxu0 0.0
        %2517 = vmatpush1.msra.mxu0 0.0
        %2518 = vmatprep.subr.mxu0 0.0
        %2519 = vmatpush1.msra.mxu0 0.0
        %2520 = vmatprep.subr.mxu0 0.0
        %2521 = vmatpush1.msra.mxu0 0.0
        %2522 = vmatprep.subr.mxu0 0.0
        %2523 = vmatpush1.msra.mxu0 0.0
        %2524 = vmatprep.subr.mxu0 0.0
        %2525 = vmatpush1.msra.mxu0 0.0
        %2526 = vmatprep.subr.mxu0 0.0
        %2527 = vmatpush1.msra.mxu0 0.0
        %2528 = vmatprep.subr.mxu0 0.0
        %2529 = vmatpush1.msra.mxu0 0.0
        %2530 = vmatprep.subr.mxu0 0.0
        %2531 = vmatpush1.msra.mxu0 0.0
        %2532 = vmatprep.subr.mxu0 0.0
        %2533 = vmatpush1.msra.mxu0 0.0
        %2534 = vmatprep.subr.mxu0 0.0
        %2535 = vmatpush1.msra.mxu0 0.0
        %2536 = vmatprep.subr.mxu0 0.0
        %2537 = vmatpush1.msra.mxu0 0.0
        %2538 = vmatprep.subr.mxu0 0.0
        %2539 = vmatpush1.msra.mxu0 0.0
        %2540 = vmatprep.subr.mxu0 0.0
        %2541 = vmatpush1.msra.mxu0 0.0
        %2542 = vmatprep.subr.mxu0 0.0
        %2543 = vmatpush1.msra.mxu0 0.0
        %2544 = vmatprep.subr.mxu0 0.0
        %2545 = vmatpush1.msra.mxu0 0.0
        %2546 = vmatprep.subr.mxu0 0.0
        %2547 = vmatpush1.msra.mxu0 0.0
        %2548 = vmatprep.subr.mxu0 0.0
        %2549 = vmatpush1.msra.mxu0 0.0
        %2550 = vmatprep.subr.mxu0 0.0
        %2551 = vmatpush1.msra.mxu0 0.0
        %2552 = vmatprep.subr.mxu0 0.0
        %2553 = vmatpush1.msra.mxu0 0.0
        %2554 = vmatprep.subr.mxu0 0.0
        %2555 = vmatpush1.msra.mxu0 0.0
        %2556 = vmatprep.subr.mxu0 0.0
        %2557 = vmatpush1.msra.mxu0 0.0
        %2558 = vmatprep.subr.mxu0 0.0
        %2559 = vmatpush1.msra.mxu0 0.0
        %2560 = vmatprep.subr.mxu0 0.0
        %2561 = vmatpush1.msra.mxu0 0.0
        %2562 = vmatprep.subr.mxu0 0.0
        %2563 = vmatpush1.msra.mxu0 0.0
        %2564 = vmatprep.subr.mxu0 0.0
        %2565 = vmatpush1.msra.mxu0 0.0
        %2566 = vmatprep.mubr.f32.mxu0 0.0
        %2567 = vmatmul.mubr.f32.gmra.mrb[0].mxu0 %v2491
        %v2568 = vpop.f32.mrb[0].mxu0
        %v2569 = vadd.f32 %v2488, %v2568
        %v2570 = vpop.f32.mrb[0].mxu0
        %2571 = vmatprep.mubr.f32.mxu0 0.0
        %2572 = vmatmul.mubr.f32.gmra.mrb[0].mxu0 %v2494
        %v2573 = vpop.f32.mrb[0].mxu0
        %v2574 = vadd.f32 %v2488, %v2573
        %v2575 = vpop.f32.mrb[0].mxu0
        %2576 = vmatprep.mubr.f32.mxu0 0.0
        %2577 = vmatmul.mubr.f32.gmra.mrb[0].mxu0 %v2497
        %v2578 = vpop.f32.mrb[0].mxu0
        %v2579 = vadd.f32 %v2488, %v2578
        %v2580 = vpop.f32.mrb[0].mxu0
        %2581 = vmatprep.mubr.f32.mxu0 0.0
        %2582 = vmatmul.mubr.f32.gmra.mrb[0].mxu0 %v2500
        %v2583 = vpop.f32.mrb[0].mxu0
        %v2584 = vadd.f32 %v2488, %v2583
        %v2585 = vpop.f32.mrb[0].mxu0
        %2586 = vdwg.mxu0
        %v2587 = vld [vmem:[#allocation11] sm:$0xff]
        %v2588 = vld [vmem:[#allocation11 + $0x8] sm:$0xff]
        %v2589 = vld [vmem:[#allocation11 + $0x10] sm:$0xff]
        %v2590 = vld [vmem:[#allocation11 + $0x18] sm:$0xff]
        %v2591 = vld [vmem:[#allocation13] sm:$0xff]
        %v2592 = vld [vmem:[#allocation13 + $0x8] sm:$0xff]
        %v2593 = vld [vmem:[#allocation13 + $0x10] sm:$0xff]
        %v2594 = vld [vmem:[#allocation13 + $0x18] sm:$0xff]
        %v2595 = vld [vmem:[#allocation14] sm:$0x1]
        %v2596 = vld [vmem:[#allocation16] sm:$0x1]
        %v2597 = vld [vmem:[#allocation17] sm:$0x1]
        %v2598 = vld [vmem:[%s13] sm:$0xff]
        %v2599 = vld [vmem:[%s13 + $0x8] sm:$0xff]
        %v2600 = vld [vmem:[%s13 + $0x10] sm:$0xff]
        %v2601 = vld [vmem:[%s13 + $0x18] sm:$0xff]
        %v2602 = vld [vmem:[%s13 + $0x20] sm:$0xff]
        %v2603 = vld [vmem:[%s13 + $0x28] sm:$0xff]
        %v2604 = vld [vmem:[%s13 + $0x30] sm:$0xff]
        %v2605 = vld [vmem:[%s13 + $0x38] sm:$0xff]
        %v2606 = vld [vmem:[#allocation19] sm:$0x1]
        %v2608 = vsel %vm1202, %v2569, 0
        %v2611 = vsel %vm1202, %v2574, 0
        %v2614 = vsel %vm1202, %v2579, 0
        %v2617 = vsel %vm1202, %v2584, 0
        %2619 = vmatprep.subr.mxu0 0.0
        %2620 = vmatpush1.msra.mxu0 %v2591
        %2621 = vmatprep.subr.mxu0 0.0
        %2622 = vmatpush1.msra.mxu0 %v2592
        %2623 = vmatprep.subr.mxu0 0.0
        %2624 = vmatpush1.msra.mxu0 %v2593
        %2625 = vmatprep.subr.mxu0 0.0
        %2626 = vmatpush1.msra.mxu0 %v2594
        %2627 = vmatprep.subr.mxu0 0.0
        %2628 = vmatpush1.msra.mxu0 0.0
        %2629 = vmatprep.subr.mxu0 0.0
        %2630 = vmatpush1.msra.mxu0 0.0
        %2631 = vmatprep.subr.mxu0 0.0
        %2632 = vmatpush1.msra.mxu0 0.0
        %2633 = vmatprep.subr.mxu0 0.0
        %2634 = vmatpush1.msra.mxu0 0.0
        %2635 = vmatprep.subr.mxu0 0.0
        %2636 = vmatpush1.msra.mxu0 0.0
        %2637 = vmatprep.subr.mxu0 0.0
        %2638 = vmatpush1.msra.mxu0 0.0
        %2639 = vmatprep.subr.mxu0 0.0
        %2640 = vmatpush1.msra.mxu0 0.0
        %2641 = vmatprep.subr.mxu0 0.0
        %2642 = vmatpush1.msra.mxu0 0.0
        %2643 = vmatprep.subr.mxu0 0.0
        %2644 = vmatpush1.msra.mxu0 0.0
        %2645 = vmatprep.subr.mxu0 0.0
        %2646 = vmatpush1.msra.mxu0 0.0
        %2647 = vmatprep.subr.mxu0 0.0
        %2648 = vmatpush1.msra.mxu0 0.0
        %2649 = vmatprep.subr.mxu0 0.0
        %2650 = vmatpush1.msra.mxu0 0.0
        %2651 = vmatprep.subr.mxu0 0.0
        %2652 = vmatpush1.msra.mxu0 0.0
        %2653 = vmatprep.subr.mxu0 0.0
        %2654 = vmatpush1.msra.mxu0 0.0
        %2655 = vmatprep.subr.mxu0 0.0
        %2656 = vmatpush1.msra.mxu0 0.0
        %2657 = vmatprep.subr.mxu0 0.0
        %2658 = vmatpush1.msra.mxu0 0.0
        %2659 = vmatprep.subr.mxu0 0.0
        %2660 = vmatpush1.msra.mxu0 0.0
        %2661 = vmatprep.subr.mxu0 0.0
        %2662 = vmatpush1.msra.mxu0 0.0
        %2663 = vmatprep.subr.mxu0 0.0
        %2664 = vmatpush1.msra.mxu0 0.0
        %2665 = vmatprep.subr.mxu0 0.0
        %2666 = vmatpush1.msra.mxu0 0.0
        %2667 = vmatprep.subr.mxu0 0.0
        %2668 = vmatpush1.msra.mxu0 0.0
        %2669 = vmatprep.subr.mxu0 0.0
        %2670 = vmatpush1.msra.mxu0 0.0
        %2671 = vmatprep.subr.mxu0 0.0
        %2672 = vmatpush1.msra.mxu0 0.0
        %2673 = vmatprep.subr.mxu0 0.0
        %2674 = vmatpush1.msra.mxu0 0.0
        %2675 = vmatprep.subr.mxu0 0.0
        %2676 = vmatpush1.msra.mxu0 0.0
        %2677 = vmatprep.subr.mxu0 0.0
        %2678 = vmatpush1.msra.mxu0 0.0
        %2679 = vmatprep.subr.mxu0 0.0
        %2680 = vmatpush1.msra.mxu0 0.0
        %2681 = vmatprep.subr.mxu0 0.0
        %2682 = vmatpush1.msra.mxu0 0.0
        %2683 = vmatprep.mubr.f32.mxu0 0.0
        %2684 = vmatmul.mubr.f32.gmra.mrb[0].mxu0 %v2608
        %v2685 = vpop.f32.mrb[0].mxu0
        %v2686 = vadd.f32 0.0, %v2685
        %v2687 = vpop.f32.mrb[0].mxu0
        %2688 = vmatprep.mubr.f32.mxu0 0.0
        %2689 = vmatmul.mubr.f32.gmra.mrb[0].mxu0 %v2611
        %v2690 = vpop.f32.mrb[0].mxu0
        %v2691 = vadd.f32 0.0, %v2690
        %v2692 = vpop.f32.mrb[0].mxu0
        %2693 = vmatprep.mubr.f32.mxu0 0.0
        %2694 = vmatmul.mubr.f32.gmra.mrb[0].mxu0 %v2614
        %v2695 = vpop.f32.mrb[0].mxu0
        %v2696 = vadd.f32 0.0, %v2695
        %v2697 = vpop.f32.mrb[0].mxu0
        %2698 = vmatprep.mubr.f32.mxu0 0.0
        %2699 = vmatmul.mubr.f32.gmra.mrb[0].mxu0 %v2617
        %v2700 = vpop.f32.mrb[0].mxu0
        %v2701 = vadd.f32 0.0, %v2700
        %v2702 = vpop.f32.mrb[0].mxu0
        %2703 = vdwg.mxu0
        %2704 = vmatprep.subr.mxu0 0.0
        %2705 = vmatpush1.msra.mxu0 %v2587
        %2706 = vmatprep.subr.mxu0 0.0
        %2707 = vmatpush1.msra.mxu0 %v2588
        %2708 = vmatprep.subr.mxu0 0.0
        %2709 = vmatpush1.msra.mxu0 %v2589
        %2710 = vmatprep.subr.mxu0 0.0
        %2711 = vmatpush1.msra.mxu0 %v2590
        %2712 = vmatprep.subr.mxu0 0.0
        %2713 = vmatpush1.msra.mxu0 0.0
        %2714 = vmatprep.subr.mxu0 0.0
        %2715 = vmatpush1.msra.mxu0 0.0
        %2716 = vmatprep.subr.mxu0 0.0
        %2717 = vmatpush1.msra.mxu0 0.0
        %2718 = vmatprep.subr.mxu0 0.0
        %2719 = vmatpush1.msra.mxu0 0.0
        %2720 = vmatprep.subr.mxu0 0.0
        %2721 = vmatpush1.msra.mxu0 0.0
        %2722 = vmatprep.subr.mxu0 0.0
        %2723 = vmatpush1.msra.mxu0 0.0
        %2724 = vmatprep.subr.mxu0 0.0
        %2725 = vmatpush1.msra.mxu0 0.0
        %2726 = vmatprep.subr.mxu0 0.0
        %2727 = vmatpush1.msra.mxu0 0.0
        %2728 = vmatprep.subr.mxu0 0.0
        %2729 = vmatpush1.msra.mxu0 0.0
        %2730 = vmatprep.subr.mxu0 0.0
        %2731 = vmatpush1.msra.mxu0 0.0
        %2732 = vmatprep.subr.mxu0 0.0
        %2733 = vmatpush1.msra.mxu0 0.0
        %2734 = vmatprep.subr.mxu0 0.0
        %2735 = vmatpush1.msra.mxu0 0.0
        %2736 = vmatprep.subr.mxu0 0.0
        %2737 = vmatpush1.msra.mxu0 0.0
        %2738 = vmatprep.subr.mxu0 0.0
        %2739 = vmatpush1.msra.mxu0 0.0
        %2740 = vmatprep.subr.mxu0 0.0
        %2741 = vmatpush1.msra.mxu0 0.0
        %2742 = vmatprep.subr.mxu0 0.0
        %2743 = vmatpush1.msra.mxu0 0.0
        %2744 = vmatprep.subr.mxu0 0.0
        %2745 = vmatpush1.msra.mxu0 0.0
        %2746 = vmatprep.subr.mxu0 0.0
        %2747 = vmatpush1.msra.mxu0 0.0
        %2748 = vmatprep.subr.mxu0 0.0
        %2749 = vmatpush1.msra.mxu0 0.0
        %2750 = vmatprep.subr.mxu0 0.0
        %2751 = vmatpush1.msra.mxu0 0.0
        %2752 = vmatprep.subr.mxu0 0.0
        %2753 = vmatpush1.msra.mxu0 0.0
        %2754 = vmatprep.subr.mxu0 0.0
        %2755 = vmatpush1.msra.mxu0 0.0
        %2756 = vmatprep.subr.mxu0 0.0
        %2757 = vmatpush1.msra.mxu0 0.0
        %2758 = vmatprep.subr.mxu0 0.0
        %2759 = vmatpush1.msra.mxu0 0.0
        %2760 = vmatprep.subr.mxu0 0.0
        %2761 = vmatpush1.msra.mxu0 0.0
        %2762 = vmatprep.subr.mxu0 0.0
        %2763 = vmatpush1.msra.mxu0 0.0
        %2764 = vmatprep.subr.mxu0 0.0
        %2765 = vmatpush1.msra.mxu0 0.0
        %2766 = vmatprep.subr.mxu0 0.0
        %2767 = vmatpush1.msra.mxu0 0.0
        %2768 = vmatprep.mubr.f32.mxu0 0.0
        %2769 = vmatmul.mubr.f32.gmra.mrb[0].mxu0 %v1204
        %v2770 = vpop.f32.mrb[0].mxu0
        %v2771 = vadd.f32 %v2686, %v2770
        %v2772 = vpop.f32.mrb[0].mxu0
        %2773 = vmatprep.mubr.f32.mxu0 0.0
        %2774 = vmatmul.mubr.f32.gmra.mrb[0].mxu0 %v1207
        %v2775 = vpop.f32.mrb[0].mxu0
        %v2776 = vadd.f32 %v2691, %v2775
        %v2777 = vpop.f32.mrb[0].mxu0
        %2778 = vmatprep.mubr.f32.mxu0 0.0
        %2779 = vmatmul.mubr.f32.gmra.mrb[0].mxu0 %v1210
        %v2780 = vpop.f32.mrb[0].mxu0
        %v2781 = vadd.f32 %v2696, %v2780
        %v2782 = vpop.f32.mrb[0].mxu0
        %2783 = vmatprep.mubr.f32.mxu0 0.0
        %2784 = vmatmul.mubr.f32.gmra.mrb[0].mxu0 %v1213
        %v2785 = vpop.f32.mrb[0].mxu0
        %v2786 = vadd.f32 %v2701, %v2785
        %v2787 = vpop.f32.mrb[0].mxu0
        %2788 = vdwg.mxu0
        %v2790 = vlaneseq
        %v2791 = vshrl.u32 %v2790, 7
        %v2792 = vsub.s32 0, %v2791
        %v2793 = vrot.slane %v2595, %v2792
        %v2795 = vadd.f32 %v2771, %v2793
        %v2796 = vadd.f32 %v2776, %v2793
        %v2797 = vadd.f32 %v2781, %v2793
        %v2798 = vadd.f32 %v2786, %v2793
        %vm2799 = vcmask 523264
        %v2800 = vsel %vm2799, %v2795, 0.0
        %2801 = vadd.xlane.f32.xlu0 %v2800
        %v2802 = vpop.xlane.xlu0 %2801
        %v2803 = vsel %vm2799, %v2796, 0.0
        %2804 = vadd.xlane.f32.xlu0 %v2803
        %v2805 = vpop.xlane.xlu0 %2804
        %v2806 = vsel %vm2799, %v2797, 0.0
        %2807 = vadd.xlane.f32.xlu0 %v2806
        %v2808 = vpop.xlane.xlu0 %2807
        %v2809 = vsel %vm2799, %v2798, 0.0
        %2810 = vadd.xlane.f32.xlu0 %v2809
        %v2811 = vpop.xlane.xlu0 %2810
        %v2812 = vrcp.pop 64.0
        %v2813 = vmul.f32 %v2802, %v2812
        %v2814 = vmul.f32 %v2805, %v2812
        %v2815 = vmul.f32 %v2808, %v2812
        %v2816 = vmul.f32 %v2811, %v2812
        %v2817 = vsub.f32 %v2795, %v2813
        %v2818 = vsub.f32 %v2796, %v2814
        %v2819 = vsub.f32 %v2797, %v2815
        %v2820 = vsub.f32 %v2798, %v2816
        %v2821 = vmul.f32 %v2817, %v2817
        %v2822 = vmul.f32 %v2818, %v2818
        %v2823 = vmul.f32 %v2819, %v2819
        %v2824 = vmul.f32 %v2820, %v2820
        %v2825 = vsel %vm2799, %v2821, 0.0
        %2826 = vadd.xlane.f32.xlu0 %v2825
        %v2827 = vpop.xlane.xlu0 %2826
        %v2828 = vsel %vm2799, %v2822, 0.0
        %2829 = vadd.xlane.f32.xlu0 %v2828
        %v2830 = vpop.xlane.xlu0 %2829
        %v2831 = vsel %vm2799, %v2823, 0.0
        %2832 = vadd.xlane.f32.xlu0 %v2831
        %v2833 = vpop.xlane.xlu0 %2832
        %v2834 = vsel %vm2799, %v2824, 0.0
        %2835 = vadd.xlane.f32.xlu0 %v2834
        %v2836 = vpop.xlane.xlu0 %2835
        %v2837 = vmul.f32 %v2827, %v2812
        %v2838 = vmul.f32 %v2830, %v2812
        %v2839 = vmul.f32 %v2833, %v2812
        %v2840 = vmul.f32 %v2836, %v2812
        %v2841 = vadd.f32 %v2837, 1e-05
        %v2842 = vadd.f32 %v2838, 1e-05
        %v2843 = vadd.f32 %v2839, 1e-05
        %v2844 = vadd.f32 %v2840, 1e-05
        %v2845 = vrsqrt.pop %v2841
        %v2846 = vrsqrt.pop %v2842
        %v2847 = vrsqrt.pop %v2843
        %v2848 = vrsqrt.pop %v2844
        %v2849 = vmul.f32 %v2817, %v2845
        %v2850 = vmul.f32 %v2818, %v2846
        %v2851 = vmul.f32 %v2819, %v2847
        %v2852 = vmul.f32 %v2820, %v2848
        %v2854 = vlaneseq
        %v2855 = vshrl.u32 %v2854, 7
        %v2856 = vsub.s32 0, %v2855
        %v2857 = vrot.slane %v2596, %v2856
        %v2859 = vmul.f32 %v2849, %v2857
        %v2860 = vmul.f32 %v2850, %v2857
        %v2861 = vmul.f32 %v2851, %v2857
        %v2862 = vmul.f32 %v2852, %v2857
        %v2864 = vlaneseq
        %v2865 = vshrl.u32 %v2864, 7
        %v2866 = vsub.s32 0, %v2865
        %v2867 = vrot.slane %v2597, %v2866
        %v2869 = vadd.f32 %v2859, %v2867
        %v2870 = vadd.f32 %v2860, %v2867
        %v2871 = vadd.f32 %v2861, %v2867
        %v2872 = vadd.f32 %v2862, %v2867
        %v2873 = vmul.f32 %v2869, 0.5
        %v2874 = vmul.f32 %v2870, 0.5
        %v2875 = vmul.f32 %v2871, 0.5
        %v2876 = vmul.f32 %v2872, 0.5
        %v2877 = vmul.f32 %v2869, 0.70710677
        %v2878 = vmul.f32 %v2870, 0.70710677
        %v2879 = vmul.f32 %v2871, 0.70710677
        %v2880 = vmul.f32 %v2872, 0.70710677
        %vm2881 = vcmp.lt.f32.partialorder %v2877, 0.0
        %vm2882 = vcmp.lt.f32.partialorder %v2878, 0.0
        %vm2883 = vcmp.lt.f32.partialorder %v2879, 0.0
        %vm2884 = vcmp.lt.f32.partialorder %v2880, 0.0
        %v2885 = vsel %vm2881, -1.0, 1.0
        %v2886 = vsel %vm2882, -1.0, 1.0
        %v2887 = vsel %vm2883, -1.0, 1.0
        %v2888 = vsel %vm2884, -1.0, 1.0
        %v2889 = vand.u32 2147483647, %v2877
        %v2890 = vand.u32 2147483647, %v2878
        %v2891 = vand.u32 2147483647, %v2879
        %v2892 = vand.u32 2147483647, %v2880
        %v2893 = vmul.f32 %v2889, 0.3275911
        %v2894 = vmul.f32 %v2890, 0.3275911
        %v2895 = vmul.f32 %v2891, 0.3275911
        %v2896 = vmul.f32 %v2892, 0.3275911
        %v2897 = vadd.f32 %v2893, 1.0
        %v2898 = vadd.f32 %v2894, 1.0
        %v2899 = vadd.f32 %v2895, 1.0
        %v2900 = vadd.f32 %v2896, 1.0
        %v2901 = vrcp.pop %v2897
        %v2902 = vmul.f32 1.0, %v2901
        %v2903 = vrcp.pop %v2898
        %v2904 = vmul.f32 1.0, %v2903
        %v2905 = vrcp.pop %v2899
        %v2906 = vmul.f32 1.0, %v2905
        %v2907 = vrcp.pop %v2900
        %v2908 = vmul.f32 1.0, %v2907
        %v2909 = vmul.f32 %v2902, 1.0614054
        %v2910 = vmul.f32 %v2904, 1.0614054
        %v2911 = vmul.f32 %v2906, 1.0614054
        %v2912 = vmul.f32 %v2908, 1.0614054
        %v2913 = vadd.f32 %v2909, -1.4531521
        %v2914 = vadd.f32 %v2910, -1.4531521
        %v2915 = vadd.f32 %v2911, -1.4531521
        %v2916 = vadd.f32 %v2912, -1.4531521
        %v2917 = vmul.f32 %v2902, %v2913
        %v2918 = vmul.f32 %v2904, %v2914
        %v2919 = vmul.f32 %v2906, %v2915
        %v2920 = vmul.f32 %v2908, %v2916
        %v2921 = vadd.f32 %v2917, 1.4214138
        %v2922 = vadd.f32 %v2918, 1.4214138
        %v2923 = vadd.f32 %v2919, 1.4214138
        %v2924 = vadd.f32 %v2920, 1.4214138
        %v2925 = vmul.f32 %v2902, %v2921
        %v2926 = vmul.f32 %v2904, %v2922
        %v2927 = vmul.f32 %v2906, %v2923
        %v2928 = vmul.f32 %v2908, %v2924
        %v2929 = vadd.f32 %v2925, -0.28449672
        %v2930 = vadd.f32 %v2926, -0.28449672
        %v2931 = vadd.f32 %v2927, -0.28449672
        %v2932 = vadd.f32 %v2928, -0.28449672
        %v2933 = vmul.f32 %v2902, %v2929
        %v2934 = vmul.f32 %v2904, %v2930
        %v2935 = vmul.f32 %v2906, %v2931
        %v2936 = vmul.f32 %v2908, %v2932
        %v2937 = vadd.f32 %v2933, 0.2548296
        %v2938 = vadd.f32 %v2934, 0.2548296
        %v2939 = vadd.f32 %v2935, 0.2548296
        %v2940 = vadd.f32 %v2936, 0.2548296
        %v2941 = vmul.f32 %v2902, %v2937
        %v2942 = vmul.f32 %v2904, %v2938
        %v2943 = vmul.f32 %v2906, %v2939
        %v2944 = vmul.f32 %v2908, %v2940
        %v2945 = vsub.f32 0.0, %v2889
        %v2946 = vsub.f32 0.0, %v2890
        %v2947 = vsub.f32 0.0, %v2891
        %v2948 = vsub.f32 0.0, %v2892
        %v2949 = vmul.f32 %v2945, %v2889
        %v2950 = vmul.f32 %v2946, %v2890
        %v2951 = vmul.f32 %v2947, %v2891
        %v2952 = vmul.f32 %v2948, %v2892
        %v2953 = vmul.f32 %v2949, 1.442695
        %v2954 = vpow.pop %v2953
        %v2955 = vmul.f32 %v2950, 1.442695
        %v2956 = vpow.pop %v2955
        %v2957 = vmul.f32 %v2951, 1.442695
        %v2958 = vpow.pop %v2957
        %v2959 = vmul.f32 %v2952, 1.442695
        %v2960 = vpow.pop %v2959
        %v2961 = vmul.f32 %v2941, %v2954
        %v2962 = vmul.f32 %v2942, %v2956
        %v2963 = vmul.f32 %v2943, %v2958
        %v2964 = vmul.f32 %v2944, %v2960
        %v2965 = vsub.f32 1.0, %v2961
        %v2966 = vsub.f32 1.0, %v2962
        %v2967 = vsub.f32 1.0, %v2963
        %v2968 = vsub.f32 1.0, %v2964
        %v2969 = vmul.f32 %v2885, %v2965
        %v2970 = vmul.f32 %v2886, %v2966
        %v2971 = vmul.f32 %v2887, %v2967
        %v2972 = vmul.f32 %v2888, %v2968
        %v2973 = vadd.f32 %v2969, 1.0
        %v2974 = vadd.f32 %v2970, 1.0
        %v2975 = vadd.f32 %v2971, 1.0
        %v2976 = vadd.f32 %v2972, 1.0
        %v2977 = vmul.f32 %v2873, %v2973
        %v2978 = vmul.f32 %v2874, %v2974
        %v2979 = vmul.f32 %v2875, %v2975
        %v2980 = vmul.f32 %v2876, %v2976
        %v2982 = vlaneseq
        %v2983 = vshrl.u32 %v2982, 7
        %v2984 = vsub.s32 0, %v2983
        %v2985 = vrot.slane %v2606, %v2984
        %v2988 = vsel %vm2799, %v2977, 0
        %v2991 = vsel %vm2799, %v2978, 0
        %v2994 = vsel %vm2799, %v2979, 0
        %v2997 = vsel %vm2799, %v2980, 0
        %2999 = vmatprep.subr.mxu0 0.0
        %3000 = vmatpush1.msra.mxu0 %v2598
        %3001 = vmatprep.subr.mxu0 0.0
        %3002 = vmatpush1.msra.mxu0 %v2599
        %3003 = vmatprep.subr.mxu0 0.0
        %3004 = vmatpush1.msra.mxu0 %v2600
        %3005 = vmatprep.subr.mxu0 0.0
        %3006 = vmatpush1.msra.mxu0 %v2601
        %3007 = vmatprep.subr.mxu0 0.0
        %3008 = vmatpush1.msra.mxu0 %v2602
        %3009 = vmatprep.subr.mxu0 0.0
        %3010 = vmatpush1.msra.mxu0 %v2603
        %3011 = vmatprep.subr.mxu0 0.0
        %3012 = vmatpush1.msra.mxu0 %v2604
        %3013 = vmatprep.subr.mxu0 0.0
        %3014 = vmatpush1.msra.mxu0 %v2605
        %3015 = vmatprep.subr.mxu0 0.0
        %3016 = vmatpush1.msra.mxu0 0.0
        %3017 = vmatprep.subr.mxu0 0.0
        %3018 = vmatpush1.msra.mxu0 0.0
        %3019 = vmatprep.subr.mxu0 0.0
        %3020 = vmatpush1.msra.mxu0 0.0
        %3021 = vmatprep.subr.mxu0 0.0
        %3022 = vmatpush1.msra.mxu0 0.0
        %3023 = vmatprep.subr.mxu0 0.0
        %3024 = vmatpush1.msra.mxu0 0.0
        %3025 = vmatprep.subr.mxu0 0.0
        %3026 = vmatpush1.msra.mxu0 0.0
        %3027 = vmatprep.subr.mxu0 0.0
        %3028 = vmatpush1.msra.mxu0 0.0
        %3029 = vmatprep.subr.mxu0 0.0
        %3030 = vmatpush1.msra.mxu0 0.0
        %3031 = vmatprep.subr.mxu0 0.0
        %3032 = vmatpush1.msra.mxu0 0.0
        %3033 = vmatprep.subr.mxu0 0.0
        %3034 = vmatpush1.msra.mxu0 0.0
        %3035 = vmatprep.subr.mxu0 0.0
        %3036 = vmatpush1.msra.mxu0 0.0
        %3037 = vmatprep.subr.mxu0 0.0
        %3038 = vmatpush1.msra.mxu0 0.0
        %3039 = vmatprep.subr.mxu0 0.0
        %3040 = vmatpush1.msra.mxu0 0.0
        %3041 = vmatprep.subr.mxu0 0.0
        %3042 = vmatpush1.msra.mxu0 0.0
        %3043 = vmatprep.subr.mxu0 0.0
        %3044 = vmatpush1.msra.mxu0 0.0
        %3045 = vmatprep.subr.mxu0 0.0
        %3046 = vmatpush1.msra.mxu0 0.0
        %3047 = vmatprep.subr.mxu0 0.0
        %3048 = vmatpush1.msra.mxu0 0.0
        %3049 = vmatprep.subr.mxu0 0.0
        %3050 = vmatpush1.msra.mxu0 0.0
        %3051 = vmatprep.subr.mxu0 0.0
        %3052 = vmatpush1.msra.mxu0 0.0
        %3053 = vmatprep.subr.mxu0 0.0
        %3054 = vmatpush1.msra.mxu0 0.0
        %3055 = vmatprep.subr.mxu0 0.0
        %3056 = vmatpush1.msra.mxu0 0.0
        %3057 = vmatprep.subr.mxu0 0.0
        %3058 = vmatpush1.msra.mxu0 0.0
        %3059 = vmatprep.subr.mxu0 0.0
        %3060 = vmatpush1.msra.mxu0 0.0
        %3061 = vmatprep.subr.mxu0 0.0
        %3062 = vmatpush1.msra.mxu0 0.0
        %3063 = vmatprep.mubr.f32.mxu0 0.0
        %3064 = vmatmul.mubr.f32.gmra.mrb[0].mxu0 %v2988
        %v3065 = vpop.f32.mrb[0].mxu0
        %v3066 = vadd.f32 %v2985, %v3065
        %v3067 = vpop.f32.mrb[0].mxu0
        %3068 = vmatprep.mubr.f32.mxu0 0.0
        %3069 = vmatmul.mubr.f32.gmra.mrb[0].mxu0 %v2991
        %v3070 = vpop.f32.mrb[0].mxu0
        %v3071 = vadd.f32 %v2985, %v3070
        %v3072 = vpop.f32.mrb[0].mxu0
        %3073 = vmatprep.mubr.f32.mxu0 0.0
        %3074 = vmatmul.mubr.f32.gmra.mrb[0].mxu0 %v2994
        %v3075 = vpop.f32.mrb[0].mxu0
        %v3076 = vadd.f32 %v2985, %v3075
        %v3077 = vpop.f32.mrb[0].mxu0
        %3078 = vmatprep.mubr.f32.mxu0 0.0
        %3079 = vmatmul.mubr.f32.gmra.mrb[0].mxu0 %v2997
        %v3080 = vpop.f32.mrb[0].mxu0
        %v3081 = vadd.f32 %v2985, %v3080
        %v3082 = vpop.f32.mrb[0].mxu0
        %3083 = vdwg.mxu0
        %v3084 = vadd.f32 %v1142, %v3066
        %v3085 = vadd.f32 %v1143, %v3071
        %v3086 = vadd.f32 %v1144, %v3076
        %v3087 = vadd.f32 %v1145, %v3081
        %v3088 = vld [vmem:[#allocation20] sm:$0xff]
        %v3089 = vld [vmem:[#allocation20 + $0x8] sm:$0xff]
        %v3090 = vld [vmem:[#allocation20 + $0x10] sm:$0xff]
        %v3091 = vld [vmem:[#allocation20 + $0x18] sm:$0xff]
        %v3092 = vld [vmem:[%s16] sm:$0x1]
        %v3094 = vlaneseq
        %v3095 = vshrl.u32 %v3094, 7
        %v3096 = vsub.s32 0, %v3095
        %v3097 = vrot.slane %v3092, %v3096
        %v3100 = vsel %vm1202, %v3084, 0
        %v3103 = vsel %vm1202, %v3085, 0
        %v3106 = vsel %vm1202, %v3086, 0
        %v3109 = vsel %vm1202, %v3087, 0
        %3111 = vmatprep.subr.mxu0 0.0
        %3112 = vmatpush1.msra.mxu0 %v3088
        %3113 = vmatprep.subr.mxu0 0.0
        %3114 = vmatpush1.msra.mxu0 %v3089
        %3115 = vmatprep.subr.mxu0 0.0
        %3116 = vmatpush1.msra.mxu0 %v3090
        %3117 = vmatprep.subr.mxu0 0.0
        %3118 = vmatpush1.msra.mxu0 %v3091
        %3119 = vmatprep.subr.mxu0 0.0
        %3120 = vmatpush1.msra.mxu0 0.0
        %3121 = vmatprep.subr.mxu0 0.0
        %3122 = vmatpush1.msra.mxu0 0.0
        %3123 = vmatprep.subr.mxu0 0.0
        %3124 = vmatpush1.msra.mxu0 0.0
        %3125 = vmatprep.subr.mxu0 0.0
        %3126 = vmatpush1.msra.mxu0 0.0
        %3127 = vmatprep.subr.mxu0 0.0
        %3128 = vmatpush1.msra.mxu0 0.0
        %3129 = vmatprep.subr.mxu0 0.0
        %3130 = vmatpush1.msra.mxu0 0.0
        %3131 = vmatprep.subr.mxu0 0.0
        %3132 = vmatpush1.msra.mxu0 0.0
        %3133 = vmatprep.subr.mxu0 0.0
        %3134 = vmatpush1.msra.mxu0 0.0
        %3135 = vmatprep.subr.mxu0 0.0
        %3136 = vmatpush1.msra.mxu0 0.0
        %3137 = vmatprep.subr.mxu0 0.0
        %3138 = vmatpush1.msra.mxu0 0.0
        %3139 = vmatprep.subr.mxu0 0.0
        %3140 = vmatpush1.msra.mxu0 0.0
        %3141 = vmatprep.subr.mxu0 0.0
        %3142 = vmatpush1.msra.mxu0 0.0
        %3143 = vmatprep.subr.mxu0 0.0
        %3144 = vmatpush1.msra.mxu0 0.0
        %3145 = vmatprep.subr.mxu0 0.0
        %3146 = vmatpush1.msra.mxu0 0.0
        %3147 = vmatprep.subr.mxu0 0.0
        %3148 = vmatpush1.msra.mxu0 0.0
        %3149 = vmatprep.subr.mxu0 0.0
        %3150 = vmatpush1.msra.mxu0 0.0
        %3151 = vmatprep.subr.mxu0 0.0
        %3152 = vmatpush1.msra.mxu0 0.0
        %3153 = vmatprep.subr.mxu0 0.0
        %3154 = vmatpush1.msra.mxu0 0.0
        %3155 = vmatprep.subr.mxu0 0.0
        %3156 = vmatpush1.msra.mxu0 0.0
        %3157 = vmatprep.subr.mxu0 0.0
        %3158 = vmatpush1.msra.mxu0 0.0
        %3159 = vmatprep.subr.mxu0 0.0
        %3160 = vmatpush1.msra.mxu0 0.0
        %3161 = vmatprep.subr.mxu0 0.0
        %3162 = vmatpush1.msra.mxu0 0.0
        %3163 = vmatprep.subr.mxu0 0.0
        %3164 = vmatpush1.msra.mxu0 0.0
        %3165 = vmatprep.subr.mxu0 0.0
        %3166 = vmatpush1.msra.mxu0 0.0
        %3167 = vmatprep.subr.mxu0 0.0
        %3168 = vmatpush1.msra.mxu0 0.0
        %3169 = vmatprep.subr.mxu0 0.0
        %3170 = vmatpush1.msra.mxu0 0.0
        %3171 = vmatprep.subr.mxu0 0.0
        %3172 = vmatpush1.msra.mxu0 0.0
        %3173 = vmatprep.subr.mxu0 0.0
        %3174 = vmatpush1.msra.mxu0 0.0
        %3175 = vmatprep.mubr.f32.mxu0 0.0
        %3176 = vmatmul.mubr.f32.gmra.mrb[0].mxu0 %v3100
        %v3177 = vpop.f32.mrb[0].mxu0
        %v3178 = vadd.f32 %v3097, %v3177
        %v3179 = vpop.f32.mrb[0].mxu0
        %3180 = vmatprep.mubr.f32.mxu0 0.0
        %3181 = vmatmul.mubr.f32.gmra.mrb[0].mxu0 %v3103
        %v3182 = vpop.f32.mrb[0].mxu0
        %v3183 = vadd.f32 %v3097, %v3182
        %v3184 = vpop.f32.mrb[0].mxu0
        %3185 = vmatprep.mubr.f32.mxu0 0.0
        %3186 = vmatmul.mubr.f32.gmra.mrb[0].mxu0 %v3106
        %v3187 = vpop.f32.mrb[0].mxu0
        %v3188 = vadd.f32 %v3097, %v3187
        %v3189 = vpop.f32.mrb[0].mxu0
        %3190 = vmatprep.mubr.f32.mxu0 0.0
        %3191 = vmatmul.mubr.f32.gmra.mrb[0].mxu0 %v3109
        %v3192 = vpop.f32.mrb[0].mxu0
        %v3193 = vadd.f32 %v3097, %v3192
        %v3194 = vpop.f32.mrb[0].mxu0
        %3195 = vdwg.mxu0
        %v3197 = vsel %vm1360, %v3178, 0
        %v3200 = vsel %vm1360, %v3183, 0
        %v3203 = vsel %vm1360, %v3188, 0
        %v3206 = vsel %vm1360, %v3193, 0
        %3208 = vmatprep.subr.mxu0 0.0
        %3209 = vmatpush1.xpose.msra.mxu0 %v3197
        %3210 = vmatprep.subr.mxu0 0.0
        %3211 = vmatpush1.xpose.msra.mxu0 %v3200
        %3212 = vmatprep.subr.mxu0 0.0
        %3213 = vmatpush1.xpose.msra.mxu0 %v3203
        %3214 = vmatprep.subr.mxu0 0.0
        %3215 = vmatpush1.xpose.msra.mxu0 %v3206
        %3216 = vmatprep.subr.mxu0 0.0
        %3217 = vmatpush1.xpose.msra.mxu0 0.0
        %3218 = vmatprep.subr.mxu0 0.0
        %3219 = vmatpush1.xpose.msra.mxu0 0.0
        %3220 = vmatprep.subr.mxu0 0.0
        %3221 = vmatpush1.xpose.msra.mxu0 0.0
        %3222 = vmatprep.subr.mxu0 0.0
        %3223 = vmatpush1.xpose.msra.mxu0 0.0
        %3224 = vmatprep.subr.mxu0 0.0
        %3225 = vmatpush1.xpose.msra.mxu0 0.0
        %3226 = vmatprep.subr.mxu0 0.0
        %3227 = vmatpush1.xpose.msra.mxu0 0.0
        %3228 = vmatprep.subr.mxu0 0.0
        %3229 = vmatpush1.xpose.msra.mxu0 0.0
        %3230 = vmatprep.subr.mxu0 0.0
        %3231 = vmatpush1.xpose.msra.mxu0 0.0
        %3232 = vmatprep.subr.mxu0 0.0
        %3233 = vmatpush1.xpose.msra.mxu0 0.0
        %3234 = vmatprep.subr.mxu0 0.0
        %3235 = vmatpush1.xpose.msra.mxu0 0.0
        %3236 = vmatprep.subr.mxu0 0.0
        %3237 = vmatpush1.xpose.msra.mxu0 0.0
        %3238 = vmatprep.subr.mxu0 0.0
        %3239 = vmatpush1.xpose.msra.mxu0 0.0
        %3240 = vmatprep.subr.mxu0 0.0
        %3241 = vmatpush1.xpose.msra.mxu0 0.0
        %3242 = vmatprep.subr.mxu0 0.0
        %3243 = vmatpush1.xpose.msra.mxu0 0.0
        %3244 = vmatprep.subr.mxu0 0.0
        %3245 = vmatpush1.xpose.msra.mxu0 0.0
        %3246 = vmatprep.subr.mxu0 0.0
        %3247 = vmatpush1.xpose.msra.mxu0 0.0
        %3248 = vmatprep.subr.mxu0 0.0
        %3249 = vmatpush1.xpose.msra.mxu0 0.0
        %3250 = vmatprep.subr.mxu0 0.0
        %3251 = vmatpush1.xpose.msra.mxu0 0.0
        %3252 = vmatprep.subr.mxu0 0.0
        %3253 = vmatpush1.xpose.msra.mxu0 0.0
        %3254 = vmatprep.subr.mxu0 0.0
        %3255 = vmatpush1.xpose.msra.mxu0 0.0
        %3256 = vmatprep.subr.mxu0 0.0
        %3257 = vmatpush1.xpose.msra.mxu0 0.0
        %3258 = vmatprep.subr.mxu0 0.0
        %3259 = vmatpush1.xpose.msra.mxu0 0.0
        %3260 = vmatprep.subr.mxu0 0.0
        %3261 = vmatpush1.xpose.msra.mxu0 0.0
        %3262 = vmatprep.subr.mxu0 0.0
        %3263 = vmatpush1.xpose.msra.mxu0 0.0
        %3264 = vmatprep.subr.mxu0 0.0
        %3265 = vmatpush1.xpose.msra.mxu0 0.0
        %3266 = vmatprep.subr.mxu0 0.0
        %3267 = vmatpush1.xpose.msra.mxu0 0.0
        %3268 = vmatprep.subr.mxu0 0.0
        %3269 = vmatpush1.xpose.msra.mxu0 0.0
        %3270 = vmatprep.subr.mxu0 0.0
        %3271 = vmatpush1.xpose.msra.mxu0 0.0
        %3272 = vmatprep.mubr.f32.mxu0 0.0
        %3273 = vmatmul.mubr.f32.gmra.mrb[0].mxu0 %v3197
        %v3274 = vpop.f32.mrb[0].mxu0
        %v3275 = vadd.f32 %v1178, %v3274
        %v3276 = vpop.f32.mrb[0].mxu0
        %3277 = vmatprep.mubr.f32.mxu0 0.0
        %3278 = vmatmul.mubr.f32.gmra.mrb[0].mxu0 %v3200
        %v3279 = vpop.f32.mrb[0].mxu0
        %v3280 = vadd.f32 %v1179, %v3279
        %v3281 = vpop.f32.mrb[0].mxu0
        %3282 = vmatprep.mubr.f32.mxu0 0.0
        %3283 = vmatmul.mubr.f32.gmra.mrb[0].mxu0 %v3203
        %v3284 = vpop.f32.mrb[0].mxu0
        %v3285 = vadd.f32 %v1180, %v3284
        %v3286 = vpop.f32.mrb[0].mxu0
        %3287 = vmatprep.mubr.f32.mxu0 0.0
        %3288 = vmatmul.mubr.f32.gmra.mrb[0].mxu0 %v3206
        %v3289 = vpop.f32.mrb[0].mxu0
        %v3290 = vadd.f32 %v1181, %v3289
        %v3291 = vpop.f32.mrb[0].mxu0
        %3292 = vdwg.mxu0
        %v3293 = vsel %vm1202, %v3275, -inf
        %3294 = vmax.xlane.f32.xlu0 %v3293
        %v3295 = vpop.xlane.xlu0 %3294
        %v3296 = vsel %vm1202, %v3280, -inf
        %3297 = vmax.xlane.f32.xlu0 %v3296
        %v3298 = vpop.xlane.xlu0 %3297
        %v3299 = vsel %vm1202, %v3285, -inf
        %3300 = vmax.xlane.f32.xlu0 %v3299
        %v3301 = vpop.xlane.xlu0 %3300
        %v3302 = vsel %vm1202, %v3290, -inf
        %3303 = vmax.xlane.f32.xlu0 %v3302
        %v3304 = vpop.xlane.xlu0 %3303
        %v3305 = vsub.f32 %v3275, %v3295
        %v3306 = vsub.f32 %v3280, %v3298
        %v3307 = vsub.f32 %v3285, %v3301
        %v3308 = vsub.f32 %v3290, %v3304
        %v3309 = vmul.f32 %v3305, 1.442695
        %v3310 = vpow.pop %v3309
        %v3311 = vmul.f32 %v3306, 1.442695
        %v3312 = vpow.pop %v3311
        %v3313 = vmul.f32 %v3307, 1.442695
        %v3314 = vpow.pop %v3313
        %v3315 = vmul.f32 %v3308, 1.442695
        %v3316 = vpow.pop %v3315
        %v3317 = vsel %vm1202, %v3310, 0.0
        %3318 = vadd.xlane.f32.xlu0 %v3317
        %v3319 = vpop.xlane.xlu0 %3318
        %v3320 = vsel %vm1202, %v3312, 0.0
        %3321 = vadd.xlane.f32.xlu0 %v3320
        %v3322 = vpop.xlane.xlu0 %3321
        %v3323 = vsel %vm1202, %v3314, 0.0
        %3324 = vadd.xlane.f32.xlu0 %v3323
        %v3325 = vpop.xlane.xlu0 %3324
        %v3326 = vsel %vm1202, %v3316, 0.0
        %3327 = vadd.xlane.f32.xlu0 %v3326
        %v3328 = vpop.xlane.xlu0 %3327
        %v3329 = vrcp.pop %v3319
        %v3330 = vrcp.pop %v3322
        %v3331 = vrcp.pop %v3325
        %v3332 = vrcp.pop %v3328
        %v3333 = vmul.f32 %v3310, %v3329
        %v3334 = vmul.f32 %v3312, %v3330
        %v3335 = vmul.f32 %v3314, %v3331
        %v3336 = vmul.f32 %v3316, %v3332
        %3337 = vrot.lane.b32.xlu0 %v3178, 96
        %v3338 = vpop.permute.xlu0 %3337
        %3339 = vrot.lane.b32.xlu0 %v3183, 96
        %v3340 = vpop.permute.xlu0 %3339
        %3341 = vrot.lane.b32.xlu0 %v3188, 96
        %v3342 = vpop.permute.xlu0 %3341
        %3343 = vrot.lane.b32.xlu0 %v3193, 96
        %v3344 = vpop.permute.xlu0 %3343
        %v3350 = vsel %vm1202, %v3333, 0
        %v3353 = vsel %vm1202, %v3334, 0
        %v3356 = vsel %vm1202, %v3335, 0
        %v3359 = vsel %vm1202, %v3336, 0
        %3361 = vmatprep.subr.mxu0 0.0
        %3362 = vmatpush1.msra.mxu0 %v3338
        %3363 = vmatprep.subr.mxu0 0.0
        %3364 = vmatpush1.msra.mxu0 %v3340
        %3365 = vmatprep.subr.mxu0 0.0
        %3366 = vmatpush1.msra.mxu0 %v3342
        %3367 = vmatprep.subr.mxu0 0.0
        %3368 = vmatpush1.msra.mxu0 %v3344
        %3369 = vmatprep.subr.mxu0 0.0
        %3370 = vmatpush1.msra.mxu0 0.0
        %3371 = vmatprep.subr.mxu0 0.0
        %3372 = vmatpush1.msra.mxu0 0.0
        %3373 = vmatprep.subr.mxu0 0.0
        %3374 = vmatpush1.msra.mxu0 0.0
        %3375 = vmatprep.subr.mxu0 0.0
        %3376 = vmatpush1.msra.mxu0 0.0
        %3377 = vmatprep.subr.mxu0 0.0
        %3378 = vmatpush1.msra.mxu0 0.0
        %3379 = vmatprep.subr.mxu0 0.0
        %3380 = vmatpush1.msra.mxu0 0.0
        %3381 = vmatprep.subr.mxu0 0.0
        %3382 = vmatpush1.msra.mxu0 0.0
        %3383 = vmatprep.subr.mxu0 0.0
        %3384 = vmatpush1.msra.mxu0 0.0
        %3385 = vmatprep.subr.mxu0 0.0
        %3386 = vmatpush1.msra.mxu0 0.0
        %3387 = vmatprep.subr.mxu0 0.0
        %3388 = vmatpush1.msra.mxu0 0.0
        %3389 = vmatprep.subr.mxu0 0.0
        %3390 = vmatpush1.msra.mxu0 0.0
        %3391 = vmatprep.subr.mxu0 0.0
        %3392 = vmatpush1.msra.mxu0 0.0
        %3393 = vmatprep.subr.mxu0 0.0
        %3394 = vmatpush1.msra.mxu0 0.0
        %3395 = vmatprep.subr.mxu0 0.0
        %3396 = vmatpush1.msra.mxu0 0.0
        %3397 = vmatprep.subr.mxu0 0.0
        %3398 = vmatpush1.msra.mxu0 0.0
        %3399 = vmatprep.subr.mxu0 0.0
        %3400 = vmatpush1.msra.mxu0 0.0
        %3401 = vmatprep.subr.mxu0 0.0
        %3402 = vmatpush1.msra.mxu0 0.0
        %3403 = vmatprep.subr.mxu0 0.0
        %3404 = vmatpush1.msra.mxu0 0.0
        %3405 = vmatprep.subr.mxu0 0.0
        %3406 = vmatpush1.msra.mxu0 0.0
        %3407 = vmatprep.subr.mxu0 0.0
        %3408 = vmatpush1.msra.mxu0 0.0
        %3409 = vmatprep.subr.mxu0 0.0
        %3410 = vmatpush1.msra.mxu0 0.0
        %3411 = vmatprep.subr.mxu0 0.0
        %3412 = vmatpush1.msra.mxu0 0.0
        %3413 = vmatprep.subr.mxu0 0.0
        %3414 = vmatpush1.msra.mxu0 0.0
        %3415 = vmatprep.subr.mxu0 0.0
        %3416 = vmatpush1.msra.mxu0 0.0
        %3417 = vmatprep.subr.mxu0 0.0
        %3418 = vmatpush1.msra.mxu0 0.0
        %3419 = vmatprep.subr.mxu0 0.0
        %3420 = vmatpush1.msra.mxu0 0.0
        %3421 = vmatprep.subr.mxu0 0.0
        %3422 = vmatpush1.msra.mxu0 0.0
        %3423 = vmatprep.subr.mxu0 0.0
        %3424 = vmatpush1.msra.mxu0 0.0
        %3425 = vmatprep.mubr.f32.mxu0 0.0
        %3426 = vmatmul.mubr.f32.gmra.mrb[0].mxu0 %v3350
        %v3427 = vpop.f32.mrb[0].mxu0
        %v3428 = vadd.f32 0.0, %v3427
        %v3429 = vpop.f32.mrb[0].mxu0
        %3430 = vmatprep.mubr.f32.mxu0 0.0
        %3431 = vmatmul.mubr.f32.gmra.mrb[0].mxu0 %v3353
        %v3432 = vpop.f32.mrb[0].mxu0
        %v3433 = vadd.f32 0.0, %v3432
        %v3434 = vpop.f32.mrb[0].mxu0
        %3435 = vmatprep.mubr.f32.mxu0 0.0
        %3436 = vmatmul.mubr.f32.gmra.mrb[0].mxu0 %v3356
        %v3437 = vpop.f32.mrb[0].mxu0
        %v3438 = vadd.f32 0.0, %v3437
        %v3439 = vpop.f32.mrb[0].mxu0
        %3440 = vmatprep.mubr.f32.mxu0 0.0
        %3441 = vmatmul.mubr.f32.gmra.mrb[0].mxu0 %v3359
        %v3442 = vpop.f32.mrb[0].mxu0
        %v3443 = vadd.f32 0.0, %v3442
        %v3444 = vpop.f32.mrb[0].mxu0
        %3445 = vdwg.mxu0
        %3446 = vrot.lane.b32.xlu0 %v3178, 120
        %v3447 = vpop.permute.xlu0 %3446
        %3448 = vrot.lane.b32.xlu0 %v3183, 120
        %v3449 = vpop.permute.xlu0 %3448
        %3450 = vrot.lane.b32.xlu0 %v3188, 120
        %v3451 = vpop.permute.xlu0 %3450
        %3452 = vrot.lane.b32.xlu0 %v3193, 120
        %v3453 = vpop.permute.xlu0 %3452
        %v3454 = vsel %vm1360, %v3447, 0
        %v3456 = vsel %vm1360, %v3449, 0
        %v3458 = vsel %vm1360, %v3451, 0
        %v3460 = vsel %vm1360, %v3453, 0
        %3462 = vmatprep.subr.mxu0 0.0
        %3463 = vmatpush1.xpose.msra.mxu0 %v3454
        %3464 = vmatprep.subr.mxu0 0.0
        %3465 = vmatpush1.xpose.msra.mxu0 %v3456
        %3466 = vmatprep.subr.mxu0 0.0
        %3467 = vmatpush1.xpose.msra.mxu0 %v3458
        %3468 = vmatprep.subr.mxu0 0.0
        %3469 = vmatpush1.xpose.msra.mxu0 %v3460
        %3470 = vmatprep.subr.mxu0 0.0
        %3471 = vmatpush1.xpose.msra.mxu0 0.0
        %3472 = vmatprep.subr.mxu0 0.0
        %3473 = vmatpush1.xpose.msra.mxu0 0.0
        %3474 = vmatprep.subr.mxu0 0.0
        %3475 = vmatpush1.xpose.msra.mxu0 0.0
        %3476 = vmatprep.subr.mxu0 0.0
        %3477 = vmatpush1.xpose.msra.mxu0 0.0
        %3478 = vmatprep.subr.mxu0 0.0
        %3479 = vmatpush1.xpose.msra.mxu0 0.0
        %3480 = vmatprep.subr.mxu0 0.0
        %3481 = vmatpush1.xpose.msra.mxu0 0.0
        %3482 = vmatprep.subr.mxu0 0.0
        %3483 = vmatpush1.xpose.msra.mxu0 0.0
        %3484 = vmatprep.subr.mxu0 0.0
        %3485 = vmatpush1.xpose.msra.mxu0 0.0
        %3486 = vmatprep.subr.mxu0 0.0
        %3487 = vmatpush1.xpose.msra.mxu0 0.0
        %3488 = vmatprep.subr.mxu0 0.0
        %3489 = vmatpush1.xpose.msra.mxu0 0.0
        %3490 = vmatprep.subr.mxu0 0.0
        %3491 = vmatpush1.xpose.msra.mxu0 0.0
        %3492 = vmatprep.subr.mxu0 0.0
        %3493 = vmatpush1.xpose.msra.mxu0 0.0
        %3494 = vmatprep.subr.mxu0 0.0
        %3495 = vmatpush1.xpose.msra.mxu0 0.0
        %3496 = vmatprep.subr.mxu0 0.0
        %3497 = vmatpush1.xpose.msra.mxu0 0.0
        %3498 = vmatprep.subr.mxu0 0.0
        %3499 = vmatpush1.xpose.msra.mxu0 0.0
        %3500 = vmatprep.subr.mxu0 0.0
        %3501 = vmatpush1.xpose.msra.mxu0 0.0
        %3502 = vmatprep.subr.mxu0 0.0
        %3503 = vmatpush1.xpose.msra.mxu0 0.0
        %3504 = vmatprep.subr.mxu0 0.0
        %3505 = vmatpush1.xpose.msra.mxu0 0.0
        %3506 = vmatprep.subr.mxu0 0.0
        %3507 = vmatpush1.xpose.msra.mxu0 0.0
        %3508 = vmatprep.subr.mxu0 0.0
        %3509 = vmatpush1.xpose.msra.mxu0 0.0
        %3510 = vmatprep.subr.mxu0 0.0
        %3511 = vmatpush1.xpose.msra.mxu0 0.0
        %3512 = vmatprep.subr.mxu0 0.0
        %3513 = vmatpush1.xpose.msra.mxu0 0.0
        %3514 = vmatprep.subr.mxu0 0.0
        %3515 = vmatpush1.xpose.msra.mxu0 0.0
        %3516 = vmatprep.subr.mxu0 0.0
        %3517 = vmatpush1.xpose.msra.mxu0 0.0
        %3518 = vmatprep.subr.mxu0 0.0
        %3519 = vmatpush1.xpose.msra.mxu0 0.0
        %3520 = vmatprep.subr.mxu0 0.0
        %3521 = vmatpush1.xpose.msra.mxu0 0.0
        %3522 = vmatprep.subr.mxu0 0.0
        %3523 = vmatpush1.xpose.msra.mxu0 0.0
        %3524 = vmatprep.subr.mxu0 0.0
        %3525 = vmatpush1.xpose.msra.mxu0 0.0
        %3526 = vmatprep.mubr.f32.mxu0 0.0
        %3527 = vmatmul.mubr.f32.gmra.mrb[0].mxu0 %v3454
        %v3528 = vpop.f32.mrb[0].mxu0
        %v3529 = vadd.f32 %v1178, %v3528
        %v3530 = vpop.f32.mrb[0].mxu0
        %3531 = vmatprep.mubr.f32.mxu0 0.0
        %3532 = vmatmul.mubr.f32.gmra.mrb[0].mxu0 %v3456
        %v3533 = vpop.f32.mrb[0].mxu0
        %v3534 = vadd.f32 %v1179, %v3533
        %v3535 = vpop.f32.mrb[0].mxu0
        %3536 = vmatprep.mubr.f32.mxu0 0.0
        %3537 = vmatmul.mubr.f32.gmra.mrb[0].mxu0 %v3458
        %v3538 = vpop.f32.mrb[0].mxu0
        %v3539 = vadd.f32 %v1180, %v3538
        %v3540 = vpop.f32.mrb[0].mxu0
        %3541 = vmatprep.mubr.f32.mxu0 0.0
        %3542 = vmatmul.mubr.f32.gmra.mrb[0].mxu0 %v3460
        %v3543 = vpop.f32.mrb[0].mxu0
        %v3544 = vadd.f32 %v1181, %v3543
        %v3545 = vpop.f32.mrb[0].mxu0
        %3546 = vdwg.mxu0
        %v3547 = vsel %vm1202, %v3529, -inf
        %3548 = vmax.xlane.f32.xlu0 %v3547
        %v3549 = vpop.xlane.xlu0 %3548
        %v3550 = vsel %vm1202, %v3534, -inf
        %3551 = vmax.xlane.f32.xlu0 %v3550
        %v3552 = vpop.xlane.xlu0 %3551
        %v3553 = vsel %vm1202, %v3539, -inf
        %3554 = vmax.xlane.f32.xlu0 %v3553
        %v3555 = vpop.xlane.xlu0 %3554
        %v3556 = vsel %vm1202, %v3544, -inf
        %3557 = vmax.xlane.f32.xlu0 %v3556
        %v3558 = vpop.xlane.xlu0 %3557
        %v3559 = vsub.f32 %v3529, %v3549
        %v3560 = vsub.f32 %v3534, %v3552
        %v3561 = vsub.f32 %v3539, %v3555
        %v3562 = vsub.f32 %v3544, %v3558
        %v3563 = vmul.f32 %v3559, 1.442695
        %v3564 = vpow.pop %v3563
        %v3565 = vmul.f32 %v3560, 1.442695
        %v3566 = vpow.pop %v3565
        %v3567 = vmul.f32 %v3561, 1.442695
        %v3568 = vpow.pop %v3567
        %v3569 = vmul.f32 %v3562, 1.442695
        %v3570 = vpow.pop %v3569
        %v3571 = vsel %vm1202, %v3564, 0.0
        %3572 = vadd.xlane.f32.xlu0 %v3571
        %v3573 = vpop.xlane.xlu0 %3572
        %v3574 = vsel %vm1202, %v3566, 0.0
        %3575 = vadd.xlane.f32.xlu0 %v3574
        %v3576 = vpop.xlane.xlu0 %3575
        %v3577 = vsel %vm1202, %v3568, 0.0
        %3578 = vadd.xlane.f32.xlu0 %v3577
        %v3579 = vpop.xlane.xlu0 %3578
        %v3580 = vsel %vm1202, %v3570, 0.0
        %3581 = vadd.xlane.f32.xlu0 %v3580
        %v3582 = vpop.xlane.xlu0 %3581
        %v3583 = vrcp.pop %v3573
        %v3584 = vrcp.pop %v3576
        %v3585 = vrcp.pop %v3579
        %v3586 = vrcp.pop %v3582
        %v3587 = vmul.f32 %v3564, %v3583
        %v3588 = vmul.f32 %v3566, %v3584
        %v3589 = vmul.f32 %v3568, %v3585
        %v3590 = vmul.f32 %v3570, %v3586
        %3591 = vrot.lane.b32.xlu0 %v3178, 88
        %v3592 = vpop.permute.xlu0 %3591
        %3593 = vrot.lane.b32.xlu0 %v3183, 88
        %v3594 = vpop.permute.xlu0 %3593
        %3595 = vrot.lane.b32.xlu0 %v3188, 88
        %v3596 = vpop.permute.xlu0 %3595
        %3597 = vrot.lane.b32.xlu0 %v3193, 88
        %v3598 = vpop.permute.xlu0 %3597
        %v3604 = vsel %vm1202, %v3587, 0
        %v3607 = vsel %vm1202, %v3588, 0
        %v3610 = vsel %vm1202, %v3589, 0
        %v3613 = vsel %vm1202, %v3590, 0
        %3615 = vmatprep.subr.mxu0 0.0
        %3616 = vmatpush1.msra.mxu0 %v3592
        %3617 = vmatprep.subr.mxu0 0.0
        %3618 = vmatpush1.msra.mxu0 %v3594
        %3619 = vmatprep.subr.mxu0 0.0
        %3620 = vmatpush1.msra.mxu0 %v3596
        %3621 = vmatprep.subr.mxu0 0.0
        %3622 = vmatpush1.msra.mxu0 %v3598
        %3623 = vmatprep.subr.mxu0 0.0
        %3624 = vmatpush1.msra.mxu0 0.0
        %3625 = vmatprep.subr.mxu0 0.0
        %3626 = vmatpush1.msra.mxu0 0.0
        %3627 = vmatprep.subr.mxu0 0.0
        %3628 = vmatpush1.msra.mxu0 0.0
        %3629 = vmatprep.subr.mxu0 0.0
        %3630 = vmatpush1.msra.mxu0 0.0
        %3631 = vmatprep.subr.mxu0 0.0
        %3632 = vmatpush1.msra.mxu0 0.0
        %3633 = vmatprep.subr.mxu0 0.0
        %3634 = vmatpush1.msra.mxu0 0.0
        %3635 = vmatprep.subr.mxu0 0.0
        %3636 = vmatpush1.msra.mxu0 0.0
        %3637 = vmatprep.subr.mxu0 0.0
        %3638 = vmatpush1.msra.mxu0 0.0
        %3639 = vmatprep.subr.mxu0 0.0
        %3640 = vmatpush1.msra.mxu0 0.0
        %3641 = vmatprep.subr.mxu0 0.0
        %3642 = vmatpush1.msra.mxu0 0.0
        %3643 = vmatprep.subr.mxu0 0.0
        %3644 = vmatpush1.msra.mxu0 0.0
        %3645 = vmatprep.subr.mxu0 0.0
        %3646 = vmatpush1.msra.mxu0 0.0
        %3647 = vmatprep.subr.mxu0 0.0
        %3648 = vmatpush1.msra.mxu0 0.0
        %3649 = vmatprep.subr.mxu0 0.0
        %3650 = vmatpush1.msra.mxu0 0.0
        %3651 = vmatprep.subr.mxu0 0.0
        %3652 = vmatpush1.msra.mxu0 0.0
        %3653 = vmatprep.subr.mxu0 0.0
        %3654 = vmatpush1.msra.mxu0 0.0
        %3655 = vmatprep.subr.mxu0 0.0
        %3656 = vmatpush1.msra.mxu0 0.0
        %3657 = vmatprep.subr.mxu0 0.0
        %3658 = vmatpush1.msra.mxu0 0.0
        %3659 = vmatprep.subr.mxu0 0.0
        %3660 = vmatpush1.msra.mxu0 0.0
        %3661 = vmatprep.subr.mxu0 0.0
        %3662 = vmatpush1.msra.mxu0 0.0
        %3663 = vmatprep.subr.mxu0 0.0
        %3664 = vmatpush1.msra.mxu0 0.0
        %3665 = vmatprep.subr.mxu0 0.0
        %3666 = vmatpush1.msra.mxu0 0.0
        %3667 = vmatprep.subr.mxu0 0.0
        %3668 = vmatpush1.msra.mxu0 0.0
        %3669 = vmatprep.subr.mxu0 0.0
        %3670 = vmatpush1.msra.mxu0 0.0
        %3671 = vmatprep.subr.mxu0 0.0
        %3672 = vmatpush1.msra.mxu0 0.0
        %3673 = vmatprep.subr.mxu0 0.0
        %3674 = vmatpush1.msra.mxu0 0.0
        %3675 = vmatprep.subr.mxu0 0.0
        %3676 = vmatpush1.msra.mxu0 0.0
        %3677 = vmatprep.subr.mxu0 0.0
        %3678 = vmatpush1.msra.mxu0 0.0
        %3679 = vmatprep.mubr.f32.mxu0 0.0
        %3680 = vmatmul.mubr.f32.gmra.mrb[0].mxu0 %v3604
        %v3681 = vpop.f32.mrb[0].mxu0
        %v3682 = vadd.f32 0.0, %v3681
        %v3683 = vpop.f32.mrb[0].mxu0
        %3684 = vmatprep.mubr.f32.mxu0 0.0
        %3685 = vmatmul.mubr.f32.gmra.mrb[0].mxu0 %v3607
        %v3686 = vpop.f32.mrb[0].mxu0
        %v3687 = vadd.f32 0.0, %v3686
        %v3688 = vpop.f32.mrb[0].mxu0
        %3689 = vmatprep.mubr.f32.mxu0 0.0
        %3690 = vmatmul.mubr.f32.gmra.mrb[0].mxu0 %v3610
        %v3691 = vpop.f32.mrb[0].mxu0
        %v3692 = vadd.f32 0.0, %v3691
        %v3693 = vpop.f32.mrb[0].mxu0
        %3694 = vmatprep.mubr.f32.mxu0 0.0
        %3695 = vmatmul.mubr.f32.gmra.mrb[0].mxu0 %v3613
        %v3696 = vpop.f32.mrb[0].mxu0
        %v3697 = vadd.f32 0.0, %v3696
        %v3698 = vpop.f32.mrb[0].mxu0
        %3699 = vdwg.mxu0
        %3700 = vrot.lane.b32.xlu0 %v3178, 112
        %v3701 = vpop.permute.xlu0 %3700
        %3702 = vrot.lane.b32.xlu0 %v3183, 112
        %v3703 = vpop.permute.xlu0 %3702
        %3704 = vrot.lane.b32.xlu0 %v3188, 112
        %v3705 = vpop.permute.xlu0 %3704
        %3706 = vrot.lane.b32.xlu0 %v3193, 112
        %v3707 = vpop.permute.xlu0 %3706
        %v3708 = vsel %vm1360, %v3701, 0
        %v3710 = vsel %vm1360, %v3703, 0
        %v3712 = vsel %vm1360, %v3705, 0
        %v3714 = vsel %vm1360, %v3707, 0
        %3716 = vmatprep.subr.mxu0 0.0
        %3717 = vmatpush1.xpose.msra.mxu0 %v3708
        %3718 = vmatprep.subr.mxu0 0.0
        %3719 = vmatpush1.xpose.msra.mxu0 %v3710
        %3720 = vmatprep.subr.mxu0 0.0
        %3721 = vmatpush1.xpose.msra.mxu0 %v3712
        %3722 = vmatprep.subr.mxu0 0.0
        %3723 = vmatpush1.xpose.msra.mxu0 %v3714
        %3724 = vmatprep.subr.mxu0 0.0
        %3725 = vmatpush1.xpose.msra.mxu0 0.0
        %3726 = vmatprep.subr.mxu0 0.0
        %3727 = vmatpush1.xpose.msra.mxu0 0.0
        %3728 = vmatprep.subr.mxu0 0.0
        %3729 = vmatpush1.xpose.msra.mxu0 0.0
        %3730 = vmatprep.subr.mxu0 0.0
        %3731 = vmatpush1.xpose.msra.mxu0 0.0
        %3732 = vmatprep.subr.mxu0 0.0
        %3733 = vmatpush1.xpose.msra.mxu0 0.0
        %3734 = vmatprep.subr.mxu0 0.0
        %3735 = vmatpush1.xpose.msra.mxu0 0.0
        %3736 = vmatprep.subr.mxu0 0.0
        %3737 = vmatpush1.xpose.msra.mxu0 0.0
        %3738 = vmatprep.subr.mxu0 0.0
        %3739 = vmatpush1.xpose.msra.mxu0 0.0
        %3740 = vmatprep.subr.mxu0 0.0
        %3741 = vmatpush1.xpose.msra.mxu0 0.0
        %3742 = vmatprep.subr.mxu0 0.0
        %3743 = vmatpush1.xpose.msra.mxu0 0.0
        %3744 = vmatprep.subr.mxu0 0.0
        %3745 = vmatpush1.xpose.msra.mxu0 0.0
        %3746 = vmatprep.subr.mxu0 0.0
        %3747 = vmatpush1.xpose.msra.mxu0 0.0
        %3748 = vmatprep.subr.mxu0 0.0
        %3749 = vmatpush1.xpose.msra.mxu0 0.0
        %3750 = vmatprep.subr.mxu0 0.0
        %3751 = vmatpush1.xpose.msra.mxu0 0.0
        %3752 = vmatprep.subr.mxu0 0.0
        %3753 = vmatpush1.xpose.msra.mxu0 0.0
        %3754 = vmatprep.subr.mxu0 0.0
        %3755 = vmatpush1.xpose.msra.mxu0 0.0
        %3756 = vmatprep.subr.mxu0 0.0
        %3757 = vmatpush1.xpose.msra.mxu0 0.0
        %3758 = vmatprep.subr.mxu0 0.0
        %3759 = vmatpush1.xpose.msra.mxu0 0.0
        %3760 = vmatprep.subr.mxu0 0.0
        %3761 = vmatpush1.xpose.msra.mxu0 0.0
        %3762 = vmatprep.subr.mxu0 0.0
        %3763 = vmatpush1.xpose.msra.mxu0 0.0
        %3764 = vmatprep.subr.mxu0 0.0
        %3765 = vmatpush1.xpose.msra.mxu0 0.0
        %3766 = vmatprep.subr.mxu0 0.0
        %3767 = vmatpush1.xpose.msra.mxu0 0.0
        %3768 = vmatprep.subr.mxu0 0.0
        %3769 = vmatpush1.xpose.msra.mxu0 0.0
        %3770 = vmatprep.subr.mxu0 0.0
        %3771 = vmatpush1.xpose.msra.mxu0 0.0
        %3772 = vmatprep.subr.mxu0 0.0
        %3773 = vmatpush1.xpose.msra.mxu0 0.0
        %3774 = vmatprep.subr.mxu0 0.0
        %3775 = vmatpush1.xpose.msra.mxu0 0.0
        %3776 = vmatprep.subr.mxu0 0.0
        %3777 = vmatpush1.xpose.msra.mxu0 0.0
        %3778 = vmatprep.subr.mxu0 0.0
        %3779 = vmatpush1.xpose.msra.mxu0 0.0
        %3780 = vmatprep.mubr.f32.mxu0 0.0
        %3781 = vmatmul.mubr.f32.gmra.mrb[0].mxu0 %v3708
        %v3782 = vpop.f32.mrb[0].mxu0
        %v3783 = vadd.f32 %v1178, %v3782
        %v3784 = vpop.f32.mrb[0].mxu0
        %3785 = vmatprep.mubr.f32.mxu0 0.0
        %3786 = vmatmul.mubr.f32.gmra.mrb[0].mxu0 %v3710
        %v3787 = vpop.f32.mrb[0].mxu0
        %v3788 = vadd.f32 %v1179, %v3787
        %v3789 = vpop.f32.mrb[0].mxu0
        %3790 = vmatprep.mubr.f32.mxu0 0.0
        %3791 = vmatmul.mubr.f32.gmra.mrb[0].mxu0 %v3712
        %v3792 = vpop.f32.mrb[0].mxu0
        %v3793 = vadd.f32 %v1180, %v3792
        %v3794 = vpop.f32.mrb[0].mxu0
        %3795 = vmatprep.mubr.f32.mxu0 0.0
        %3796 = vmatmul.mubr.f32.gmra.mrb[0].mxu0 %v3714
        %v3797 = vpop.f32.mrb[0].mxu0
        %v3798 = vadd.f32 %v1181, %v3797
        %v3799 = vpop.f32.mrb[0].mxu0
        %3800 = vdwg.mxu0
        %v3801 = vsel %vm1202, %v3783, -inf
        %3802 = vmax.xlane.f32.xlu0 %v3801
        %v3803 = vpop.xlane.xlu0 %3802
        %v3804 = vsel %vm1202, %v3788, -inf
        %3805 = vmax.xlane.f32.xlu0 %v3804
        %v3806 = vpop.xlane.xlu0 %3805
        %v3807 = vsel %vm1202, %v3793, -inf
        %3808 = vmax.xlane.f32.xlu0 %v3807
        %v3809 = vpop.xlane.xlu0 %3808
        %v3810 = vsel %vm1202, %v3798, -inf
        %3811 = vmax.xlane.f32.xlu0 %v3810
        %v3812 = vpop.xlane.xlu0 %3811
        %v3813 = vsub.f32 %v3783, %v3803
        %v3814 = vsub.f32 %v3788, %v3806
        %v3815 = vsub.f32 %v3793, %v3809
        %v3816 = vsub.f32 %v3798, %v3812
        %v3817 = vmul.f32 %v3813, 1.442695
        %v3818 = vpow.pop %v3817
        %v3819 = vmul.f32 %v3814, 1.442695
        %v3820 = vpow.pop %v3819
        %v3821 = vmul.f32 %v3815, 1.442695
        %v3822 = vpow.pop %v3821
        %v3823 = vmul.f32 %v3816, 1.442695
        %v3824 = vpow.pop %v3823
        %v3825 = vsel %vm1202, %v3818, 0.0
        %3826 = vadd.xlane.f32.xlu0 %v3825
        %v3827 = vpop.xlane.xlu0 %3826
        %v3828 = vsel %vm1202, %v3820, 0.0
        %3829 = vadd.xlane.f32.xlu0 %v3828
        %v3830 = vpop.xlane.xlu0 %3829
        %v3831 = vsel %vm1202, %v3822, 0.0
        %3832 = vadd.xlane.f32.xlu0 %v3831
        %v3833 = vpop.xlane.xlu0 %3832
        %v3834 = vsel %vm1202, %v3824, 0.0
        %3835 = vadd.xlane.f32.xlu0 %v3834
        %v3836 = vpop.xlane.xlu0 %3835
        %v3837 = vrcp.pop %v3827
        %v3838 = vrcp.pop %v3830
        %v3839 = vrcp.pop %v3833
        %v3840 = vrcp.pop %v3836
        %v3841 = vmul.f32 %v3818, %v3837
        %v3842 = vmul.f32 %v3820, %v3838
        %v3843 = vmul.f32 %v3822, %v3839
        %v3844 = vmul.f32 %v3824, %v3840
        %3845 = vrot.lane.b32.xlu0 %v3178, 80
        %v3846 = vpop.permute.xlu0 %3845
        %3847 = vrot.lane.b32.xlu0 %v3183, 80
        %v3848 = vpop.permute.xlu0 %3847
        %3849 = vrot.lane.b32.xlu0 %v3188, 80
        %v3850 = vpop.permute.xlu0 %3849
        %3851 = vrot.lane.b32.xlu0 %v3193, 80
        %v3852 = vpop.permute.xlu0 %3851
        %v3858 = vsel %vm1202, %v3841, 0
        %v3861 = vsel %vm1202, %v3842, 0
        %v3864 = vsel %vm1202, %v3843, 0
        %v3867 = vsel %vm1202, %v3844, 0
        %3869 = vmatprep.subr.mxu0 0.0
        %3870 = vmatpush1.msra.mxu0 %v3846
        %3871 = vmatprep.subr.mxu0 0.0
        %3872 = vmatpush1.msra.mxu0 %v3848
        %3873 = vmatprep.subr.mxu0 0.0
        %3874 = vmatpush1.msra.mxu0 %v3850
        %3875 = vmatprep.subr.mxu0 0.0
        %3876 = vmatpush1.msra.mxu0 %v3852
        %3877 = vmatprep.subr.mxu0 0.0
        %3878 = vmatpush1.msra.mxu0 0.0
        %3879 = vmatprep.subr.mxu0 0.0
        %3880 = vmatpush1.msra.mxu0 0.0
        %3881 = vmatprep.subr.mxu0 0.0
        %3882 = vmatpush1.msra.mxu0 0.0
        %3883 = vmatprep.subr.mxu0 0.0
        %3884 = vmatpush1.msra.mxu0 0.0
        %3885 = vmatprep.subr.mxu0 0.0
        %3886 = vmatpush1.msra.mxu0 0.0
        %3887 = vmatprep.subr.mxu0 0.0
        %3888 = vmatpush1.msra.mxu0 0.0
        %3889 = vmatprep.subr.mxu0 0.0
        %3890 = vmatpush1.msra.mxu0 0.0
        %3891 = vmatprep.subr.mxu0 0.0
        %3892 = vmatpush1.msra.mxu0 0.0
        %3893 = vmatprep.subr.mxu0 0.0
        %3894 = vmatpush1.msra.mxu0 0.0
        %3895 = vmatprep.subr.mxu0 0.0
        %3896 = vmatpush1.msra.mxu0 0.0
        %3897 = vmatprep.subr.mxu0 0.0
        %3898 = vmatpush1.msra.mxu0 0.0
        %3899 = vmatprep.subr.mxu0 0.0
        %3900 = vmatpush1.msra.mxu0 0.0
        %3901 = vmatprep.subr.mxu0 0.0
        %3902 = vmatpush1.msra.mxu0 0.0
        %3903 = vmatprep.subr.mxu0 0.0
        %3904 = vmatpush1.msra.mxu0 0.0
        %3905 = vmatprep.subr.mxu0 0.0
        %3906 = vmatpush1.msra.mxu0 0.0
        %3907 = vmatprep.subr.mxu0 0.0
        %3908 = vmatpush1.msra.mxu0 0.0
        %3909 = vmatprep.subr.mxu0 0.0
        %3910 = vmatpush1.msra.mxu0 0.0
        %3911 = vmatprep.subr.mxu0 0.0
        %3912 = vmatpush1.msra.mxu0 0.0
        %3913 = vmatprep.subr.mxu0 0.0
        %3914 = vmatpush1.msra.mxu0 0.0
        %3915 = vmatprep.subr.mxu0 0.0
        %3916 = vmatpush1.msra.mxu0 0.0
        %3917 = vmatprep.subr.mxu0 0.0
        %3918 = vmatpush1.msra.mxu0 0.0
        %3919 = vmatprep.subr.mxu0 0.0
        %3920 = vmatpush1.msra.mxu0 0.0
        %3921 = vmatprep.subr.mxu0 0.0
        %3922 = vmatpush1.msra.mxu0 0.0
        %3923 = vmatprep.subr.mxu0 0.0
        %3924 = vmatpush1.msra.mxu0 0.0
        %3925 = vmatprep.subr.mxu0 0.0
        %3926 = vmatpush1.msra.mxu0 0.0
        %3927 = vmatprep.subr.mxu0 0.0
        %3928 = vmatpush1.msra.mxu0 0.0
        %3929 = vmatprep.subr.mxu0 0.0
        %3930 = vmatpush1.msra.mxu0 0.0
        %3931 = vmatprep.subr.mxu0 0.0
        %3932 = vmatpush1.msra.mxu0 0.0
        %3933 = vmatprep.mubr.f32.mxu0 0.0
        %3934 = vmatmul.mubr.f32.gmra.mrb[0].mxu0 %v3858
        %v3935 = vpop.f32.mrb[0].mxu0
        %v3936 = vadd.f32 0.0, %v3935
        %v3937 = vpop.f32.mrb[0].mxu0
        %3938 = vmatprep.mubr.f32.mxu0 0.0
        %3939 = vmatmul.mubr.f32.gmra.mrb[0].mxu0 %v3861
        %v3940 = vpop.f32.mrb[0].mxu0
        %v3941 = vadd.f32 0.0, %v3940
        %v3942 = vpop.f32.mrb[0].mxu0
        %3943 = vmatprep.mubr.f32.mxu0 0.0
        %3944 = vmatmul.mubr.f32.gmra.mrb[0].mxu0 %v3864
        %v3945 = vpop.f32.mrb[0].mxu0
        %v3946 = vadd.f32 0.0, %v3945
        %v3947 = vpop.f32.mrb[0].mxu0
        %3948 = vmatprep.mubr.f32.mxu0 0.0
        %3949 = vmatmul.mubr.f32.gmra.mrb[0].mxu0 %v3867
        %v3950 = vpop.f32.mrb[0].mxu0
        %v3951 = vadd.f32 0.0, %v3950
        %v3952 = vpop.f32.mrb[0].mxu0
        %3953 = vdwg.mxu0
        %3954 = vrot.lane.b32.xlu0 %v3178, 104
        %v3955 = vpop.permute.xlu0 %3954
        %3956 = vrot.lane.b32.xlu0 %v3183, 104
        %v3957 = vpop.permute.xlu0 %3956
        %3958 = vrot.lane.b32.xlu0 %v3188, 104
        %v3959 = vpop.permute.xlu0 %3958
        %3960 = vrot.lane.b32.xlu0 %v3193, 104
        %v3961 = vpop.permute.xlu0 %3960
        %v3962 = vsel %vm1360, %v3955, 0
        %v3964 = vsel %vm1360, %v3957, 0
        %v3966 = vsel %vm1360, %v3959, 0
        %v3968 = vsel %vm1360, %v3961, 0
        %3970 = vmatprep.subr.mxu0 0.0
        %3971 = vmatpush1.xpose.msra.mxu0 %v3962
        %3972 = vmatprep.subr.mxu0 0.0
        %3973 = vmatpush1.xpose.msra.mxu0 %v3964
        %3974 = vmatprep.subr.mxu0 0.0
        %3975 = vmatpush1.xpose.msra.mxu0 %v3966
        %3976 = vmatprep.subr.mxu0 0.0
        %3977 = vmatpush1.xpose.msra.mxu0 %v3968
        %3978 = vmatprep.subr.mxu0 0.0
        %3979 = vmatpush1.xpose.msra.mxu0 0.0
        %3980 = vmatprep.subr.mxu0 0.0
        %3981 = vmatpush1.xpose.msra.mxu0 0.0
        %3982 = vmatprep.subr.mxu0 0.0
        %3983 = vmatpush1.xpose.msra.mxu0 0.0
        %3984 = vmatprep.subr.mxu0 0.0
        %3985 = vmatpush1.xpose.msra.mxu0 0.0
        %3986 = vmatprep.subr.mxu0 0.0
        %3987 = vmatpush1.xpose.msra.mxu0 0.0
        %3988 = vmatprep.subr.mxu0 0.0
        %3989 = vmatpush1.xpose.msra.mxu0 0.0
        %3990 = vmatprep.subr.mxu0 0.0
        %3991 = vmatpush1.xpose.msra.mxu0 0.0
        %3992 = vmatprep.subr.mxu0 0.0
        %3993 = vmatpush1.xpose.msra.mxu0 0.0
        %3994 = vmatprep.subr.mxu0 0.0
        %3995 = vmatpush1.xpose.msra.mxu0 0.0
        %3996 = vmatprep.subr.mxu0 0.0
        %3997 = vmatpush1.xpose.msra.mxu0 0.0
        %3998 = vmatprep.subr.mxu0 0.0
        %3999 = vmatpush1.xpose.msra.mxu0 0.0
        %4000 = vmatprep.subr.mxu0 0.0
        %4001 = vmatpush1.xpose.msra.mxu0 0.0
        %4002 = vmatprep.subr.mxu0 0.0
        %4003 = vmatpush1.xpose.msra.mxu0 0.0
        %4004 = vmatprep.subr.mxu0 0.0
        %4005 = vmatpush1.xpose.msra.mxu0 0.0
        %4006 = vmatprep.subr.mxu0 0.0
        %4007 = vmatpush1.xpose.msra.mxu0 0.0
        %4008 = vmatprep.subr.mxu0 0.0
        %4009 = vmatpush1.xpose.msra.mxu0 0.0
        %4010 = vmatprep.subr.mxu0 0.0
        %4011 = vmatpush1.xpose.msra.mxu0 0.0
        %4012 = vmatprep.subr.mxu0 0.0
        %4013 = vmatpush1.xpose.msra.mxu0 0.0
        %4014 = vmatprep.subr.mxu0 0.0
        %4015 = vmatpush1.xpose.msra.mxu0 0.0
        %4016 = vmatprep.subr.mxu0 0.0
        %4017 = vmatpush1.xpose.msra.mxu0 0.0
        %4018 = vmatprep.subr.mxu0 0.0
        %4019 = vmatpush1.xpose.msra.mxu0 0.0
        %4020 = vmatprep.subr.mxu0 0.0
        %4021 = vmatpush1.xpose.msra.mxu0 0.0
        %4022 = vmatprep.subr.mxu0 0.0
        %4023 = vmatpush1.xpose.msra.mxu0 0.0
        %4024 = vmatprep.subr.mxu0 0.0
        %4025 = vmatpush1.xpose.msra.mxu0 0.0
        %4026 = vmatprep.subr.mxu0 0.0
        %4027 = vmatpush1.xpose.msra.mxu0 0.0
        %4028 = vmatprep.subr.mxu0 0.0
        %4029 = vmatpush1.xpose.msra.mxu0 0.0
        %4030 = vmatprep.subr.mxu0 0.0
        %4031 = vmatpush1.xpose.msra.mxu0 0.0
        %4032 = vmatprep.subr.mxu0 0.0
        %4033 = vmatpush1.xpose.msra.mxu0 0.0
        %4034 = vmatprep.mubr.f32.mxu0 0.0
        %4035 = vmatmul.mubr.f32.gmra.mrb[0].mxu0 %v3962
        %v4036 = vpop.f32.mrb[0].mxu0
        %v4037 = vadd.f32 %v1178, %v4036
        %v4038 = vpop.f32.mrb[0].mxu0
        %4039 = vmatprep.mubr.f32.mxu0 0.0
        %4040 = vmatmul.mubr.f32.gmra.mrb[0].mxu0 %v3964
        %v4041 = vpop.f32.mrb[0].mxu0
        %v4042 = vadd.f32 %v1179, %v4041
        %v4043 = vpop.f32.mrb[0].mxu0
        %4044 = vmatprep.mubr.f32.mxu0 0.0
        %4045 = vmatmul.mubr.f32.gmra.mrb[0].mxu0 %v3966
        %v4046 = vpop.f32.mrb[0].mxu0
        %v4047 = vadd.f32 %v1180, %v4046
        %v4048 = vpop.f32.mrb[0].mxu0
        %4049 = vmatprep.mubr.f32.mxu0 0.0
        %4050 = vmatmul.mubr.f32.gmra.mrb[0].mxu0 %v3968
        %v4051 = vpop.f32.mrb[0].mxu0
        %v4052 = vadd.f32 %v1181, %v4051
        %v4053 = vpop.f32.mrb[0].mxu0
        %4054 = vdwg.mxu0
        %v4055 = vsel %vm1202, %v4037, -inf
        %4056 = vmax.xlane.f32.xlu0 %v4055
        %v4057 = vpop.xlane.xlu0 %4056
        %v4058 = vsel %vm1202, %v4042, -inf
        %4059 = vmax.xlane.f32.xlu0 %v4058
        %v4060 = vpop.xlane.xlu0 %4059
        %v4061 = vsel %vm1202, %v4047, -inf
        %4062 = vmax.xlane.f32.xlu0 %v4061
        %v4063 = vpop.xlane.xlu0 %4062
        %v4064 = vsel %vm1202, %v4052, -inf
        %4065 = vmax.xlane.f32.xlu0 %v4064
        %v4066 = vpop.xlane.xlu0 %4065
        %v4067 = vsub.f32 %v4037, %v4057
        %v4068 = vsub.f32 %v4042, %v4060
        %v4069 = vsub.f32 %v4047, %v4063
        %v4070 = vsub.f32 %v4052, %v4066
        %v4071 = vmul.f32 %v4067, 1.442695
        %v4072 = vpow.pop %v4071
        %v4073 = vmul.f32 %v4068, 1.442695
        %v4074 = vpow.pop %v4073
        %v4075 = vmul.f32 %v4069, 1.442695
        %v4076 = vpow.pop %v4075
        %v4077 = vmul.f32 %v4070, 1.442695
        %v4078 = vpow.pop %v4077
        %v4079 = vsel %vm1202, %v4072, 0.0
        %4080 = vadd.xlane.f32.xlu0 %v4079
        %v4081 = vpop.xlane.xlu0 %4080
        %v4082 = vsel %vm1202, %v4074, 0.0
        %4083 = vadd.xlane.f32.xlu0 %v4082
        %v4084 = vpop.xlane.xlu0 %4083
        %v4085 = vsel %vm1202, %v4076, 0.0
        %4086 = vadd.xlane.f32.xlu0 %v4085
        %v4087 = vpop.xlane.xlu0 %4086
        %v4088 = vsel %vm1202, %v4078, 0.0
        %4089 = vadd.xlane.f32.xlu0 %v4088
        %v4090 = vpop.xlane.xlu0 %4089
        %v4091 = vrcp.pop %v4081
        %v4092 = vrcp.pop %v4084
        %v4093 = vrcp.pop %v4087
        %v4094 = vrcp.pop %v4090
        %v4095 = vmul.f32 %v4072, %v4091
        %v4096 = vmul.f32 %v4074, %v4092
        %v4097 = vmul.f32 %v4076, %v4093
        %v4098 = vmul.f32 %v4078, %v4094
        %4099 = vrot.lane.b32.xlu0 %v3178, 72
        %v4100 = vpop.permute.xlu0 %4099
        %4101 = vrot.lane.b32.xlu0 %v3183, 72
        %v4102 = vpop.permute.xlu0 %4101
        %4103 = vrot.lane.b32.xlu0 %v3188, 72
        %v4104 = vpop.permute.xlu0 %4103
        %4105 = vrot.lane.b32.xlu0 %v3193, 72
        %v4106 = vpop.permute.xlu0 %4105
        %v4112 = vsel %vm1202, %v4095, 0
        %v4115 = vsel %vm1202, %v4096, 0
        %v4118 = vsel %vm1202, %v4097, 0
        %v4121 = vsel %vm1202, %v4098, 0
        %4123 = vmatprep.subr.mxu0 0.0
        %4124 = vmatpush1.msra.mxu0 %v4100
        %4125 = vmatprep.subr.mxu0 0.0
        %4126 = vmatpush1.msra.mxu0 %v4102
        %4127 = vmatprep.subr.mxu0 0.0
        %4128 = vmatpush1.msra.mxu0 %v4104
        %4129 = vmatprep.subr.mxu0 0.0
        %4130 = vmatpush1.msra.mxu0 %v4106
        %4131 = vmatprep.subr.mxu0 0.0
        %4132 = vmatpush1.msra.mxu0 0.0
        %4133 = vmatprep.subr.mxu0 0.0
        %4134 = vmatpush1.msra.mxu0 0.0
        %4135 = vmatprep.subr.mxu0 0.0
        %4136 = vmatpush1.msra.mxu0 0.0
        %4137 = vmatprep.subr.mxu0 0.0
        %4138 = vmatpush1.msra.mxu0 0.0
        %4139 = vmatprep.subr.mxu0 0.0
        %4140 = vmatpush1.msra.mxu0 0.0
        %4141 = vmatprep.subr.mxu0 0.0
        %4142 = vmatpush1.msra.mxu0 0.0
        %4143 = vmatprep.subr.mxu0 0.0
        %4144 = vmatpush1.msra.mxu0 0.0
        %4145 = vmatprep.subr.mxu0 0.0
        %4146 = vmatpush1.msra.mxu0 0.0
        %4147 = vmatprep.subr.mxu0 0.0
        %4148 = vmatpush1.msra.mxu0 0.0
        %4149 = vmatprep.subr.mxu0 0.0
        %4150 = vmatpush1.msra.mxu0 0.0
        %4151 = vmatprep.subr.mxu0 0.0
        %4152 = vmatpush1.msra.mxu0 0.0
        %4153 = vmatprep.subr.mxu0 0.0
        %4154 = vmatpush1.msra.mxu0 0.0
        %4155 = vmatprep.subr.mxu0 0.0
        %4156 = vmatpush1.msra.mxu0 0.0
        %4157 = vmatprep.subr.mxu0 0.0
        %4158 = vmatpush1.msra.mxu0 0.0
        %4159 = vmatprep.subr.mxu0 0.0
        %4160 = vmatpush1.msra.mxu0 0.0
        %4161 = vmatprep.subr.mxu0 0.0
        %4162 = vmatpush1.msra.mxu0 0.0
        %4163 = vmatprep.subr.mxu0 0.0
        %4164 = vmatpush1.msra.mxu0 0.0
        %4165 = vmatprep.subr.mxu0 0.0
        %4166 = vmatpush1.msra.mxu0 0.0
        %4167 = vmatprep.subr.mxu0 0.0
        %4168 = vmatpush1.msra.mxu0 0.0
        %4169 = vmatprep.subr.mxu0 0.0
        %4170 = vmatpush1.msra.mxu0 0.0
        %4171 = vmatprep.subr.mxu0 0.0
        %4172 = vmatpush1.msra.mxu0 0.0
        %4173 = vmatprep.subr.mxu0 0.0
        %4174 = vmatpush1.msra.mxu0 0.0
        %4175 = vmatprep.subr.mxu0 0.0
        %4176 = vmatpush1.msra.mxu0 0.0
        %4177 = vmatprep.subr.mxu0 0.0
        %4178 = vmatpush1.msra.mxu0 0.0
        %4179 = vmatprep.subr.mxu0 0.0
        %4180 = vmatpush1.msra.mxu0 0.0
        %4181 = vmatprep.subr.mxu0 0.0
        %4182 = vmatpush1.msra.mxu0 0.0
        %4183 = vmatprep.subr.mxu0 0.0
        %4184 = vmatpush1.msra.mxu0 0.0
        %4185 = vmatprep.subr.mxu0 0.0
        %4186 = vmatpush1.msra.mxu0 0.0
        %4187 = vmatprep.mubr.f32.mxu0 0.0
        %4188 = vmatmul.mubr.f32.gmra.mrb[0].mxu0 %v4112
        %v4189 = vpop.f32.mrb[0].mxu0
        %v4190 = vadd.f32 0.0, %v4189
        %v4191 = vpop.f32.mrb[0].mxu0
        %4192 = vmatprep.mubr.f32.mxu0 0.0
        %4193 = vmatmul.mubr.f32.gmra.mrb[0].mxu0 %v4115
        %v4194 = vpop.f32.mrb[0].mxu0
        %v4195 = vadd.f32 0.0, %v4194
        %v4196 = vpop.f32.mrb[0].mxu0
        %4197 = vmatprep.mubr.f32.mxu0 0.0
        %4198 = vmatmul.mubr.f32.gmra.mrb[0].mxu0 %v4118
        %v4199 = vpop.f32.mrb[0].mxu0
        %v4200 = vadd.f32 0.0, %v4199
        %v4201 = vpop.f32.mrb[0].mxu0
        %4202 = vmatprep.mubr.f32.mxu0 0.0
        %4203 = vmatmul.mubr.f32.gmra.mrb[0].mxu0 %v4121
        %v4204 = vpop.f32.mrb[0].mxu0
        %v4205 = vadd.f32 0.0, %v4204
        %v4206 = vpop.f32.mrb[0].mxu0
        %4207 = vdwg.mxu0
        %4212 = vrot.lane.b32.xlu0 %v3682, 8
        %v4213 = vpop.permute.xlu0 %4212
        %4214 = vrot.lane.b32.xlu0 %v3687, 8
        %v4215 = vpop.permute.xlu0 %4214
        %4216 = vrot.lane.b32.xlu0 %v3692, 8
        %v4217 = vpop.permute.xlu0 %4216
        %4218 = vrot.lane.b32.xlu0 %v3697, 8
        %v4219 = vpop.permute.xlu0 %4218
        %4228 = vrot.lane.b32.xlu0 %v3936, 16
        %v4229 = vpop.permute.xlu0 %4228
        %4230 = vrot.lane.b32.xlu0 %v3941, 16
        %v4231 = vpop.permute.xlu0 %4230
        %4232 = vrot.lane.b32.xlu0 %v3946, 16
        %v4233 = vpop.permute.xlu0 %4232
        %4234 = vrot.lane.b32.xlu0 %v3951, 16
        %v4235 = vpop.permute.xlu0 %4234
        %4244 = vrot.lane.b32.xlu0 %v4190, 24
        %v4245 = vpop.permute.xlu0 %4244
        %4246 = vrot.lane.b32.xlu0 %v4195, 24
        %v4247 = vpop.permute.xlu0 %4246
        %4248 = vrot.lane.b32.xlu0 %v4200, 24
        %v4249 = vpop.permute.xlu0 %4248
        %4250 = vrot.lane.b32.xlu0 %v4205, 24
        %v4251 = vpop.permute.xlu0 %4250
        %v4256 = vsel %vm1360, %v3428, %v4213
        %v4257 = vsel %vm1360, %v3433, %v4215
        %v4258 = vsel %vm1360, %v3438, %v4217
        %v4259 = vsel %vm1360, %v3443, %v4219
        %v4260 = vsel %vm2469, %v4256, %v4229
        %v4261 = vsel %vm2469, %v4257, %v4231
        %v4262 = vsel %vm2469, %v4258, %v4233
        %v4263 = vsel %vm2469, %v4259, %v4235
        %v4264 = vsel %vm2474, %v4260, %v4245
        %v4265 = vsel %vm2474, %v4261, %v4247
        %v4266 = vsel %vm2474, %v4262, %v4249
        %v4267 = vsel %vm2474, %v4263, %v4251
        %v4268 = vld [vmem:[#allocation22] sm:$0xff]
        %v4269 = vld [vmem:[#allocation22 + $0x8] sm:$0xff]
        %v4270 = vld [vmem:[#allocation22 + $0x10] sm:$0xff]
        %v4271 = vld [vmem:[#allocation22 + $0x18] sm:$0xff]
        %v4272 = vld [vmem:[%s18] sm:$0x1]
        %v4274 = vlaneseq
        %v4275 = vshrl.u32 %v4274, 7
        %v4276 = vsub.s32 0, %v4275
        %v4277 = vrot.slane %v4272, %v4276
        %v4280 = vsel %vm1202, %v4264, 0
        %v4283 = vsel %vm1202, %v4265, 0
        %v4286 = vsel %vm1202, %v4266, 0
        %v4289 = vsel %vm1202, %v4267, 0
        %4291 = vmatprep.subr.mxu0 0.0
        %4292 = vmatpush1.msra.mxu0 %v4268
        %4293 = vmatprep.subr.mxu0 0.0
        %4294 = vmatpush1.msra.mxu0 %v4269
        %4295 = vmatprep.subr.mxu0 0.0
        %4296 = vmatpush1.msra.mxu0 %v4270
        %4297 = vmatprep.subr.mxu0 0.0
        %4298 = vmatpush1.msra.mxu0 %v4271
        %4299 = vmatprep.subr.mxu0 0.0
        %4300 = vmatpush1.msra.mxu0 0.0
        %4301 = vmatprep.subr.mxu0 0.0
        %4302 = vmatpush1.msra.mxu0 0.0
        %4303 = vmatprep.subr.mxu0 0.0
        %4304 = vmatpush1.msra.mxu0 0.0
        %4305 = vmatprep.subr.mxu0 0.0
        %4306 = vmatpush1.msra.mxu0 0.0
        %4307 = vmatprep.subr.mxu0 0.0
        %4308 = vmatpush1.msra.mxu0 0.0
        %4309 = vmatprep.subr.mxu0 0.0
        %4310 = vmatpush1.msra.mxu0 0.0
        %4311 = vmatprep.subr.mxu0 0.0
        %4312 = vmatpush1.msra.mxu0 0.0
        %4313 = vmatprep.subr.mxu0 0.0
        %4314 = vmatpush1.msra.mxu0 0.0
        %4315 = vmatprep.subr.mxu0 0.0
        %4316 = vmatpush1.msra.mxu0 0.0
        %4317 = vmatprep.subr.mxu0 0.0
        %4318 = vmatpush1.msra.mxu0 0.0
        %4319 = vmatprep.subr.mxu0 0.0
        %4320 = vmatpush1.msra.mxu0 0.0
        %4321 = vmatprep.subr.mxu0 0.0
        %4322 = vmatpush1.msra.mxu0 0.0
        %4323 = vmatprep.subr.mxu0 0.0
        %4324 = vmatpush1.msra.mxu0 0.0
        %4325 = vmatprep.subr.mxu0 0.0
        %4326 = vmatpush1.msra.mxu0 0.0
        %4327 = vmatprep.subr.mxu0 0.0
        %4328 = vmatpush1.msra.mxu0 0.0
        %4329 = vmatprep.subr.mxu0 0.0
        %4330 = vmatpush1.msra.mxu0 0.0
        %4331 = vmatprep.subr.mxu0 0.0
        %4332 = vmatpush1.msra.mxu0 0.0
        %4333 = vmatprep.subr.mxu0 0.0
        %4334 = vmatpush1.msra.mxu0 0.0
        %4335 = vmatprep.subr.mxu0 0.0
        %4336 = vmatpush1.msra.mxu0 0.0
        %4337 = vmatprep.subr.mxu0 0.0
        %4338 = vmatpush1.msra.mxu0 0.0
        %4339 = vmatprep.subr.mxu0 0.0
        %4340 = vmatpush1.msra.mxu0 0.0
        %4341 = vmatprep.subr.mxu0 0.0
        %4342 = vmatpush1.msra.mxu0 0.0
        %4343 = vmatprep.subr.mxu0 0.0
        %4344 = vmatpush1.msra.mxu0 0.0
        %4345 = vmatprep.subr.mxu0 0.0
        %4346 = vmatpush1.msra.mxu0 0.0
        %4347 = vmatprep.subr.mxu0 0.0
        %4348 = vmatpush1.msra.mxu0 0.0
        %4349 = vmatprep.subr.mxu0 0.0
        %4350 = vmatpush1.msra.mxu0 0.0
        %4351 = vmatprep.subr.mxu0 0.0
        %4352 = vmatpush1.msra.mxu0 0.0
        %4353 = vmatprep.subr.mxu0 0.0
        %4354 = vmatpush1.msra.mxu0 0.0
        %4355 = vmatprep.mubr.f32.mxu0 0.0
        %4356 = vmatmul.mubr.f32.gmra.mrb[0].mxu0 %v4280
        %v4357 = vpop.f32.mrb[0].mxu0
        %v4358 = vadd.f32 %v4277, %v4357
        %v4359 = vpop.f32.mrb[0].mxu0
        %4360 = vmatprep.mubr.f32.mxu0 0.0
        %4361 = vmatmul.mubr.f32.gmra.mrb[0].mxu0 %v4283
        %v4362 = vpop.f32.mrb[0].mxu0
        %v4363 = vadd.f32 %v4277, %v4362
        %v4364 = vpop.f32.mrb[0].mxu0
        %4365 = vmatprep.mubr.f32.mxu0 0.0
        %4366 = vmatmul.mubr.f32.gmra.mrb[0].mxu0 %v4286
        %v4367 = vpop.f32.mrb[0].mxu0
        %v4368 = vadd.f32 %v4277, %v4367
        %v4369 = vpop.f32.mrb[0].mxu0
        %4370 = vmatprep.mubr.f32.mxu0 0.0
        %4371 = vmatmul.mubr.f32.gmra.mrb[0].mxu0 %v4289
        %v4372 = vpop.f32.mrb[0].mxu0
        %v4373 = vadd.f32 %v4277, %v4372
        %v4374 = vpop.f32.mrb[0].mxu0
        %4375 = vdwg.mxu0
        %v4376 = vld [vmem:[#allocation23] sm:$0xff]
        %v4377 = vld [vmem:[#allocation23 + $0x8] sm:$0xff]
        %v4378 = vld [vmem:[#allocation23 + $0x10] sm:$0xff]
        %v4379 = vld [vmem:[#allocation23 + $0x18] sm:$0xff]
        %v4380 = vld [vmem:[#allocation25] sm:$0xff]
        %v4381 = vld [vmem:[#allocation25 + $0x8] sm:$0xff]
        %v4382 = vld [vmem:[#allocation25 + $0x10] sm:$0xff]
        %v4383 = vld [vmem:[#allocation25 + $0x18] sm:$0xff]
        %v4384 = vld [vmem:[#allocation26] sm:$0x1]
        %v4385 = vld [vmem:[%s22] sm:$0x1]
        %v4386 = vld [vmem:[#allocation28] sm:$0x1]
        %v4387 = vld [vmem:[%s24] sm:$0xff]
        %v4388 = vld [vmem:[%s24 + $0x8] sm:$0xff]
        %v4389 = vld [vmem:[%s24 + $0x10] sm:$0xff]
        %v4390 = vld [vmem:[%s24 + $0x18] sm:$0xff]
        %v4391 = vld [vmem:[%s24 + $0x20] sm:$0xff]
        %v4392 = vld [vmem:[%s24 + $0x28] sm:$0xff]
        %v4393 = vld [vmem:[%s24 + $0x30] sm:$0xff]
        %v4394 = vld [vmem:[%s24 + $0x38] sm:$0xff]
        %v4395 = vld [vmem:[#allocation29] sm:$0x1]
        %v4397 = vsel %vm1202, %v4358, 0
        %v4400 = vsel %vm1202, %v4363, 0
        %v4403 = vsel %vm1202, %v4368, 0
        %v4406 = vsel %vm1202, %v4373, 0
        %4408 = vmatprep.subr.mxu0 0.0
        %4409 = vmatpush1.msra.mxu0 %v4380
        %4410 = vmatprep.subr.mxu0 0.0
        %4411 = vmatpush1.msra.mxu0 %v4381
        %4412 = vmatprep.subr.mxu0 0.0
        %4413 = vmatpush1.msra.mxu0 %v4382
        %4414 = vmatprep.subr.mxu0 0.0
        %4415 = vmatpush1.msra.mxu0 %v4383
        %4416 = vmatprep.subr.mxu0 0.0
        %4417 = vmatpush1.msra.mxu0 0.0
        %4418 = vmatprep.subr.mxu0 0.0
        %4419 = vmatpush1.msra.mxu0 0.0
        %4420 = vmatprep.subr.mxu0 0.0
        %4421 = vmatpush1.msra.mxu0 0.0
        %4422 = vmatprep.subr.mxu0 0.0
        %4423 = vmatpush1.msra.mxu0 0.0
        %4424 = vmatprep.subr.mxu0 0.0
        %4425 = vmatpush1.msra.mxu0 0.0
        %4426 = vmatprep.subr.mxu0 0.0
        %4427 = vmatpush1.msra.mxu0 0.0
        %4428 = vmatprep.subr.mxu0 0.0
        %4429 = vmatpush1.msra.mxu0 0.0
        %4430 = vmatprep.subr.mxu0 0.0
        %4431 = vmatpush1.msra.mxu0 0.0
        %4432 = vmatprep.subr.mxu0 0.0
        %4433 = vmatpush1.msra.mxu0 0.0
        %4434 = vmatprep.subr.mxu0 0.0
        %4435 = vmatpush1.msra.mxu0 0.0
        %4436 = vmatprep.subr.mxu0 0.0
        %4437 = vmatpush1.msra.mxu0 0.0
        %4438 = vmatprep.subr.mxu0 0.0
        %4439 = vmatpush1.msra.mxu0 0.0
        %4440 = vmatprep.subr.mxu0 0.0
        %4441 = vmatpush1.msra.mxu0 0.0
        %4442 = vmatprep.subr.mxu0 0.0
        %4443 = vmatpush1.msra.mxu0 0.0
        %4444 = vmatprep.subr.mxu0 0.0
        %4445 = vmatpush1.msra.mxu0 0.0
        %4446 = vmatprep.subr.mxu0 0.0
        %4447 = vmatpush1.msra.mxu0 0.0
        %4448 = vmatprep.subr.mxu0 0.0
        %4449 = vmatpush1.msra.mxu0 0.0
        %4450 = vmatprep.subr.mxu0 0.0
        %4451 = vmatpush1.msra.mxu0 0.0
        %4452 = vmatprep.subr.mxu0 0.0
        %4453 = vmatpush1.msra.mxu0 0.0
        %4454 = vmatprep.subr.mxu0 0.0
        %4455 = vmatpush1.msra.mxu0 0.0
        %4456 = vmatprep.subr.mxu0 0.0
        %4457 = vmatpush1.msra.mxu0 0.0
        %4458 = vmatprep.subr.mxu0 0.0
        %4459 = vmatpush1.msra.mxu0 0.0
        %4460 = vmatprep.subr.mxu0 0.0
        %4461 = vmatpush1.msra.mxu0 0.0
        %4462 = vmatprep.subr.mxu0 0.0
        %4463 = vmatpush1.msra.mxu0 0.0
        %4464 = vmatprep.subr.mxu0 0.0
        %4465 = vmatpush1.msra.mxu0 0.0
        %4466 = vmatprep.subr.mxu0 0.0
        %4467 = vmatpush1.msra.mxu0 0.0
        %4468 = vmatprep.subr.mxu0 0.0
        %4469 = vmatpush1.msra.mxu0 0.0
        %4470 = vmatprep.subr.mxu0 0.0
        %4471 = vmatpush1.msra.mxu0 0.0
        %4472 = vmatprep.mubr.f32.mxu0 0.0
        %4473 = vmatmul.mubr.f32.gmra.mrb[0].mxu0 %v4397
        %v4474 = vpop.f32.mrb[0].mxu0
        %v4475 = vadd.f32 0.0, %v4474
        %v4476 = vpop.f32.mrb[0].mxu0
        %4477 = vmatprep.mubr.f32.mxu0 0.0
        %4478 = vmatmul.mubr.f32.gmra.mrb[0].mxu0 %v4400
        %v4479 = vpop.f32.mrb[0].mxu0
        %v4480 = vadd.f32 0.0, %v4479
        %v4481 = vpop.f32.mrb[0].mxu0
        %4482 = vmatprep.mubr.f32.mxu0 0.0
        %4483 = vmatmul.mubr.f32.gmra.mrb[0].mxu0 %v4403
        %v4484 = vpop.f32.mrb[0].mxu0
        %v4485 = vadd.f32 0.0, %v4484
        %v4486 = vpop.f32.mrb[0].mxu0
        %4487 = vmatprep.mubr.f32.mxu0 0.0
        %4488 = vmatmul.mubr.f32.gmra.mrb[0].mxu0 %v4406
        %v4489 = vpop.f32.mrb[0].mxu0
        %v4490 = vadd.f32 0.0, %v4489
        %v4491 = vpop.f32.mrb[0].mxu0
        %4492 = vdwg.mxu0
        %4493 = vmatprep.subr.mxu0 0.0
        %4494 = vmatpush1.msra.mxu0 %v4376
        %4495 = vmatprep.subr.mxu0 0.0
        %4496 = vmatpush1.msra.mxu0 %v4377
        %4497 = vmatprep.subr.mxu0 0.0
        %4498 = vmatpush1.msra.mxu0 %v4378
        %4499 = vmatprep.subr.mxu0 0.0
        %4500 = vmatpush1.msra.mxu0 %v4379
        %4501 = vmatprep.subr.mxu0 0.0
        %4502 = vmatpush1.msra.mxu0 0.0
        %4503 = vmatprep.subr.mxu0 0.0
        %4504 = vmatpush1.msra.mxu0 0.0
        %4505 = vmatprep.subr.mxu0 0.0
        %4506 = vmatpush1.msra.mxu0 0.0
        %4507 = vmatprep.subr.mxu0 0.0
        %4508 = vmatpush1.msra.mxu0 0.0
        %4509 = vmatprep.subr.mxu0 0.0
        %4510 = vmatpush1.msra.mxu0 0.0
        %4511 = vmatprep.subr.mxu0 0.0
        %4512 = vmatpush1.msra.mxu0 0.0
        %4513 = vmatprep.subr.mxu0 0.0
        %4514 = vmatpush1.msra.mxu0 0.0
        %4515 = vmatprep.subr.mxu0 0.0
        %4516 = vmatpush1.msra.mxu0 0.0
        %4517 = vmatprep.subr.mxu0 0.0
        %4518 = vmatpush1.msra.mxu0 0.0
        %4519 = vmatprep.subr.mxu0 0.0
        %4520 = vmatpush1.msra.mxu0 0.0
        %4521 = vmatprep.subr.mxu0 0.0
        %4522 = vmatpush1.msra.mxu0 0.0
        %4523 = vmatprep.subr.mxu0 0.0
        %4524 = vmatpush1.msra.mxu0 0.0
        %4525 = vmatprep.subr.mxu0 0.0
        %4526 = vmatpush1.msra.mxu0 0.0
        %4527 = vmatprep.subr.mxu0 0.0
        %4528 = vmatpush1.msra.mxu0 0.0
        %4529 = vmatprep.subr.mxu0 0.0
        %4530 = vmatpush1.msra.mxu0 0.0
        %4531 = vmatprep.subr.mxu0 0.0
        %4532 = vmatpush1.msra.mxu0 0.0
        %4533 = vmatprep.subr.mxu0 0.0
        %4534 = vmatpush1.msra.mxu0 0.0
        %4535 = vmatprep.subr.mxu0 0.0
        %4536 = vmatpush1.msra.mxu0 0.0
        %4537 = vmatprep.subr.mxu0 0.0
        %4538 = vmatpush1.msra.mxu0 0.0
        %4539 = vmatprep.subr.mxu0 0.0
        %4540 = vmatpush1.msra.mxu0 0.0
        %4541 = vmatprep.subr.mxu0 0.0
        %4542 = vmatpush1.msra.mxu0 0.0
        %4543 = vmatprep.subr.mxu0 0.0
        %4544 = vmatpush1.msra.mxu0 0.0
        %4545 = vmatprep.subr.mxu0 0.0
        %4546 = vmatpush1.msra.mxu0 0.0
        %4547 = vmatprep.subr.mxu0 0.0
        %4548 = vmatpush1.msra.mxu0 0.0
        %4549 = vmatprep.subr.mxu0 0.0
        %4550 = vmatpush1.msra.mxu0 0.0
        %4551 = vmatprep.subr.mxu0 0.0
        %4552 = vmatpush1.msra.mxu0 0.0
        %4553 = vmatprep.subr.mxu0 0.0
        %4554 = vmatpush1.msra.mxu0 0.0
        %4555 = vmatprep.subr.mxu0 0.0
        %4556 = vmatpush1.msra.mxu0 0.0
        %4557 = vmatprep.mubr.f32.mxu0 0.0
        %4558 = vmatmul.mubr.f32.gmra.mrb[0].mxu0 %v3100
        %v4559 = vpop.f32.mrb[0].mxu0
        %v4560 = vadd.f32 %v4475, %v4559
        %v4561 = vpop.f32.mrb[0].mxu0
        %4562 = vmatprep.mubr.f32.mxu0 0.0
        %4563 = vmatmul.mubr.f32.gmra.mrb[0].mxu0 %v3103
        %v4564 = vpop.f32.mrb[0].mxu0
        %v4565 = vadd.f32 %v4480, %v4564
        %v4566 = vpop.f32.mrb[0].mxu0
        %4567 = vmatprep.mubr.f32.mxu0 0.0
        %4568 = vmatmul.mubr.f32.gmra.mrb[0].mxu0 %v3106
        %v4569 = vpop.f32.mrb[0].mxu0
        %v4570 = vadd.f32 %v4485, %v4569
        %v4571 = vpop.f32.mrb[0].mxu0
        %4572 = vmatprep.mubr.f32.mxu0 0.0
        %4573 = vmatmul.mubr.f32.gmra.mrb[0].mxu0 %v3109
        %v4574 = vpop.f32.mrb[0].mxu0
        %v4575 = vadd.f32 %v4490, %v4574
        %v4576 = vpop.f32.mrb[0].mxu0
        %4577 = vdwg.mxu0
        %v4579 = vlaneseq
        %v4580 = vshrl.u32 %v4579, 7
        %v4581 = vsub.s32 0, %v4580
        %v4582 = vrot.slane %v4384, %v4581
        %v4584 = vadd.f32 %v4560, %v4582
        %v4585 = vadd.f32 %v4565, %v4582
        %v4586 = vadd.f32 %v4570, %v4582
        %v4587 = vadd.f32 %v4575, %v4582
        %v4588 = vsel %vm2799, %v4584, 0.0
        %4589 = vadd.xlane.f32.xlu0 %v4588
        %v4590 = vpop.xlane.xlu0 %4589
        %v4591 = vsel %vm2799, %v4585, 0.0
        %4592 = vadd.xlane.f32.xlu0 %v4591
        %v4593 = vpop.xlane.xlu0 %4592
        %v4594 = vsel %vm2799, %v4586, 0.0
        %4595 = vadd.xlane.f32.xlu0 %v4594
        %v4596 = vpop.xlane.xlu0 %4595
        %v4597 = vsel %vm2799, %v4587, 0.0
        %4598 = vadd.xlane.f32.xlu0 %v4597
        %v4599 = vpop.xlane.xlu0 %4598
        %v4600 = vmul.f32 %v4590, %v2812
        %v4601 = vmul.f32 %v4593, %v2812
        %v4602 = vmul.f32 %v4596, %v2812
        %v4603 = vmul.f32 %v4599, %v2812
        %v4604 = vsub.f32 %v4584, %v4600
        %v4605 = vsub.f32 %v4585, %v4601
        %v4606 = vsub.f32 %v4586, %v4602
        %v4607 = vsub.f32 %v4587, %v4603
        %v4608 = vmul.f32 %v4604, %v4604
        %v4609 = vmul.f32 %v4605, %v4605
        %v4610 = vmul.f32 %v4606, %v4606
        %v4611 = vmul.f32 %v4607, %v4607
        %v4612 = vsel %vm2799, %v4608, 0.0
        %4613 = vadd.xlane.f32.xlu0 %v4612
        %v4614 = vpop.xlane.xlu0 %4613
        %v4615 = vsel %vm2799, %v4609, 0.0
        %4616 = vadd.xlane.f32.xlu0 %v4615
        %v4617 = vpop.xlane.xlu0 %4616
        %v4618 = vsel %vm2799, %v4610, 0.0
        %4619 = vadd.xlane.f32.xlu0 %v4618
        %v4620 = vpop.xlane.xlu0 %4619
        %v4621 = vsel %vm2799, %v4611, 0.0
        %4622 = vadd.xlane.f32.xlu0 %v4621
        %v4623 = vpop.xlane.xlu0 %4622
        %v4624 = vmul.f32 %v4614, %v2812
        %v4625 = vmul.f32 %v4617, %v2812
        %v4626 = vmul.f32 %v4620, %v2812
        %v4627 = vmul.f32 %v4623, %v2812
        %v4628 = vadd.f32 %v4624, 1e-05
        %v4629 = vadd.f32 %v4625, 1e-05
        %v4630 = vadd.f32 %v4626, 1e-05
        %v4631 = vadd.f32 %v4627, 1e-05
        %v4632 = vrsqrt.pop %v4628
        %v4633 = vrsqrt.pop %v4629
        %v4634 = vrsqrt.pop %v4630
        %v4635 = vrsqrt.pop %v4631
        %v4636 = vmul.f32 %v4604, %v4632
        %v4637 = vmul.f32 %v4605, %v4633
        %v4638 = vmul.f32 %v4606, %v4634
        %v4639 = vmul.f32 %v4607, %v4635
        %v4641 = vlaneseq
        %v4642 = vshrl.u32 %v4641, 7
        %v4643 = vsub.s32 0, %v4642
        %v4644 = vrot.slane %v4385, %v4643
        %v4646 = vmul.f32 %v4636, %v4644
        %v4647 = vmul.f32 %v4637, %v4644
        %v4648 = vmul.f32 %v4638, %v4644
        %v4649 = vmul.f32 %v4639, %v4644
        %v4651 = vlaneseq
        %v4652 = vshrl.u32 %v4651, 7
        %v4653 = vsub.s32 0, %v4652
        %v4654 = vrot.slane %v4386, %v4653
        %v4656 = vadd.f32 %v4646, %v4654
        %v4657 = vadd.f32 %v4647, %v4654
        %v4658 = vadd.f32 %v4648, %v4654
        %v4659 = vadd.f32 %v4649, %v4654
        %v4660 = vmul.f32 %v4656, 0.5
        %v4661 = vmul.f32 %v4657, 0.5
        %v4662 = vmul.f32 %v4658, 0.5
        %v4663 = vmul.f32 %v4659, 0.5
        %v4664 = vmul.f32 %v4656, 0.70710677
        %v4665 = vmul.f32 %v4657, 0.70710677
        %v4666 = vmul.f32 %v4658, 0.70710677
        %v4667 = vmul.f32 %v4659, 0.70710677
        %vm4668 = vcmp.lt.f32.partialorder %v4664, 0.0
        %vm4669 = vcmp.lt.f32.partialorder %v4665, 0.0
        %vm4670 = vcmp.lt.f32.partialorder %v4666, 0.0
        %vm4671 = vcmp.lt.f32.partialorder %v4667, 0.0
        %v4672 = vsel %vm4668, -1.0, 1.0
        %v4673 = vsel %vm4669, -1.0, 1.0
        %v4674 = vsel %vm4670, -1.0, 1.0
        %v4675 = vsel %vm4671, -1.0, 1.0
        %v4676 = vand.u32 2147483647, %v4664
        %v4677 = vand.u32 2147483647, %v4665
        %v4678 = vand.u32 2147483647, %v4666
        %v4679 = vand.u32 2147483647, %v4667
        %v4680 = vmul.f32 %v4676, 0.3275911
        %v4681 = vmul.f32 %v4677, 0.3275911
        %v4682 = vmul.f32 %v4678, 0.3275911
        %v4683 = vmul.f32 %v4679, 0.3275911
        %v4684 = vadd.f32 %v4680, 1.0
        %v4685 = vadd.f32 %v4681, 1.0
        %v4686 = vadd.f32 %v4682, 1.0
        %v4687 = vadd.f32 %v4683, 1.0
        %v4688 = vrcp.pop %v4684
        %v4689 = vmul.f32 1.0, %v4688
        %v4690 = vrcp.pop %v4685
        %v4691 = vmul.f32 1.0, %v4690
        %v4692 = vrcp.pop %v4686
        %v4693 = vmul.f32 1.0, %v4692
        %v4694 = vrcp.pop %v4687
        %v4695 = vmul.f32 1.0, %v4694
        %v4696 = vmul.f32 %v4689, 1.0614054
        %v4697 = vmul.f32 %v4691, 1.0614054
        %v4698 = vmul.f32 %v4693, 1.0614054
        %v4699 = vmul.f32 %v4695, 1.0614054
        %v4700 = vadd.f32 %v4696, -1.4531521
        %v4701 = vadd.f32 %v4697, -1.4531521
        %v4702 = vadd.f32 %v4698, -1.4531521
        %v4703 = vadd.f32 %v4699, -1.4531521
        %v4704 = vmul.f32 %v4689, %v4700
        %v4705 = vmul.f32 %v4691, %v4701
        %v4706 = vmul.f32 %v4693, %v4702
        %v4707 = vmul.f32 %v4695, %v4703
        %v4708 = vadd.f32 %v4704, 1.4214138
        %v4709 = vadd.f32 %v4705, 1.4214138
        %v4710 = vadd.f32 %v4706, 1.4214138
        %v4711 = vadd.f32 %v4707, 1.4214138
        %v4712 = vmul.f32 %v4689, %v4708
        %v4713 = vmul.f32 %v4691, %v4709
        %v4714 = vmul.f32 %v4693, %v4710
        %v4715 = vmul.f32 %v4695, %v4711
        %v4716 = vadd.f32 %v4712, -0.28449672
        %v4717 = vadd.f32 %v4713, -0.28449672
        %v4718 = vadd.f32 %v4714, -0.28449672
        %v4719 = vadd.f32 %v4715, -0.28449672
        %v4720 = vmul.f32 %v4689, %v4716
        %v4721 = vmul.f32 %v4691, %v4717
        %v4722 = vmul.f32 %v4693, %v4718
        %v4723 = vmul.f32 %v4695, %v4719
        %v4724 = vadd.f32 %v4720, 0.2548296
        %v4725 = vadd.f32 %v4721, 0.2548296
        %v4726 = vadd.f32 %v4722, 0.2548296
        %v4727 = vadd.f32 %v4723, 0.2548296
        %v4728 = vmul.f32 %v4689, %v4724
        %v4729 = vmul.f32 %v4691, %v4725
        %v4730 = vmul.f32 %v4693, %v4726
        %v4731 = vmul.f32 %v4695, %v4727
        %v4732 = vsub.f32 0.0, %v4676
        %v4733 = vsub.f32 0.0, %v4677
        %v4734 = vsub.f32 0.0, %v4678
        %v4735 = vsub.f32 0.0, %v4679
        %v4736 = vmul.f32 %v4732, %v4676
        %v4737 = vmul.f32 %v4733, %v4677
        %v4738 = vmul.f32 %v4734, %v4678
        %v4739 = vmul.f32 %v4735, %v4679
        %v4740 = vmul.f32 %v4736, 1.442695
        %v4741 = vpow.pop %v4740
        %v4742 = vmul.f32 %v4737, 1.442695
        %v4743 = vpow.pop %v4742
        %v4744 = vmul.f32 %v4738, 1.442695
        %v4745 = vpow.pop %v4744
        %v4746 = vmul.f32 %v4739, 1.442695
        %v4747 = vpow.pop %v4746
        %v4748 = vmul.f32 %v4728, %v4741
        %v4749 = vmul.f32 %v4729, %v4743
        %v4750 = vmul.f32 %v4730, %v4745
        %v4751 = vmul.f32 %v4731, %v4747
        %v4752 = vsub.f32 1.0, %v4748
        %v4753 = vsub.f32 1.0, %v4749
        %v4754 = vsub.f32 1.0, %v4750
        %v4755 = vsub.f32 1.0, %v4751
        %v4756 = vmul.f32 %v4672, %v4752
        %v4757 = vmul.f32 %v4673, %v4753
        %v4758 = vmul.f32 %v4674, %v4754
        %v4759 = vmul.f32 %v4675, %v4755
        %v4760 = vadd.f32 %v4756, 1.0
        %v4761 = vadd.f32 %v4757, 1.0
        %v4762 = vadd.f32 %v4758, 1.0
        %v4763 = vadd.f32 %v4759, 1.0
        %v4764 = vmul.f32 %v4660, %v4760
        %v4765 = vmul.f32 %v4661, %v4761
        %v4766 = vmul.f32 %v4662, %v4762
        %v4767 = vmul.f32 %v4663, %v4763
        %v4769 = vlaneseq
        %v4770 = vshrl.u32 %v4769, 7
        %v4771 = vsub.s32 0, %v4770
        %v4772 = vrot.slane %v4395, %v4771
        %v4775 = vsel %vm2799, %v4764, 0
        %v4778 = vsel %vm2799, %v4765, 0
        %v4781 = vsel %vm2799, %v4766, 0
        %v4784 = vsel %vm2799, %v4767, 0
        %4786 = vmatprep.subr.mxu0 0.0
        %4787 = vmatpush1.msra.mxu0 %v4387
        %4788 = vmatprep.subr.mxu0 0.0
        %4789 = vmatpush1.msra.mxu0 %v4388
        %4790 = vmatprep.subr.mxu0 0.0
        %4791 = vmatpush1.msra.mxu0 %v4389
        %4792 = vmatprep.subr.mxu0 0.0
        %4793 = vmatpush1.msra.mxu0 %v4390
        %4794 = vmatprep.subr.mxu0 0.0
        %4795 = vmatpush1.msra.mxu0 %v4391
        %4796 = vmatprep.subr.mxu0 0.0
        %4797 = vmatpush1.msra.mxu0 %v4392
        %4798 = vmatprep.subr.mxu0 0.0
        %4799 = vmatpush1.msra.mxu0 %v4393
        %4800 = vmatprep.subr.mxu0 0.0
        %4801 = vmatpush1.msra.mxu0 %v4394
        %4802 = vmatprep.subr.mxu0 0.0
        %4803 = vmatpush1.msra.mxu0 0.0
        %4804 = vmatprep.subr.mxu0 0.0
        %4805 = vmatpush1.msra.mxu0 0.0
        %4806 = vmatprep.subr.mxu0 0.0
        %4807 = vmatpush1.msra.mxu0 0.0
        %4808 = vmatprep.subr.mxu0 0.0
        %4809 = vmatpush1.msra.mxu0 0.0
        %4810 = vmatprep.subr.mxu0 0.0
        %4811 = vmatpush1.msra.mxu0 0.0
        %4812 = vmatprep.subr.mxu0 0.0
        %4813 = vmatpush1.msra.mxu0 0.0
        %4814 = vmatprep.subr.mxu0 0.0
        %4815 = vmatpush1.msra.mxu0 0.0
        %4816 = vmatprep.subr.mxu0 0.0
        %4817 = vmatpush1.msra.mxu0 0.0
        %4818 = vmatprep.subr.mxu0 0.0
        %4819 = vmatpush1.msra.mxu0 0.0
        %4820 = vmatprep.subr.mxu0 0.0
        %4821 = vmatpush1.msra.mxu0 0.0
        %4822 = vmatprep.subr.mxu0 0.0
        %4823 = vmatpush1.msra.mxu0 0.0
        %4824 = vmatprep.subr.mxu0 0.0
        %4825 = vmatpush1.msra.mxu0 0.0
        %4826 = vmatprep.subr.mxu0 0.0
        %4827 = vmatpush1.msra.mxu0 0.0
        %4828 = vmatprep.subr.mxu0 0.0
        %4829 = vmatpush1.msra.mxu0 0.0
        %4830 = vmatprep.subr.mxu0 0.0
        %4831 = vmatpush1.msra.mxu0 0.0
        %4832 = vmatprep.subr.mxu0 0.0
        %4833 = vmatpush1.msra.mxu0 0.0
        %4834 = vmatprep.subr.mxu0 0.0
        %4835 = vmatpush1.msra.mxu0 0.0
        %4836 = vmatprep.subr.mxu0 0.0
        %4837 = vmatpush1.msra.mxu0 0.0
        %4838 = vmatprep.subr.mxu0 0.0
        %4839 = vmatpush1.msra.mxu0 0.0
        %4840 = vmatprep.subr.mxu0 0.0
        %4841 = vmatpush1.msra.mxu0 0.0
        %4842 = vmatprep.subr.mxu0 0.0
        %4843 = vmatpush1.msra.mxu0 0.0
        %4844 = vmatprep.subr.mxu0 0.0
        %4845 = vmatpush1.msra.mxu0 0.0
        %4846 = vmatprep.subr.mxu0 0.0
        %4847 = vmatpush1.msra.mxu0 0.0
        %4848 = vmatprep.subr.mxu0 0.0
        %4849 = vmatpush1.msra.mxu0 0.0
        %4850 = vmatprep.mubr.f32.mxu0 0.0
        %4851 = vmatmul.mubr.f32.gmra.mrb[0].mxu0 %v4775
        %v4852 = vpop.f32.mrb[0].mxu0
        %v4853 = vadd.f32 %v4772, %v4852
        %v4854 = vpop.f32.mrb[0].mxu0
        %4855 = vmatprep.mubr.f32.mxu0 0.0
        %4856 = vmatmul.mubr.f32.gmra.mrb[0].mxu0 %v4778
        %v4857 = vpop.f32.mrb[0].mxu0
        %v4858 = vadd.f32 %v4772, %v4857
        %v4859 = vpop.f32.mrb[0].mxu0
        %4860 = vmatprep.mubr.f32.mxu0 0.0
        %4861 = vmatmul.mubr.f32.gmra.mrb[0].mxu0 %v4781
        %v4862 = vpop.f32.mrb[0].mxu0
        %v4863 = vadd.f32 %v4772, %v4862
        %v4864 = vpop.f32.mrb[0].mxu0
        %4865 = vmatprep.mubr.f32.mxu0 0.0
        %4866 = vmatmul.mubr.f32.gmra.mrb[0].mxu0 %v4784
        %v4867 = vpop.f32.mrb[0].mxu0
        %v4868 = vadd.f32 %v4772, %v4867
        %v4869 = vpop.f32.mrb[0].mxu0
        %4870 = vdwg.mxu0
        %v4871 = vadd.f32 %v3084, %v4853
        %v4872 = vadd.f32 %v3085, %v4858
        %v4873 = vadd.f32 %v3086, %v4863
        %v4874 = vadd.f32 %v3087, %v4868
        %4875 = vst.msk [vmem:[%s1124] sm:$0xff] %vm1202, %v4871
        %4876 = vst.msk [vmem:[%s1124 + $0x8] sm:$0xff] %vm1202, %v4872
        %4877 = vst.msk [vmem:[%s1131] sm:$0xff] %vm1202, %v4873
        %4878 = vst.msk [vmem:[%s1131 + $0x8] sm:$0xff] %vm1202, %v4874
        %s4879 = sand.u32 %s633, 1
        %s4880 = scalar_lea.sflag [#allocation4], %s4879
        %s4881 = sand.u32 %s633, 1
        %s4882 = smul.addr %s4881, 16
        %s4883 = scalar_lea.vmem [#allocation31], %s4882
        %s4884 = sand.u32 %s659, 1
        %s4885 = scalar_lea.sflag [#allocation33], %s4884
        %s4886 = sand.u32 %s659, 1
        %s4887 = smul.addr %s4886, 16
        %s4888 = scalar_lea.vmem [#allocation32], %s4887
        // Predicated region
        $region197: #{transformer_layer_fused.1} parent=123 // pred_check
          %p4889 = pneg %p643
        $region198: #{transformer_layer_fused.1} parent=123 // pred_check_branch
          %4891 = sbr.rel (%p4889) target = $region200
        $region199: #{transformer_layer_fused.1} parent=123 // pred_region
          %s4893 = ssub.s32 256, 256
          %4894 = vsyncadd %s4880, %s4893
          %s4895 = smul.addr %s59, 2
          %s4896 = smul.addr %s4895, 128
          %s4897 = scalar_lea.hbm %s26, %s4896
          %s4898 = sshll.u32 %s4883, 4
          %s4899 = int_to_ptr.vmem [resolvable:$true] %s4898
          %4904 = dma.vmem_to_hbm [thread:$0]  %s4899, 256, %s4897, %s4880, 128, 128, 8
        $region200: #{transformer_layer_fused.1} parent=123 // pred_fallthru
          _
        // Predicated region
        $region201: #{transformer_layer_fused.1} parent=123 // pred_check
          %p4905 = pneg %p669
        $region202: #{transformer_layer_fused.1} parent=123 // pred_check_branch
          %4907 = sbr.rel (%p4905) target = $region204
        $region203: #{transformer_layer_fused.1} parent=123 // pred_region
          %s4909 = ssub.s32 256, 256
          %4910 = vsyncadd %s4885, %s4909
          %s4911 = smul.addr %s59, 2
          %s4912 = smul.addr %s4911, 128
          %s4913 = scalar_lea.hbm %s27, %s4912
          %s4914 = sshll.u32 %s4888, 4
          %s4915 = int_to_ptr.vmem [resolvable:$true] %s4914
          %4920 = dma.vmem_to_hbm [thread:$0]  %s4915, 256, %s4913, %s4885, 128, 128, 8
        $region204: #{transformer_layer_fused.1} parent=123 // pred_fallthru
          _
      $region124: #{transformer_layer_fused.1} parent=5 // pred_fallthru
        _
      %p4921 = scmp.le.s32.totalorder 2, %s54
      // Predicated region
      $region205: #{transformer_layer_fused.1} parent=5 // pred_check
        %p4922 = pneg %p4921
      $region206: #{transformer_layer_fused.1} parent=5 // pred_check_branch
        %4924 = sbr.rel (%p4922) target = $region208
      $region207: #{transformer_layer_fused.1} parent=5 // pred_region
        %s4925 = ssub.s32 %s54, 2
        // Predicated region
        $region209: #{transformer_layer_fused.1} parent=207 // pred_check
          %p4926 = pneg %p649
        $region210: #{transformer_layer_fused.1} parent=207 // pred_check_branch
          %4928 = sbr.rel (%p4926) target = $region212
        $region211: #{transformer_layer_fused.1} parent=207 // pred_region
          %s4929 = sand.u32 %s634, 1
          %s4930 = scalar_lea.sflag [#allocation4], %s4929
          %s4931 = sand.u32 %s634, 1
          %s4932 = smul.addr %s4931, 16
          %s4933 = scalar_lea.vmem [#allocation31], %s4932
          %4934 = dma.done %s4930, 256
        $region212: #{transformer_layer_fused.1} parent=207 // pred_fallthru
          _
        // Predicated region
        $region213: #{transformer_layer_fused.1} parent=207 // pred_check
          %p4935 = pneg %p675
        $region214: #{transformer_layer_fused.1} parent=207 // pred_check_branch
          %4937 = sbr.rel (%p4935) target = $region216
        $region215: #{transformer_layer_fused.1} parent=207 // pred_region
          %s4938 = sand.u32 %s660, 1
          %s4939 = scalar_lea.sflag [#allocation33], %s4938
          %s4940 = sand.u32 %s660, 1
          %s4941 = smul.addr %s4940, 16
          %s4942 = scalar_lea.vmem [#allocation32], %s4941
          %4943 = dma.done %s4939, 256
        $region216: #{transformer_layer_fused.1} parent=207 // pred_fallthru
          _
      $region208: #{transformer_layer_fused.1} parent=5 // pred_fallthru
        _
    $region6: #{transformer_layer_fused.1} parent=1 // loop_footer
      %s58 = sadd.s32 1, %s54
    $region7: #{transformer_layer_fused.1} parent=1 // loop_footer_branch
      %53 = sbr.rel target = $region3
    $region8: #{transformer_layer_fused.1} parent=1 // loop_exit
      _
    %4944 = vsyncpa [#allocation3], 1
    %s4945 = scalar_lea.sflag [#allocation3], 1
    %4946 = vsyncpa %s4945, 1
    %4947 = vsyncpa [#allocation6], 1
    %s4948 = scalar_lea.sflag [#allocation6], 1
    %4949 = vsyncpa %s4948, 1
    %4950 = vsyncpa [#allocation9], 1
    %4951 = vsyncpa [#allocation12], 1
    %4952 = vsyncpa [#allocation15], 1
    %4953 = vsyncpa [#allocation18], 1
    %4954 = vsyncpa [#allocation21], 1
    %4955 = vsyncpa [#allocation24], 1
    %4956 = vsyncpa [#allocation27], 1
    %4957 = vsyncpa [#allocation30], 1
    %4958 = vsyncpa [#allocation4], 1
    %s4959 = scalar_lea.sflag [#allocation4], 1
    %4960 = vsyncpa %s4959, 1
    %4961 = vsyncpa [#allocation33], 1
    %s4962 = scalar_lea.sflag [#allocation33], 1
    %4963 = vsyncpa %s4962, 1

</llo_original>
